<compile_context>
chip_gen: v5e
topology: v5e:2x2
jax: 0.10.0
libtpu: 0.0.40
codegen_flags: <defaults>
</compile_context>

<pallas_src>
import jax
import jax.numpy as jnp
from jax.experimental import pallas as pl
from jax.experimental.pallas import tpu as pltpu

INPUT_CH = 3
INPUT_CH_VIEWS = 3
D = 8            # mlp_cfg.n_blocks
W = 32           # mlp_cfg.d_hidden
SKIPS = (4,)
OUT_CH = 4       # rgb (3) + alpha (1)
TM = 1024        # batch columns (lanes) per grid step

# Packed-parameter slab layout (weights stored transposed, (out, in)).
SLOT_H = 40      # sublane rows per weight slot (>= 33, multiple of 8)
SLOT_W = 32      # lane columns per weight slot (max fan_in after splitting)
NUM_W = 13       # weight slots
NUM_B = 11       # bias columns


def mlpgraf_kernel(pts_ref, views_ref, w_ref, b_ref, out_ref):
    # Optional v6e/v7x tweak: cast weight/activation dot operands to bfloat16
    # (keep preferred_element_type=f32). Kept f32 here so results match the f32
    # reference on every TPU generation (v5e has no bf16 VPU).
    f32 = jnp.float32

    def w_slot(s, out_dim, in_dim):
        r0 = s * SLOT_H
        return w_ref[r0:r0 + out_dim, 0:in_dim]          # (out, in), static slice

    def b_col(j, out_dim):
        return b_ref[0:out_dim, j:j + 1]                  # (out, 1)

    def dense(s, j, out_dim, in_dim, h):
        return jnp.dot(w_slot(s, out_dim, in_dim), h,
                       preferred_element_type=f32) + b_col(j, out_dim)

    pts = pts_ref[...]                                    # (3, TM)
    views = views_ref[...]                                # (3, TM)

    # pts_linears[0]
    h = jnp.maximum(dense(0, 0, W, INPUT_CH, pts), 0.0)
    # pts_linears[1..4]
    for i in range(1, 5):
        h = jnp.maximum(dense(i, i, W, W, h), 0.0)
    # pts_linears[5] acts on cat([pts, h]); weight split removes the concat.
    z = (jnp.dot(w_slot(5, W, INPUT_CH), pts, preferred_element_type=f32)
         + jnp.dot(w_slot(6, W, W), h, preferred_element_type=f32)
         + b_col(5, W))
    h = jnp.maximum(z, 0.0)
    # pts_linears[6..7]
    h = jnp.maximum(dense(7, 6, W, W, h), 0.0)
    h = jnp.maximum(dense(8, 7, W, W, h), 0.0)

    # feature_linear + alpha_linear fused into one (W+1, W) matmul.
    fa = dense(9, 8, W + 1, W, h)                         # (33, TM)
    feature = fa[0:W, :]                                  # (32, TM)
    alpha = fa[W:W + 1, :]                                # (1, TM)

    # views_linears[0] acts on cat([feature, views]); weight split again.
    hv = (jnp.dot(w_slot(10, W // 2, W), feature, preferred_element_type=f32)
          + jnp.dot(w_slot(11, W // 2, INPUT_CH_VIEWS), views,
                    preferred_element_type=f32)
          + b_col(9, W // 2))
    hv = jnp.maximum(hv, 0.0)                             # (16, TM)

    rgb = dense(12, 10, 3, W // 2, hv)                    # (3, TM)

    out_ref[0:3, :] = rgb
    out_ref[3:4, :] = alpha


def _linear_init(key, fan_in, fan_out):
    """Deterministic init mimicking torch.nn.Linear (uniform +-1/sqrt(fan_in))."""
    k1, k2 = jax.random.split(key)
    bound = 1.0 / float(fan_in) ** 0.5
    w = jax.random.uniform(k1, (fan_in, fan_out), jnp.float32, -bound, bound)
    b = jax.random.uniform(k2, (1, fan_out), jnp.float32, -bound, bound)
    return w, b


def init_params(key):
    keys = jax.random.split(key, D + 4)
    pts_w, pts_b = [], []
    for i in range(D):
        if i == 0:
            fan_in = INPUT_CH
        elif (i - 1) in SKIPS:
            fan_in = W + INPUT_CH
        else:
            fan_in = W
        w, b = _linear_init(keys[i], fan_in, W)
        pts_w.append(w)
        pts_b.append(b)
    wf, bf = _linear_init(keys[D + 0], W, W)                         # feature_linear
    wa, ba = _linear_init(keys[D + 1], W, 1)                         # alpha_linear
    wv, bv = _linear_init(keys[D + 2], W + INPUT_CH_VIEWS, W // 2)   # views_linears[0]
    wr, br = _linear_init(keys[D + 3], W // 2, 3)                    # rgb_linear
    return pts_w, pts_b, wf, bf, wa, ba, wv, bv, wr, br


def pack_params(params):
    """Pack all parameters into one transposed weight slab and one bias slab."""
    pts_w, pts_b, wf, bf, wa, ba, wv, bv, wr, br = params

    blocks = []
    blocks.append(pts_w[0].T)                              # 0: (32, 3)
    for i in range(1, 5):
        blocks.append(pts_w[i].T)                          # 1-4: (32, 32)
    w5t = pts_w[5].T                                       # (32, 35)
    blocks.append(w5t[:, :INPUT_CH])                       # 5: (32, 3)   pts part
    blocks.append(w5t[:, INPUT_CH:])                       # 6: (32, 32)  h part
    blocks.append(pts_w[6].T)                              # 7
    blocks.append(pts_w[7].T)                              # 8
    blocks.append(jnp.concatenate([wf, wa], axis=1).T)     # 9: (33, 32) feature|alpha
    wvt = wv.T                                             # (16, 35)
    blocks.append(wvt[:, :W])                              # 10: (16, 32) feature part
    blocks.append(wvt[:, W:])                              # 11: (16, 3)  views part
    blocks.append(wr.T)                                    # 12: (3, 16)
    assert len(blocks) == NUM_W

    w_slab = jnp.zeros((NUM_W * SLOT_H, SLOT_W), jnp.float32)
    for s, blk in enumerate(blocks):
        o, i = blk.shape
        w_slab = w_slab.at[s * SLOT_H:s * SLOT_H + o, :i].set(blk)

    bcols = [pts_b[i].reshape(-1) for i in range(D)]                       # 0-7
    bcols.append(jnp.concatenate([bf.reshape(-1), ba.reshape(-1)]))        # 8: (33,)
    bcols.append(bv.reshape(-1))                                           # 9: (16,)
    bcols.append(br.reshape(-1))                                           # 10: (3,)
    assert len(bcols) == NUM_B

    b_slab = jnp.zeros((SLOT_H, NUM_B), jnp.float32)
    for j, col in enumerate(bcols):
        b_slab = b_slab.at[:col.shape[0], j].set(col)

    return w_slab, b_slab


def mlpgraf_forward(x, packed, tm=TM):
    """x: (N, 6) -> (N, 4). Batch is padded to a multiple of tm and transposed
    so it lives on the lane axis inside the kernel (lane-dense matmuls/stores)."""
    w_slab, b_slab = packed
    N, C = x.shape
    assert C == INPUT_CH + INPUT_CH_VIEWS

    n_pad = pl.cdiv(N, tm) * tm
    xt = jnp.pad(x.astype(jnp.float32).T, ((0, 0), (0, n_pad - N)))   # (6, n_pad)
    pts_t = xt[:INPUT_CH, :]
    views_t = xt[INPUT_CH:, :]

    out_t = pl.pallas_call(
        mlpgraf_kernel,
        out_shape=jax.ShapeDtypeStruct((OUT_CH, n_pad), jnp.float32),
        grid_spec=pltpu.PrefetchScalarGridSpec(
            num_scalar_prefetch=0,
            grid=(n_pad // tm,),
            in_specs=[
                pl.BlockSpec((INPUT_CH, tm), lambda i: (0, i)),
                pl.BlockSpec((INPUT_CH_VIEWS, tm), lambda i: (0, i)),
                pl.BlockSpec(w_slab.shape, lambda i: (0, 0)),   # resident weights
                pl.BlockSpec(b_slab.shape, lambda i: (0, 0)),   # resident biases
            ],
            out_specs=pl.BlockSpec((OUT_CH, tm), lambda i: (0, i)),
        ),
        compiler_params=pltpu.CompilerParams(
            dimension_semantics=("parallel",)),
    )(pts_t, views_t, w_slab, b_slab)

    return out_t[:, :N].T


def ref_forward(x, params):
    """Pure-JAX reference matching the PyTorch forward (use_viewdirs=True)."""
    pts_w, pts_b, wf, bf, wa, ba, wv, bv, wr, br = params
    pts = x[:, :INPUT_CH]
    views = x[:, INPUT_CH:INPUT_CH + INPUT_CH_VIEWS]
    h = pts
    for i in range(D):
        h = jnp.maximum(h @ pts_w[i] + pts_b[i], 0.0)
        if i in SKIPS:
            h = jnp.concatenate([pts, h], axis=-1)
    alpha = h @ wa + ba
    feature = h @ wf + bf
    hv = jnp.concatenate([feature, views], axis=-1)
    hv = jnp.maximum(hv @ wv + bv, 0.0)
    rgb = hv @ wr + br
    return jnp.concatenate([rgb, alpha], axis=-1)


if __name__ == "__main__":
    key = jax.random.PRNGKey(0)
    kx, kp = jax.random.split(key)

    N = 2000  # deliberately NOT a multiple of TM; wrapper pads to 2048
    x = jax.random.normal(kx, (N, INPUT_CH + INPUT_CH_VIEWS), jnp.float32)
    params = init_params(kp)
    packed = pack_params(params)

    out = mlpgraf_forward(x, packed)
    out = jax.block_until_ready(out)

    ref = ref_forward(x, params)
    assert out.shape == (N, OUT_CH)
    max_err = float(jnp.max(jnp.abs(out - ref)))
    assert jnp.allclose(out, ref, atol=1e-4, rtol=1e-4), (
        f"mismatch vs JAX reference (max abs err {max_err})")

    print("KERNEL_OK")
</pallas_src>

<mosaic_0001>
module attributes {stable_mosaic.version = 11 : i64} {
  func.func @mlpgraf_kernel(%arg0: i32, %arg1: memref<3x1024xf32, #tpu.memory_space<vmem>>, %arg2: memref<3x1024xf32, #tpu.memory_space<vmem>>, %arg3: memref<520x32xf32, #tpu.memory_space<vmem>>, %arg4: memref<40x11xf32, #tpu.memory_space<vmem>>, %arg5: memref<4x1024xf32, #tpu.memory_space<vmem>>) attributes {dimension_semantics = [#tpu.dimension_semantics<parallel>], iteration_bounds = array<i64: 2>, scalar_prefetch = 0 : i64, scratch_operands = 0 : i64, tpu.core_type = #tpu.core_type<tc>, window_params = [{transform_indices = @transform_0, window_bounds = array<i64: 3, 1024>}, {transform_indices = @transform_1, window_bounds = array<i64: 3, 1024>}, {pipeline_mode = #tpu.pipeline_mode<synchronous>, transform_indices = @transform_2, window_bounds = array<i64: 520, 32>}, {pipeline_mode = #tpu.pipeline_mode<synchronous>, transform_indices = @transform_3, window_bounds = array<i64: 40, 11>}, {transform_indices = @transform_4, window_bounds = array<i64: 4, 1024>}]} {
    %c0 = arith.constant 0 : index
    %c0_0 = arith.constant 0 : index
    %0 = vector.load %arg1[%c0, %c0_0] : memref<3x1024xf32, #tpu.memory_space<vmem>>, vector<3x1024xf32>
    %c0_1 = arith.constant 0 : index
    %c0_2 = arith.constant 0 : index
    %1 = vector.load %arg2[%c0_1, %c0_2] : memref<3x1024xf32, #tpu.memory_space<vmem>>, vector<3x1024xf32>
    %c0_3 = arith.constant 0 : index
    %c0_4 = arith.constant 0 : index
    %2 = vector.load %arg3[%c0_3, %c0_4] : memref<520x32xf32, #tpu.memory_space<vmem>>, vector<32x3xf32>
    %cst = arith.constant dense<0.000000e+00> : vector<32x1024xf32>
    %3 = tpu.matmul %2, %0, %cst {dimension_numbers = #tpu.dot_dimension_numbers<[1], [0], [0], [1], [0, 0, 1, 1], [], []>} : vector<32x3xf32>, vector<3x1024xf32>, vector<32x1024xf32> -> vector<32x1024xf32>
    %c0_5 = arith.constant 0 : index
    %c0_6 = arith.constant 0 : index
    %4 = vector.load %arg4[%c0_5, %c0_6] : memref<40x11xf32, #tpu.memory_space<vmem>>, vector<32x1xf32>
    %5 = vector.broadcast %4 : vector<32x1xf32> to vector<32x1024xf32>
    %6 = arith.addf %3, %5 : vector<32x1024xf32>
    %cst_7 = arith.constant 0.000000e+00 : f32
    %7 = vector.broadcast %cst_7 : f32 to vector<32x1024xf32>
    %8 = arith.maximumf %6, %7 : vector<32x1024xf32>
    %c40 = arith.constant 40 : index
    %c0_8 = arith.constant 0 : index
    %9 = vector.load %arg3[%c40, %c0_8] : memref<520x32xf32, #tpu.memory_space<vmem>>, vector<32x32xf32>
    %cst_9 = arith.constant dense<0.000000e+00> : vector<32x1024xf32>
    %10 = tpu.matmul %9, %8, %cst_9 {dimension_numbers = #tpu.dot_dimension_numbers<[1], [0], [0], [1], [0, 0, 1, 1], [], []>} : vector<32x32xf32>, vector<32x1024xf32>, vector<32x1024xf32> -> vector<32x1024xf32>
    %c0_10 = arith.constant 0 : index
    %c1 = arith.constant 1 : index
    %11 = vector.load %arg4[%c0_10, %c1] : memref<40x11xf32, #tpu.memory_space<vmem>>, vector<32x1xf32>
    %12 = vector.broadcast %11 : vector<32x1xf32> to vector<32x1024xf32>
    %13 = arith.addf %10, %12 : vector<32x1024xf32>
    %cst_11 = arith.constant 0.000000e+00 : f32
    %14 = vector.broadcast %cst_11 : f32 to vector<32x1024xf32>
    %15 = arith.maximumf %13, %14 : vector<32x1024xf32>
    %c80 = arith.constant 80 : index
    %c0_12 = arith.constant 0 : index
    %16 = vector.load %arg3[%c80, %c0_12] : memref<520x32xf32, #tpu.memory_space<vmem>>, vector<32x32xf32>
    %cst_13 = arith.constant dense<0.000000e+00> : vector<32x1024xf32>
    %17 = tpu.matmul %16, %15, %cst_13 {dimension_numbers = #tpu.dot_dimension_numbers<[1], [0], [0], [1], [0, 0, 1, 1], [], []>} : vector<32x32xf32>, vector<32x1024xf32>, vector<32x1024xf32> -> vector<32x1024xf32>
    %c0_14 = arith.constant 0 : index
    %c2 = arith.constant 2 : index
    %18 = vector.load %arg4[%c0_14, %c2] : memref<40x11xf32, #tpu.memory_space<vmem>>, vector<32x1xf32>
    %19 = vector.broadcast %18 : vector<32x1xf32> to vector<32x1024xf32>
    %20 = arith.addf %17, %19 : vector<32x1024xf32>
    %cst_15 = arith.constant 0.000000e+00 : f32
    %21 = vector.broadcast %cst_15 : f32 to vector<32x1024xf32>
    %22 = arith.maximumf %20, %21 : vector<32x1024xf32>
    %c120 = arith.constant 120 : index
    %c0_16 = arith.constant 0 : index
    %23 = vector.load %arg3[%c120, %c0_16] : memref<520x32xf32, #tpu.memory_space<vmem>>, vector<32x32xf32>
    %cst_17 = arith.constant dense<0.000000e+00> : vector<32x1024xf32>
    %24 = tpu.matmul %23, %22, %cst_17 {dimension_numbers = #tpu.dot_dimension_numbers<[1], [0], [0], [1], [0, 0, 1, 1], [], []>} : vector<32x32xf32>, vector<32x1024xf32>, vector<32x1024xf32> -> vector<32x1024xf32>
    %c0_18 = arith.constant 0 : index
    %c3 = arith.constant 3 : index
    %25 = vector.load %arg4[%c0_18, %c3] : memref<40x11xf32, #tpu.memory_space<vmem>>, vector<32x1xf32>
    %26 = vector.broadcast %25 : vector<32x1xf32> to vector<32x1024xf32>
    %27 = arith.addf %24, %26 : vector<32x1024xf32>
    %cst_19 = arith.constant 0.000000e+00 : f32
    %28 = vector.broadcast %cst_19 : f32 to vector<32x1024xf32>
    %29 = arith.maximumf %27, %28 : vector<32x1024xf32>
    %c160 = arith.constant 160 : index
    %c0_20 = arith.constant 0 : index
    %30 = vector.load %arg3[%c160, %c0_20] : memref<520x32xf32, #tpu.memory_space<vmem>>, vector<32x32xf32>
    %cst_21 = arith.constant dense<0.000000e+00> : vector<32x1024xf32>
    %31 = tpu.matmul %30, %29, %cst_21 {dimension_numbers = #tpu.dot_dimension_numbers<[1], [0], [0], [1], [0, 0, 1, 1], [], []>} : vector<32x32xf32>, vector<32x1024xf32>, vector<32x1024xf32> -> vector<32x1024xf32>
    %c0_22 = arith.constant 0 : index
    %c4 = arith.constant 4 : index
    %32 = vector.load %arg4[%c0_22, %c4] : memref<40x11xf32, #tpu.memory_space<vmem>>, vector<32x1xf32>
    %33 = vector.broadcast %32 : vector<32x1xf32> to vector<32x1024xf32>
    %34 = arith.addf %31, %33 : vector<32x1024xf32>
    %cst_23 = arith.constant 0.000000e+00 : f32
    %35 = vector.broadcast %cst_23 : f32 to vector<32x1024xf32>
    %36 = arith.maximumf %34, %35 : vector<32x1024xf32>
    %c200 = arith.constant 200 : index
    %c0_24 = arith.constant 0 : index
    %37 = vector.load %arg3[%c200, %c0_24] : memref<520x32xf32, #tpu.memory_space<vmem>>, vector<32x3xf32>
    %cst_25 = arith.constant dense<0.000000e+00> : vector<32x1024xf32>
    %38 = tpu.matmul %37, %0, %cst_25 {dimension_numbers = #tpu.dot_dimension_numbers<[1], [0], [0], [1], [0, 0, 1, 1], [], []>} : vector<32x3xf32>, vector<3x1024xf32>, vector<32x1024xf32> -> vector<32x1024xf32>
    %c240 = arith.constant 240 : index
    %c0_26 = arith.constant 0 : index
    %39 = vector.load %arg3[%c240, %c0_26] : memref<520x32xf32, #tpu.memory_space<vmem>>, vector<32x32xf32>
    %cst_27 = arith.constant dense<0.000000e+00> : vector<32x1024xf32>
    %40 = tpu.matmul %39, %36, %cst_27 {dimension_numbers = #tpu.dot_dimension_numbers<[1], [0], [0], [1], [0, 0, 1, 1], [], []>} : vector<32x32xf32>, vector<32x1024xf32>, vector<32x1024xf32> -> vector<32x1024xf32>
    %41 = arith.addf %38, %40 : vector<32x1024xf32>
    %c0_28 = arith.constant 0 : index
    %c5 = arith.constant 5 : index
    %42 = vector.load %arg4[%c0_28, %c5] : memref<40x11xf32, #tpu.memory_space<vmem>>, vector<32x1xf32>
    %43 = vector.broadcast %42 : vector<32x1xf32> to vector<32x1024xf32>
    %44 = arith.addf %41, %43 : vector<32x1024xf32>
    %cst_29 = arith.constant 0.000000e+00 : f32
    %45 = vector.broadcast %cst_29 : f32 to vector<32x1024xf32>
    %46 = arith.maximumf %44, %45 : vector<32x1024xf32>
    %c280 = arith.constant 280 : index
    %c0_30 = arith.constant 0 : index
    %47 = vector.load %arg3[%c280, %c0_30] : memref<520x32xf32, #tpu.memory_space<vmem>>, vector<32x32xf32>
    %cst_31 = arith.constant dense<0.000000e+00> : vector<32x1024xf32>
    %48 = tpu.matmul %47, %46, %cst_31 {dimension_numbers = #tpu.dot_dimension_numbers<[1], [0], [0], [1], [0, 0, 1, 1], [], []>} : vector<32x32xf32>, vector<32x1024xf32>, vector<32x1024xf32> -> vector<32x1024xf32>
    %c0_32 = arith.constant 0 : index
    %c6 = arith.constant 6 : index
    %49 = vector.load %arg4[%c0_32, %c6] : memref<40x11xf32, #tpu.memory_space<vmem>>, vector<32x1xf32>
    %50 = vector.broadcast %49 : vector<32x1xf32> to vector<32x1024xf32>
    %51 = arith.addf %48, %50 : vector<32x1024xf32>
    %cst_33 = arith.constant 0.000000e+00 : f32
    %52 = vector.broadcast %cst_33 : f32 to vector<32x1024xf32>
    %53 = arith.maximumf %51, %52 : vector<32x1024xf32>
    %c320 = arith.constant 320 : index
    %c0_34 = arith.constant 0 : index
    %54 = vector.load %arg3[%c320, %c0_34] : memref<520x32xf32, #tpu.memory_space<vmem>>, vector<32x32xf32>
    %cst_35 = arith.constant dense<0.000000e+00> : vector<32x1024xf32>
    %55 = tpu.matmul %54, %53, %cst_35 {dimension_numbers = #tpu.dot_dimension_numbers<[1], [0], [0], [1], [0, 0, 1, 1], [], []>} : vector<32x32xf32>, vector<32x1024xf32>, vector<32x1024xf32> -> vector<32x1024xf32>
    %c0_36 = arith.constant 0 : index
    %c7 = arith.constant 7 : index
    %56 = vector.load %arg4[%c0_36, %c7] : memref<40x11xf32, #tpu.memory_space<vmem>>, vector<32x1xf32>
    %57 = vector.broadcast %56 : vector<32x1xf32> to vector<32x1024xf32>
    %58 = arith.addf %55, %57 : vector<32x1024xf32>
    %cst_37 = arith.constant 0.000000e+00 : f32
    %59 = vector.broadcast %cst_37 : f32 to vector<32x1024xf32>
    %60 = arith.maximumf %58, %59 : vector<32x1024xf32>
    %c360 = arith.constant 360 : index
    %c0_38 = arith.constant 0 : index
    %61 = vector.load %arg3[%c360, %c0_38] : memref<520x32xf32, #tpu.memory_space<vmem>>, vector<33x32xf32>
    %cst_39 = arith.constant dense<0.000000e+00> : vector<33x1024xf32>
    %62 = tpu.matmul %61, %60, %cst_39 {dimension_numbers = #tpu.dot_dimension_numbers<[1], [0], [0], [1], [0, 0, 1, 1], [], []>} : vector<33x32xf32>, vector<32x1024xf32>, vector<33x1024xf32> -> vector<33x1024xf32>
    %c0_40 = arith.constant 0 : index
    %c8 = arith.constant 8 : index
    %63 = vector.load %arg4[%c0_40, %c8] : memref<40x11xf32, #tpu.memory_space<vmem>>, vector<33x1xf32>
    %64 = vector.broadcast %63 : vector<33x1xf32> to vector<33x1024xf32>
    %65 = arith.addf %62, %64 : vector<33x1024xf32>
    %66 = vector.extract_strided_slice %65 {offsets = [0, 0], sizes = [32, 1024], strides = [1, 1]} : vector<33x1024xf32> to vector<32x1024xf32>
    %67 = vector.extract_strided_slice %65 {offsets = [32, 0], sizes = [1, 1024], strides = [1, 1]} : vector<33x1024xf32> to vector<1x1024xf32>
    %c400 = arith.constant 400 : index
    %c0_41 = arith.constant 0 : index
    %68 = vector.load %arg3[%c400, %c0_41] : memref<520x32xf32, #tpu.memory_space<vmem>>, vector<16x32xf32>
    %cst_42 = arith.constant dense<0.000000e+00> : vector<16x1024xf32>
    %69 = tpu.matmul %68, %66, %cst_42 {dimension_numbers = #tpu.dot_dimension_numbers<[1], [0], [0], [1], [0, 0, 1, 1], [], []>} : vector<16x32xf32>, vector<32x1024xf32>, vector<16x1024xf32> -> vector<16x1024xf32>
    %c440 = arith.constant 440 : index
    %c0_43 = arith.constant 0 : index
    %70 = vector.load %arg3[%c440, %c0_43] : memref<520x32xf32, #tpu.memory_space<vmem>>, vector<16x3xf32>
    %cst_44 = arith.constant dense<0.000000e+00> : vector<16x1024xf32>
    %71 = tpu.matmul %70, %1, %cst_44 {dimension_numbers = #tpu.dot_dimension_numbers<[1], [0], [0], [1], [0, 0, 1, 1], [], []>} : vector<16x3xf32>, vector<3x1024xf32>, vector<16x1024xf32> -> vector<16x1024xf32>
    %72 = arith.addf %69, %71 : vector<16x1024xf32>
    %c0_45 = arith.constant 0 : index
    %c9 = arith.constant 9 : index
    %73 = vector.load %arg4[%c0_45, %c9] : memref<40x11xf32, #tpu.memory_space<vmem>>, vector<16x1xf32>
    %74 = vector.broadcast %73 : vector<16x1xf32> to vector<16x1024xf32>
    %75 = arith.addf %72, %74 : vector<16x1024xf32>
    %cst_46 = arith.constant 0.000000e+00 : f32
    %76 = vector.broadcast %cst_46 : f32 to vector<16x1024xf32>
    %77 = arith.maximumf %75, %76 : vector<16x1024xf32>
    %c480 = arith.constant 480 : index
    %c0_47 = arith.constant 0 : index
    %78 = vector.load %arg3[%c480, %c0_47] : memref<520x32xf32, #tpu.memory_space<vmem>>, vector<3x16xf32>
    %cst_48 = arith.constant dense<0.000000e+00> : vector<3x1024xf32>
    %79 = tpu.matmul %78, %77, %cst_48 {dimension_numbers = #tpu.dot_dimension_numbers<[1], [0], [0], [1], [0, 0, 1, 1], [], []>} : vector<3x16xf32>, vector<16x1024xf32>, vector<3x1024xf32> -> vector<3x1024xf32>
    %c0_49 = arith.constant 0 : index
    %c10 = arith.constant 10 : index
    %80 = vector.load %arg4[%c0_49, %c10] : memref<40x11xf32, #tpu.memory_space<vmem>>, vector<3x1xf32>
    %81 = vector.broadcast %80 : vector<3x1xf32> to vector<3x1024xf32>
    %82 = arith.addf %79, %81 : vector<3x1024xf32>
    %c0_50 = arith.constant 0 : index
    %c0_51 = arith.constant 0 : index
    %83 = vector.load %arg5[%c0_50, %c0_51] : memref<4x1024xf32, #tpu.memory_space<vmem>>, vector<3x1024xf32>
    tpu.vector_store %arg5[%c0_50, %c0_51], %82 {strides = array<i32>} : memref<4x1024xf32, #tpu.memory_space<vmem>>, vector<3x1024xf32>,
    %c3_52 = arith.constant 3 : index
    %c0_53 = arith.constant 0 : index
    %84 = vector.load %arg5[%c3_52, %c0_53] : memref<4x1024xf32, #tpu.memory_space<vmem>>, vector<1x1024xf32>
    tpu.vector_store %arg5[%c3_52, %c0_53], %67 {strides = array<i32>} : memref<4x1024xf32, #tpu.memory_space<vmem>>, vector<1x1024xf32>,
    return
  }
  func.func @transform_0(%arg0: i32) -> (i32, i32) {
    %c0_i32 = arith.constant 0 : i32
    %c0_i32_0 = arith.constant 0 : i32
    return %c0_i32, %arg0 : i32, i32
  }
  func.func @transform_1(%arg0: i32) -> (i32, i32) {
    %c0_i32 = arith.constant 0 : i32
    %c0_i32_0 = arith.constant 0 : i32
    return %c0_i32, %arg0 : i32, i32
  }
  func.func @transform_2(%arg0: i32) -> (i32, i32) {
    %c0_i32 = arith.constant 0 : i32
    %c0_i32_0 = arith.constant 0 : i32
    %c0_i32_1 = arith.constant 0 : i32
    return %c0_i32, %c0_i32_0 : i32, i32
  }
  func.func @transform_3(%arg0: i32) -> (i32, i32) {
    %c0_i32 = arith.constant 0 : i32
    %c0_i32_0 = arith.constant 0 : i32
    %c0_i32_1 = arith.constant 0 : i32
    return %c0_i32, %c0_i32_0 : i32, i32
  }
  func.func @transform_4(%arg0: i32) -> (i32, i32) {
    %c0_i32 = arith.constant 0 : i32
    %c0_i32_0 = arith.constant 0 : i32
    return %c0_i32, %arg0 : i32, i32
  }
}

</mosaic_0001>

<llo_original>
// kernel: tpu_custom_call.1
$region0: #{tpu_custom_call.1}
  #allocation0 [shape = 'u32[]', space=smem, size = 0x4, offset = 0x4, fixed_abs, tag = 'smem constant byte address 0x4 - core index']
  #allocation1 [shape = 'u32[72,128]{1,0:T(1,128)}', space=vmem, size = 0x9000, scoped, tag = 'internal scratch']
  %s0 = inlined_call_operand.vmem [shape: f32[3,2048], index: 0, kind: input, shape index: {}]
  %s1 = inlined_call_operand.vmem [shape: f32[3,2048], index: 1, kind: input, shape index: {}]
  %s2 = inlined_call_operand.vmem [shape: f32[520,32], index: 2, kind: input, shape index: {}]
  %s3 = inlined_call_operand.vmem [shape: f32[40,11], index: 3, kind: input, shape index: {}]
  %s4 = inlined_call_operand.hbm [shape: f32[4,2048], index: 4, kind: output, shape index: {}]
  %s5 = sld [smem:[#allocation0]]
  $region49: #{tpu_custom_call.1} parent=0
    _
  %s7 = ssub.s32 1, %s5
  %s8 = scalar_select 0, %s7, %s5
  $region1: #{tpu_custom_call.1} parent=0
    #allocation2 [shape = 'u8[32768]{0}', space=vmem, size = 0x8000, scoped, tag = 'output window, operand 0']
    #allocation3 [shape = 's32[2]{0}', space=sflag, size = 0x8, scoped, tag = 'scoped memory for tpu_custom_call.1']
    %9 = vsyncpa [#allocation3], 0
    %s10 = scalar_lea.sflag [#allocation3], 1
    %11 = vsyncpa %s10, 0
    loop: start=0, step=1, limit=4
    $region2: #{tpu_custom_call.1} parent=1 // loop_pre_header
      _
    $region3: #{tpu_custom_call.1} parent=1 // loop_header
      %s13 = sphi 0, %s17
      %p14 = scmp.ge.s32.totalorder %s13, 4
      %s23 = sphi 0, %s25
      %s26 = sphi 0, %s23
      %s27 = sphi 0, %s26
      %s43 = sphi 0, %s27
      %s49 = sphi 0, %s51
      %s52 = sphi 0, %s49
      %s53 = sphi 0, %s52
      %s69 = sphi 0, %s53
      %s73 = sphi 0, %s73
      %s75 = sphi 0, %s73
      %s76 = sphi 0, %s75
      %s90 = sphi 0, %s76
      %s94 = sphi 0, %s94
      %s96 = sphi 0, %s94
      %s97 = sphi 0, %s96
      %s111 = sphi 0, %s97
      %s117 = sphi 0, %s119
      %s120 = sphi 0, %s117
      %s121 = sphi 0, %s120
      %s137 = sphi 0, %s121
    $region4: #{tpu_custom_call.1} parent=1 // loop_header_branch
      %16 = sbr.rel (%p14) target = $region8
    $region5: #{tpu_custom_call.1} parent=1 // loop_body
      %s18 = ssub.s32 %s13, 1
      %s19 = ssub.s32 %s13, 2
      %s20 = sadd.s32 %s13, 1
      %s21 = ssub.s32 %s13, %s20
      %p22 = scmp.eq.s32.totalorder %s21, 0
      %s24 = sadd.s32 %s23, 1
      %s25 = scalar_select %p22, %s23, %s24
      %p28 = pneg %p22
      %p29 = scmp.eq.s32.totalorder %s13, 1
      %p30 = por %p28, %p29
      %p31 = scmp.ne.s32.totalorder %s23, %s26
      %p32 = scmp.eq.s32.totalorder %s13, 0
      %p33 = por %p31, %p32
      %p34 = scmp.ne.s32.totalorder %s23, %s26
      %p35 = scmp.eq.s32.totalorder %s18, 1
      %p36 = por %p34, %p35
      %p37 = scmp.ne.s32.totalorder %s26, %s27
      %p38 = scmp.eq.s32.totalorder %s18, 0
      %p39 = por %p37, %p38
      %p40 = scmp.ne.s32.totalorder %s26, %s27
      %p41 = scmp.eq.s32.totalorder %s19, 1
      %p42 = por %p40, %p41
      %p44 = scmp.ne.s32.totalorder %s27, %s43
      %p45 = scmp.eq.s32.totalorder %s19, 0
      %p46 = por %p44, %p45
      %s47 = ssub.s32 %s13, %s20
      %p48 = scmp.eq.s32.totalorder %s47, 0
      %s50 = sadd.s32 %s49, 1
      %s51 = scalar_select %p48, %s49, %s50
      %p54 = pneg %p48
      %p55 = scmp.eq.s32.totalorder %s13, 1
      %p56 = por %p54, %p55
      %p57 = scmp.ne.s32.totalorder %s49, %s52
      %p58 = scmp.eq.s32.totalorder %s13, 0
      %p59 = por %p57, %p58
      %p60 = scmp.ne.s32.totalorder %s49, %s52
      %p61 = scmp.eq.s32.totalorder %s18, 1
      %p62 = por %p60, %p61
      %p63 = scmp.ne.s32.totalorder %s52, %s53
      %p64 = scmp.eq.s32.totalorder %s18, 0
      %p65 = por %p63, %p64
      %p66 = scmp.ne.s32.totalorder %s52, %s53
      %p67 = scmp.eq.s32.totalorder %s19, 1
      %p68 = por %p66, %p67
      %p70 = scmp.ne.s32.totalorder %s53, %s69
      %p71 = scmp.eq.s32.totalorder %s19, 0
      %p72 = por %p70, %p71
      %s74 = sadd.s32 %s73, 1
      %p77 = scmp.eq.s32.totalorder %s13, 1
      %p78 = scmp.ne.s32.totalorder %s73, %s75
      %p79 = scmp.eq.s32.totalorder %s13, 0
      %p80 = por %p78, %p79
      %p81 = scmp.ne.s32.totalorder %s73, %s75
      %p82 = scmp.eq.s32.totalorder %s18, 1
      %p83 = por %p81, %p82
      %p84 = scmp.ne.s32.totalorder %s75, %s76
      %p85 = scmp.eq.s32.totalorder %s18, 0
      %p86 = por %p84, %p85
      %p87 = scmp.ne.s32.totalorder %s75, %s76
      %p88 = scmp.eq.s32.totalorder %s19, 1
      %p89 = por %p87, %p88
      %p91 = scmp.ne.s32.totalorder %s76, %s90
      %p92 = scmp.eq.s32.totalorder %s19, 0
      %p93 = por %p91, %p92
      %s95 = sadd.s32 %s94, 1
      %p98 = scmp.eq.s32.totalorder %s13, 1
      %p99 = scmp.ne.s32.totalorder %s94, %s96
      %p100 = scmp.eq.s32.totalorder %s13, 0
      %p101 = por %p99, %p100
      %p102 = scmp.ne.s32.totalorder %s94, %s96
      %p103 = scmp.eq.s32.totalorder %s18, 1
      %p104 = por %p102, %p103
      %p105 = scmp.ne.s32.totalorder %s96, %s97
      %p106 = scmp.eq.s32.totalorder %s18, 0
      %p107 = por %p105, %p106
      %p108 = scmp.ne.s32.totalorder %s96, %s97
      %p109 = scmp.eq.s32.totalorder %s19, 1
      %p110 = por %p108, %p109
      %p112 = scmp.ne.s32.totalorder %s97, %s111
      %p113 = scmp.eq.s32.totalorder %s19, 0
      %p114 = por %p112, %p113
      %s115 = ssub.s32 %s13, %s20
      %p116 = scmp.eq.s32.totalorder %s115, 0
      %s118 = sadd.s32 %s117, 1
      %s119 = scalar_select %p116, %s117, %s118
      %p122 = pneg %p116
      %p123 = scmp.eq.s32.totalorder %s13, 1
      %p124 = por %p122, %p123
      %p125 = scmp.ne.s32.totalorder %s117, %s120
      %p126 = scmp.eq.s32.totalorder %s13, 0
      %p127 = por %p125, %p126
      %p128 = scmp.ne.s32.totalorder %s117, %s120
      %p129 = scmp.eq.s32.totalorder %s18, 1
      %p130 = por %p128, %p129
      %p131 = scmp.ne.s32.totalorder %s120, %s121
      %p132 = scmp.eq.s32.totalorder %s18, 0
      %p133 = por %p131, %p132
      %p134 = scmp.ne.s32.totalorder %s120, %s121
      %p135 = scmp.eq.s32.totalorder %s19, 1
      %p136 = por %p134, %p135
      %p138 = scmp.ne.s32.totalorder %s121, %s137
      %p139 = scmp.eq.s32.totalorder %s19, 0
      %p140 = por %p138, %p139
      %p141 = scmp.le.s32.totalorder 1, %s13
      %p142 = scmp.lt.s32.totalorder %s13, 3
      %p143 = pnand %p141, %p142
      %p144 = pneg %p143
      // Predicated region
      $region9: #{tpu_custom_call.1} parent=5 // pred_check
        _
      $region10: #{tpu_custom_call.1} parent=5 // pred_check_branch
        %146 = sbr.rel (%p143) target = $region12
      $region11: #{tpu_custom_call.1} parent=5 // pred_region
        %s147 = ssub.s32 %s13, 1
        // Predicated region
        $region13: #{tpu_custom_call.1} parent=11 // pred_check
          %p148 = pneg %p86
        $region14: #{tpu_custom_call.1} parent=11 // pred_check_branch
          %150 = sbr.rel (%p148) target = $region16
        $region15: #{tpu_custom_call.1} parent=11 // pred_region
          _
        $region16: #{tpu_custom_call.1} parent=11 // pred_fallthru
          _
        // Predicated region
        $region17: #{tpu_custom_call.1} parent=11 // pred_check
          %p151 = pneg %p107
        $region18: #{tpu_custom_call.1} parent=11 // pred_check_branch
          %153 = sbr.rel (%p151) target = $region20
        $region19: #{tpu_custom_call.1} parent=11 // pred_region
          _
        $region20: #{tpu_custom_call.1} parent=11 // pred_fallthru
          _
      $region12: #{tpu_custom_call.1} parent=5 // pred_fallthru
        _
      %p154 = scmp.lt.s32.totalorder %s13, 2
      // Predicated region
      $region21: #{tpu_custom_call.1} parent=5 // pred_check
        %p155 = pneg %p154
      $region22: #{tpu_custom_call.1} parent=5 // pred_check_branch
        %157 = sbr.rel (%p155) target = $region24
      $region23: #{tpu_custom_call.1} parent=5 // pred_region
        // Predicated region
        $region25: #{tpu_custom_call.1} parent=23 // pred_check
          %p158 = pneg %p33
        $region26: #{tpu_custom_call.1} parent=23 // pred_check_branch
          %160 = sbr.rel (%p158) target = $region28
        $region27: #{tpu_custom_call.1} parent=23 // pred_region
          %s161 = smul.u32 8, %s13
          %p162 = scmp.lt.s32.totalorder %s161, 15
          %s163 = scalar_select %p162, %s161, 15
          %s164 = smul.addr %s163, 4
          %s165 = scalar_lea.vmem %s0, %s164
          %s166 = smul.u32 8, %s13
        $region28: #{tpu_custom_call.1} parent=23 // pred_fallthru
          _
        // Predicated region
        $region29: #{tpu_custom_call.1} parent=23 // pred_check
          %p167 = pneg %p59
        $region30: #{tpu_custom_call.1} parent=23 // pred_check_branch
          %169 = sbr.rel (%p167) target = $region32
        $region31: #{tpu_custom_call.1} parent=23 // pred_region
          %s170 = smul.u32 8, %s13
          %p171 = scmp.lt.s32.totalorder %s170, 15
          %s172 = scalar_select %p171, %s170, 15
          %s173 = smul.addr %s172, 4
          %s174 = scalar_lea.vmem %s1, %s173
          %s175 = smul.u32 8, %s13
        $region32: #{tpu_custom_call.1} parent=23 // pred_fallthru
          _
      $region24: #{tpu_custom_call.1} parent=5 // pred_fallthru
        _
      %p176 = scmp.le.s32.totalorder 1, %s13
      %p177 = scmp.lt.s32.totalorder %s13, 3
      %p178 = pnand %p176, %p177
      %p179 = pneg %p178
      // Predicated region
      $region33: #{tpu_custom_call.1} parent=5 // pred_check
        _
      $region34: #{tpu_custom_call.1} parent=5 // pred_check_branch
        %181 = sbr.rel (%p178) target = $region36
      $region35: #{tpu_custom_call.1} parent=5 // pred_region
        %s182 = ssub.s32 %s13, 1
        %s183 = smul.u32 8, %s18
        %p184 = scmp.lt.s32.totalorder %s183, 15
        %s185 = scalar_select %p184, %s183, 15
        %s186 = smul.addr %s185, 4
        %s187 = scalar_lea.vmem %s0, %s186
        %p188 = pneg %p39
        %p189 = pneg %p36
        %s190 = smul.u32 8, %s18
        %p191 = scmp.lt.s32.totalorder %s190, 15
        %s192 = scalar_select %p191, %s190, 15
        %s193 = smul.addr %s192, 4
        %s194 = scalar_lea.vmem %s1, %s193
        %p195 = pneg %p65
        %p196 = pneg %p62
        %p197 = pneg %p86
        %p198 = pneg %p83
        %p199 = pneg %p107
        %p200 = pneg %p104
        %p201 = pneg %p133
        %p202 = pneg %p130
        %s203 = sand.u32 %s120, 1
        %s204 = scalar_lea.sflag [#allocation3], %s203
        %s205 = sand.u32 %s120, 1
        %s206 = smul.addr %s205, 32
        %s207 = scalar_lea.vmem [#allocation2], %s206
        %s208 = smul.u32 8, %s18
        %p209 = scmp.lt.s32.totalorder %s208, 15
        %s210 = scalar_select %p209, %s208, 15
        %s211 = smul.addr %s210, 4
        %s212 = scalar_lea.vmem %s0, %s211
        %s213 = smul.u32 8, %s18
        %s214 = smul.u32 8, %s18
        %p215 = scmp.lt.s32.totalorder %s214, 15
        %s216 = scalar_select %p215, %s214, 15
        %s217 = smul.addr %s216, 4
        %s218 = scalar_lea.vmem %s1, %s217
        %s219 = smul.u32 8, %s18
        %s220 = smul.u32 8, %s18
        %v221 = vld [vmem:[%s212] sm:$0x77]
        %v222 = vld [vmem:[%s212 + $0x8] sm:$0x77]
        %v223 = vld [vmem:[%s212 + $0x10] sm:$0x77]
        %v224 = vld [vmem:[%s212 + $0x18] sm:$0x77]
        %v225 = vld [vmem:[%s218] sm:$0x77]
        %v226 = vld [vmem:[%s218 + $0x8] sm:$0x77]
        %v227 = vld [vmem:[%s218 + $0x10] sm:$0x77]
        %v228 = vld [vmem:[%s218 + $0x18] sm:$0x77]
        %v229 = vld [vmem:[%s2] sm:$0xff]
        %v230 = vld [vmem:[%s2 + $0x8] sm:$0xff]
        %v231 = vld [vmem:[%s2 + $0x10] sm:$0xff]
        %v232 = vld [vmem:[%s2 + $0x18] sm:$0xff]
        %v233 = vld [vmem:[%s3] sm:$0xff]
        %v234 = vld [vmem:[%s3 + $0x8] sm:$0xff]
        %v235 = vld [vmem:[%s3 + $0x10] sm:$0xff]
        %v236 = vld [vmem:[%s3 + $0x18] sm:$0xff]
        %238 = vset.pattern.permute.xlu0 0
        %239 = vperm.xlu0 %238, %v233
        %v240 = vpop.permute.xlu0 %239
        %243 = vset.pattern.permute.xlu0 0
        %244 = vperm.xlu0 %243, %v234
        %v245 = vpop.permute.xlu0 %244
        %248 = vset.pattern.permute.xlu0 0
        %249 = vperm.xlu0 %248, %v235
        %v250 = vpop.permute.xlu0 %249
        %253 = vset.pattern.permute.xlu0 0
        %254 = vperm.xlu0 %253, %v236
        %v255 = vpop.permute.xlu0 %254
        %261 = vst [vmem:[#allocation1] ss:$2 sm:$0xff] %v221
        %s262 = scalar_lea.vmem [#allocation1], 16
        %263 = vst [vmem:[%s262] ss:$2 sm:$0xff] %v222
        %s264 = scalar_lea.vmem [#allocation1], 32
        %265 = vst [vmem:[%s264] ss:$2 sm:$0xff] %v223
        %s266 = scalar_lea.vmem [#allocation1], 48
        %267 = vst [vmem:[%s266] ss:$2 sm:$0xff] %v224
        %v268 = vld.sshfl [vmem:[#allocation1] sm:$0xff pattern:$0x75316420]
        %v269 = vld.sshfl [vmem:[#allocation1 + $0x8] sm:$0xff pattern:$0x75316420]
        %v270 = vld.sshfl [vmem:[#allocation1 + $0x10] sm:$0xff pattern:$0x75316420]
        %v271 = vld.sshfl [vmem:[#allocation1 + $0x18] sm:$0xff pattern:$0x75316420]
        %v272 = vld.sshfl [vmem:[#allocation1 + $0x20] sm:$0xff pattern:$0x75316420]
        %v273 = vld.sshfl [vmem:[#allocation1 + $0x28] sm:$0xff pattern:$0x75316420]
        %v274 = vld.sshfl [vmem:[#allocation1 + $0x30] sm:$0xff pattern:$0x75316420]
        %v275 = vld.sshfl [vmem:[#allocation1 + $0x38] sm:$0xff pattern:$0x75316420]
        %vm276 = vcmask 23552
        %v278 = vsel %vm276, %v229, 0
        %v281 = vsel %vm276, %v230, 0
        %v284 = vsel %vm276, %v231, 0
        %v287 = vsel %vm276, %v232, 0
        %vm289 = vcmask 1042432
        %v290 = vsel %vm289, %v268, 0
        %v292 = vsel %vm289, %v269, 0
        %v294 = vsel %vm289, %v270, 0
        %v296 = vsel %vm289, %v271, 0
        %v298 = vsel %vm289, %v272, 0
        %v300 = vsel %vm289, %v273, 0
        %v302 = vsel %vm289, %v274, 0
        %v304 = vsel %vm289, %v275, 0
        %306 = vmatpush.msra.mxu0 0.0
        %307 = vmatpush.msra.mxu0 0.0
        %308 = vmatpush.msra.mxu0 0.0
        %309 = vmatpush.msra.mxu0 0.0
        %310 = vmatpush.msra.mxu0 0.0
        %311 = vmatpush.msra.mxu0 0.0
        %312 = vmatpush.msra.mxu0 0.0
        %313 = vmatpush.msra.mxu0 0.0
        %314 = vmatpush.msra.mxu0 0.0
        %315 = vmatpush.msra.mxu0 0.0
        %316 = vmatpush.msra.mxu0 0.0
        %317 = vmatpush.msra.mxu0 0.0
        %318 = vmatpush.msra.mxu0 0.0
        %319 = vmatpush.msra.mxu0 0.0
        %320 = vmatpush.msra.mxu0 0.0
        %321 = vmatpush.msra.mxu0 %v290
        %322 = vmatmul.f32.gmra.mxu0 %v278
        %v323 = vpop.f32.mrf.mxu0
        %v324 = vadd.f32 %v240, %v323
        %325 = vmatmul.f32.gmra.mxu0 %v281
        %v326 = vpop.f32.mrf.mxu0
        %v327 = vadd.f32 %v245, %v326
        %328 = vmatmul.f32.gmra.mxu0 %v284
        %v329 = vpop.f32.mrf.mxu0
        %v330 = vadd.f32 %v250, %v329
        %331 = vmatmul.f32.gmra.mxu0 %v287
        %v332 = vpop.f32.mrf.mxu0
        %v333 = vadd.f32 %v255, %v332
        %334 = vdwg.mxu0
        %335 = vmatpush.msra.mxu0 0.0
        %336 = vmatpush.msra.mxu0 0.0
        %337 = vmatpush.msra.mxu0 0.0
        %338 = vmatpush.msra.mxu0 0.0
        %339 = vmatpush.msra.mxu0 0.0
        %340 = vmatpush.msra.mxu0 0.0
        %341 = vmatpush.msra.mxu0 0.0
        %342 = vmatpush.msra.mxu0 0.0
        %343 = vmatpush.msra.mxu0 0.0
        %344 = vmatpush.msra.mxu0 0.0
        %345 = vmatpush.msra.mxu0 0.0
        %346 = vmatpush.msra.mxu0 0.0
        %347 = vmatpush.msra.mxu0 0.0
        %348 = vmatpush.msra.mxu0 0.0
        %349 = vmatpush.msra.mxu0 0.0
        %350 = vmatpush.msra.mxu0 %v292
        %351 = vmatmul.f32.gmra.mxu0 %v278
        %v352 = vpop.f32.mrf.mxu0
        %v353 = vadd.f32 %v240, %v352
        %354 = vmatmul.f32.gmra.mxu0 %v281
        %v355 = vpop.f32.mrf.mxu0
        %v356 = vadd.f32 %v245, %v355
        %357 = vmatmul.f32.gmra.mxu0 %v284
        %v358 = vpop.f32.mrf.mxu0
        %v359 = vadd.f32 %v250, %v358
        %360 = vmatmul.f32.gmra.mxu0 %v287
        %v361 = vpop.f32.mrf.mxu0
        %v362 = vadd.f32 %v255, %v361
        %363 = vdwg.mxu0
        %364 = vmatpush.msra.mxu0 0.0
        %365 = vmatpush.msra.mxu0 0.0
        %366 = vmatpush.msra.mxu0 0.0
        %367 = vmatpush.msra.mxu0 0.0
        %368 = vmatpush.msra.mxu0 0.0
        %369 = vmatpush.msra.mxu0 0.0
        %370 = vmatpush.msra.mxu0 0.0
        %371 = vmatpush.msra.mxu0 0.0
        %372 = vmatpush.msra.mxu0 0.0
        %373 = vmatpush.msra.mxu0 0.0
        %374 = vmatpush.msra.mxu0 0.0
        %375 = vmatpush.msra.mxu0 0.0
        %376 = vmatpush.msra.mxu0 0.0
        %377 = vmatpush.msra.mxu0 0.0
        %378 = vmatpush.msra.mxu0 0.0
        %379 = vmatpush.msra.mxu0 %v294
        %380 = vmatmul.f32.gmra.mxu0 %v278
        %v381 = vpop.f32.mrf.mxu0
        %v382 = vadd.f32 %v240, %v381
        %383 = vmatmul.f32.gmra.mxu0 %v281
        %v384 = vpop.f32.mrf.mxu0
        %v385 = vadd.f32 %v245, %v384
        %386 = vmatmul.f32.gmra.mxu0 %v284
        %v387 = vpop.f32.mrf.mxu0
        %v388 = vadd.f32 %v250, %v387
        %389 = vmatmul.f32.gmra.mxu0 %v287
        %v390 = vpop.f32.mrf.mxu0
        %v391 = vadd.f32 %v255, %v390
        %392 = vdwg.mxu0
        %393 = vmatpush.msra.mxu0 0.0
        %394 = vmatpush.msra.mxu0 0.0
        %395 = vmatpush.msra.mxu0 0.0
        %396 = vmatpush.msra.mxu0 0.0
        %397 = vmatpush.msra.mxu0 0.0
        %398 = vmatpush.msra.mxu0 0.0
        %399 = vmatpush.msra.mxu0 0.0
        %400 = vmatpush.msra.mxu0 0.0
        %401 = vmatpush.msra.mxu0 0.0
        %402 = vmatpush.msra.mxu0 0.0
        %403 = vmatpush.msra.mxu0 0.0
        %404 = vmatpush.msra.mxu0 0.0
        %405 = vmatpush.msra.mxu0 0.0
        %406 = vmatpush.msra.mxu0 0.0
        %407 = vmatpush.msra.mxu0 0.0
        %408 = vmatpush.msra.mxu0 %v296
        %409 = vmatmul.f32.gmra.mxu0 %v278
        %v410 = vpop.f32.mrf.mxu0
        %v411 = vadd.f32 %v240, %v410
        %412 = vmatmul.f32.gmra.mxu0 %v281
        %v413 = vpop.f32.mrf.mxu0
        %v414 = vadd.f32 %v245, %v413
        %415 = vmatmul.f32.gmra.mxu0 %v284
        %v416 = vpop.f32.mrf.mxu0
        %v417 = vadd.f32 %v250, %v416
        %418 = vmatmul.f32.gmra.mxu0 %v287
        %v419 = vpop.f32.mrf.mxu0
        %v420 = vadd.f32 %v255, %v419
        %421 = vdwg.mxu0
        %422 = vmatpush.msra.mxu0 0.0
        %423 = vmatpush.msra.mxu0 0.0
        %424 = vmatpush.msra.mxu0 0.0
        %425 = vmatpush.msra.mxu0 0.0
        %426 = vmatpush.msra.mxu0 0.0
        %427 = vmatpush.msra.mxu0 0.0
        %428 = vmatpush.msra.mxu0 0.0
        %429 = vmatpush.msra.mxu0 0.0
        %430 = vmatpush.msra.mxu0 0.0
        %431 = vmatpush.msra.mxu0 0.0
        %432 = vmatpush.msra.mxu0 0.0
        %433 = vmatpush.msra.mxu0 0.0
        %434 = vmatpush.msra.mxu0 0.0
        %435 = vmatpush.msra.mxu0 0.0
        %436 = vmatpush.msra.mxu0 0.0
        %437 = vmatpush.msra.mxu0 %v298
        %438 = vmatmul.f32.gmra.mxu0 %v278
        %v439 = vpop.f32.mrf.mxu0
        %v440 = vadd.f32 %v240, %v439
        %441 = vmatmul.f32.gmra.mxu0 %v281
        %v442 = vpop.f32.mrf.mxu0
        %v443 = vadd.f32 %v245, %v442
        %444 = vmatmul.f32.gmra.mxu0 %v284
        %v445 = vpop.f32.mrf.mxu0
        %v446 = vadd.f32 %v250, %v445
        %447 = vmatmul.f32.gmra.mxu0 %v287
        %v448 = vpop.f32.mrf.mxu0
        %v449 = vadd.f32 %v255, %v448
        %450 = vdwg.mxu0
        %451 = vmatpush.msra.mxu0 0.0
        %452 = vmatpush.msra.mxu0 0.0
        %453 = vmatpush.msra.mxu0 0.0
        %454 = vmatpush.msra.mxu0 0.0
        %455 = vmatpush.msra.mxu0 0.0
        %456 = vmatpush.msra.mxu0 0.0
        %457 = vmatpush.msra.mxu0 0.0
        %458 = vmatpush.msra.mxu0 0.0
        %459 = vmatpush.msra.mxu0 0.0
        %460 = vmatpush.msra.mxu0 0.0
        %461 = vmatpush.msra.mxu0 0.0
        %462 = vmatpush.msra.mxu0 0.0
        %463 = vmatpush.msra.mxu0 0.0
        %464 = vmatpush.msra.mxu0 0.0
        %465 = vmatpush.msra.mxu0 0.0
        %466 = vmatpush.msra.mxu0 %v300
        %467 = vmatmul.f32.gmra.mxu0 %v278
        %v468 = vpop.f32.mrf.mxu0
        %v469 = vadd.f32 %v240, %v468
        %470 = vmatmul.f32.gmra.mxu0 %v281
        %v471 = vpop.f32.mrf.mxu0
        %v472 = vadd.f32 %v245, %v471
        %473 = vmatmul.f32.gmra.mxu0 %v284
        %v474 = vpop.f32.mrf.mxu0
        %v475 = vadd.f32 %v250, %v474
        %476 = vmatmul.f32.gmra.mxu0 %v287
        %v477 = vpop.f32.mrf.mxu0
        %v478 = vadd.f32 %v255, %v477
        %479 = vdwg.mxu0
        %480 = vmatpush.msra.mxu0 0.0
        %481 = vmatpush.msra.mxu0 0.0
        %482 = vmatpush.msra.mxu0 0.0
        %483 = vmatpush.msra.mxu0 0.0
        %484 = vmatpush.msra.mxu0 0.0
        %485 = vmatpush.msra.mxu0 0.0
        %486 = vmatpush.msra.mxu0 0.0
        %487 = vmatpush.msra.mxu0 0.0
        %488 = vmatpush.msra.mxu0 0.0
        %489 = vmatpush.msra.mxu0 0.0
        %490 = vmatpush.msra.mxu0 0.0
        %491 = vmatpush.msra.mxu0 0.0
        %492 = vmatpush.msra.mxu0 0.0
        %493 = vmatpush.msra.mxu0 0.0
        %494 = vmatpush.msra.mxu0 0.0
        %495 = vmatpush.msra.mxu0 %v302
        %496 = vmatmul.f32.gmra.mxu0 %v278
        %v497 = vpop.f32.mrf.mxu0
        %v498 = vadd.f32 %v240, %v497
        %499 = vmatmul.f32.gmra.mxu0 %v281
        %v500 = vpop.f32.mrf.mxu0
        %v501 = vadd.f32 %v245, %v500
        %502 = vmatmul.f32.gmra.mxu0 %v284
        %v503 = vpop.f32.mrf.mxu0
        %v504 = vadd.f32 %v250, %v503
        %505 = vmatmul.f32.gmra.mxu0 %v287
        %v506 = vpop.f32.mrf.mxu0
        %v507 = vadd.f32 %v255, %v506
        %508 = vdwg.mxu0
        %509 = vmatpush.msra.mxu0 0.0
        %510 = vmatpush.msra.mxu0 0.0
        %511 = vmatpush.msra.mxu0 0.0
        %512 = vmatpush.msra.mxu0 0.0
        %513 = vmatpush.msra.mxu0 0.0
        %514 = vmatpush.msra.mxu0 0.0
        %515 = vmatpush.msra.mxu0 0.0
        %516 = vmatpush.msra.mxu0 0.0
        %517 = vmatpush.msra.mxu0 0.0
        %518 = vmatpush.msra.mxu0 0.0
        %519 = vmatpush.msra.mxu0 0.0
        %520 = vmatpush.msra.mxu0 0.0
        %521 = vmatpush.msra.mxu0 0.0
        %522 = vmatpush.msra.mxu0 0.0
        %523 = vmatpush.msra.mxu0 0.0
        %524 = vmatpush.msra.mxu0 %v304
        %525 = vmatmul.f32.gmra.mxu0 %v278
        %v526 = vpop.f32.mrf.mxu0
        %v527 = vadd.f32 %v240, %v526
        %528 = vmatmul.f32.gmra.mxu0 %v281
        %v529 = vpop.f32.mrf.mxu0
        %v530 = vadd.f32 %v245, %v529
        %531 = vmatmul.f32.gmra.mxu0 %v284
        %v532 = vpop.f32.mrf.mxu0
        %v533 = vadd.f32 %v250, %v532
        %534 = vmatmul.f32.gmra.mxu0 %v287
        %v535 = vpop.f32.mrf.mxu0
        %v536 = vadd.f32 %v255, %v535
        %537 = vdwg.mxu0
        %v538 = vmax.f32 %v324, 0.0
        %v539 = vmax.f32 %v353, 0.0
        %v540 = vmax.f32 %v382, 0.0
        %v541 = vmax.f32 %v411, 0.0
        %v542 = vmax.f32 %v440, 0.0
        %v543 = vmax.f32 %v469, 0.0
        %v544 = vmax.f32 %v498, 0.0
        %v545 = vmax.f32 %v527, 0.0
        %v546 = vmax.f32 %v327, 0.0
        %v547 = vmax.f32 %v356, 0.0
        %v548 = vmax.f32 %v385, 0.0
        %v549 = vmax.f32 %v414, 0.0
        %v550 = vmax.f32 %v443, 0.0
        %v551 = vmax.f32 %v472, 0.0
        %v552 = vmax.f32 %v501, 0.0
        %v553 = vmax.f32 %v530, 0.0
        %v554 = vmax.f32 %v330, 0.0
        %v555 = vmax.f32 %v359, 0.0
        %v556 = vmax.f32 %v388, 0.0
        %v557 = vmax.f32 %v417, 0.0
        %v558 = vmax.f32 %v446, 0.0
        %v559 = vmax.f32 %v475, 0.0
        %v560 = vmax.f32 %v504, 0.0
        %v561 = vmax.f32 %v533, 0.0
        %v562 = vmax.f32 %v333, 0.0
        %v563 = vmax.f32 %v362, 0.0
        %v564 = vmax.f32 %v391, 0.0
        %v565 = vmax.f32 %v420, 0.0
        %v566 = vmax.f32 %v449, 0.0
        %v567 = vmax.f32 %v478, 0.0
        %v568 = vmax.f32 %v507, 0.0
        %v569 = vmax.f32 %v536, 0.0
        %v570 = vld [vmem:[%s2 + $0x28] sm:$0xff]
        %v571 = vld [vmem:[%s2 + $0x30] sm:$0xff]
        %v572 = vld [vmem:[%s2 + $0x38] sm:$0xff]
        %v573 = vld [vmem:[%s2 + $0x40] sm:$0xff]
        %v574 = vld [vmem:[%s3] sm:$0xff]
        %v575 = vld [vmem:[%s3 + $0x8] sm:$0xff]
        %v576 = vld [vmem:[%s3 + $0x10] sm:$0xff]
        %v577 = vld [vmem:[%s3 + $0x18] sm:$0xff]
        %579 = vset.pattern.permute.xlu0 1
        %580 = vperm.xlu0 %579, %v574
        %v581 = vpop.permute.xlu0 %580
        %584 = vset.pattern.permute.xlu0 1
        %585 = vperm.xlu0 %584, %v575
        %v586 = vpop.permute.xlu0 %585
        %589 = vset.pattern.permute.xlu0 1
        %590 = vperm.xlu0 %589, %v576
        %v591 = vpop.permute.xlu0 %590
        %594 = vset.pattern.permute.xlu0 1
        %595 = vperm.xlu0 %594, %v577
        %v596 = vpop.permute.xlu0 %595
        %vm598 = vcmask 261120
        %v600 = vsel %vm598, %v570, 0
        %v603 = vsel %vm598, %v571, 0
        %v606 = vsel %vm598, %v572, 0
        %v609 = vsel %vm598, %v573, 0
        %611 = vmatpush.msra.mxu0 0.0
        %612 = vmatpush.msra.mxu0 0.0
        %613 = vmatpush.msra.mxu0 0.0
        %614 = vmatpush.msra.mxu0 0.0
        %615 = vmatpush.msra.mxu0 0.0
        %616 = vmatpush.msra.mxu0 0.0
        %617 = vmatpush.msra.mxu0 0.0
        %618 = vmatpush.msra.mxu0 0.0
        %619 = vmatpush.msra.mxu0 0.0
        %620 = vmatpush.msra.mxu0 0.0
        %621 = vmatpush.msra.mxu0 0.0
        %622 = vmatpush.msra.mxu0 0.0
        %623 = vmatpush.msra.mxu0 %v562
        %624 = vmatpush.msra.mxu0 %v554
        %625 = vmatpush.msra.mxu0 %v546
        %626 = vmatpush.msra.mxu0 %v538
        %627 = vmatmul.f32.gmra.mxu0 %v600
        %v628 = vpop.f32.mrf.mxu0
        %v629 = vadd.f32 %v581, %v628
        %630 = vmatmul.f32.gmra.mxu0 %v603
        %v631 = vpop.f32.mrf.mxu0
        %v632 = vadd.f32 %v586, %v631
        %633 = vmatmul.f32.gmra.mxu0 %v606
        %v634 = vpop.f32.mrf.mxu0
        %v635 = vadd.f32 %v591, %v634
        %636 = vmatmul.f32.gmra.mxu0 %v609
        %v637 = vpop.f32.mrf.mxu0
        %v638 = vadd.f32 %v596, %v637
        %639 = vdwg.mxu0
        %640 = vmatpush.msra.mxu0 0.0
        %641 = vmatpush.msra.mxu0 0.0
        %642 = vmatpush.msra.mxu0 0.0
        %643 = vmatpush.msra.mxu0 0.0
        %644 = vmatpush.msra.mxu0 0.0
        %645 = vmatpush.msra.mxu0 0.0
        %646 = vmatpush.msra.mxu0 0.0
        %647 = vmatpush.msra.mxu0 0.0
        %648 = vmatpush.msra.mxu0 0.0
        %649 = vmatpush.msra.mxu0 0.0
        %650 = vmatpush.msra.mxu0 0.0
        %651 = vmatpush.msra.mxu0 0.0
        %652 = vmatpush.msra.mxu0 %v563
        %653 = vmatpush.msra.mxu0 %v555
        %654 = vmatpush.msra.mxu0 %v547
        %655 = vmatpush.msra.mxu0 %v539
        %656 = vmatmul.f32.gmra.mxu0 %v600
        %v657 = vpop.f32.mrf.mxu0
        %v658 = vadd.f32 %v581, %v657
        %659 = vmatmul.f32.gmra.mxu0 %v603
        %v660 = vpop.f32.mrf.mxu0
        %v661 = vadd.f32 %v586, %v660
        %662 = vmatmul.f32.gmra.mxu0 %v606
        %v663 = vpop.f32.mrf.mxu0
        %v664 = vadd.f32 %v591, %v663
        %665 = vmatmul.f32.gmra.mxu0 %v609
        %v666 = vpop.f32.mrf.mxu0
        %v667 = vadd.f32 %v596, %v666
        %668 = vdwg.mxu0
        %669 = vmatpush.msra.mxu0 0.0
        %670 = vmatpush.msra.mxu0 0.0
        %671 = vmatpush.msra.mxu0 0.0
        %672 = vmatpush.msra.mxu0 0.0
        %673 = vmatpush.msra.mxu0 0.0
        %674 = vmatpush.msra.mxu0 0.0
        %675 = vmatpush.msra.mxu0 0.0
        %676 = vmatpush.msra.mxu0 0.0
        %677 = vmatpush.msra.mxu0 0.0
        %678 = vmatpush.msra.mxu0 0.0
        %679 = vmatpush.msra.mxu0 0.0
        %680 = vmatpush.msra.mxu0 0.0
        %681 = vmatpush.msra.mxu0 %v564
        %682 = vmatpush.msra.mxu0 %v556
        %683 = vmatpush.msra.mxu0 %v548
        %684 = vmatpush.msra.mxu0 %v540
        %685 = vmatmul.f32.gmra.mxu0 %v600
        %v686 = vpop.f32.mrf.mxu0
        %v687 = vadd.f32 %v581, %v686
        %688 = vmatmul.f32.gmra.mxu0 %v603
        %v689 = vpop.f32.mrf.mxu0
        %v690 = vadd.f32 %v586, %v689
        %691 = vmatmul.f32.gmra.mxu0 %v606
        %v692 = vpop.f32.mrf.mxu0
        %v693 = vadd.f32 %v591, %v692
        %694 = vmatmul.f32.gmra.mxu0 %v609
        %v695 = vpop.f32.mrf.mxu0
        %v696 = vadd.f32 %v596, %v695
        %697 = vdwg.mxu0
        %698 = vmatpush.msra.mxu0 0.0
        %699 = vmatpush.msra.mxu0 0.0
        %700 = vmatpush.msra.mxu0 0.0
        %701 = vmatpush.msra.mxu0 0.0
        %702 = vmatpush.msra.mxu0 0.0
        %703 = vmatpush.msra.mxu0 0.0
        %704 = vmatpush.msra.mxu0 0.0
        %705 = vmatpush.msra.mxu0 0.0
        %706 = vmatpush.msra.mxu0 0.0
        %707 = vmatpush.msra.mxu0 0.0
        %708 = vmatpush.msra.mxu0 0.0
        %709 = vmatpush.msra.mxu0 0.0
        %710 = vmatpush.msra.mxu0 %v565
        %711 = vmatpush.msra.mxu0 %v557
        %712 = vmatpush.msra.mxu0 %v549
        %713 = vmatpush.msra.mxu0 %v541
        %714 = vmatmul.f32.gmra.mxu0 %v600
        %v715 = vpop.f32.mrf.mxu0
        %v716 = vadd.f32 %v581, %v715
        %717 = vmatmul.f32.gmra.mxu0 %v603
        %v718 = vpop.f32.mrf.mxu0
        %v719 = vadd.f32 %v586, %v718
        %720 = vmatmul.f32.gmra.mxu0 %v606
        %v721 = vpop.f32.mrf.mxu0
        %v722 = vadd.f32 %v591, %v721
        %723 = vmatmul.f32.gmra.mxu0 %v609
        %v724 = vpop.f32.mrf.mxu0
        %v725 = vadd.f32 %v596, %v724
        %726 = vdwg.mxu0
        %727 = vmatpush.msra.mxu0 0.0
        %728 = vmatpush.msra.mxu0 0.0
        %729 = vmatpush.msra.mxu0 0.0
        %730 = vmatpush.msra.mxu0 0.0
        %731 = vmatpush.msra.mxu0 0.0
        %732 = vmatpush.msra.mxu0 0.0
        %733 = vmatpush.msra.mxu0 0.0
        %734 = vmatpush.msra.mxu0 0.0
        %735 = vmatpush.msra.mxu0 0.0
        %736 = vmatpush.msra.mxu0 0.0
        %737 = vmatpush.msra.mxu0 0.0
        %738 = vmatpush.msra.mxu0 0.0
        %739 = vmatpush.msra.mxu0 %v566
        %740 = vmatpush.msra.mxu0 %v558
        %741 = vmatpush.msra.mxu0 %v550
        %742 = vmatpush.msra.mxu0 %v542
        %743 = vmatmul.f32.gmra.mxu0 %v600
        %v744 = vpop.f32.mrf.mxu0
        %v745 = vadd.f32 %v581, %v744
        %746 = vmatmul.f32.gmra.mxu0 %v603
        %v747 = vpop.f32.mrf.mxu0
        %v748 = vadd.f32 %v586, %v747
        %749 = vmatmul.f32.gmra.mxu0 %v606
        %v750 = vpop.f32.mrf.mxu0
        %v751 = vadd.f32 %v591, %v750
        %752 = vmatmul.f32.gmra.mxu0 %v609
        %v753 = vpop.f32.mrf.mxu0
        %v754 = vadd.f32 %v596, %v753
        %755 = vdwg.mxu0
        %756 = vmatpush.msra.mxu0 0.0
        %757 = vmatpush.msra.mxu0 0.0
        %758 = vmatpush.msra.mxu0 0.0
        %759 = vmatpush.msra.mxu0 0.0
        %760 = vmatpush.msra.mxu0 0.0
        %761 = vmatpush.msra.mxu0 0.0
        %762 = vmatpush.msra.mxu0 0.0
        %763 = vmatpush.msra.mxu0 0.0
        %764 = vmatpush.msra.mxu0 0.0
        %765 = vmatpush.msra.mxu0 0.0
        %766 = vmatpush.msra.mxu0 0.0
        %767 = vmatpush.msra.mxu0 0.0
        %768 = vmatpush.msra.mxu0 %v567
        %769 = vmatpush.msra.mxu0 %v559
        %770 = vmatpush.msra.mxu0 %v551
        %771 = vmatpush.msra.mxu0 %v543
        %772 = vmatmul.f32.gmra.mxu0 %v600
        %v773 = vpop.f32.mrf.mxu0
        %v774 = vadd.f32 %v581, %v773
        %775 = vmatmul.f32.gmra.mxu0 %v603
        %v776 = vpop.f32.mrf.mxu0
        %v777 = vadd.f32 %v586, %v776
        %778 = vmatmul.f32.gmra.mxu0 %v606
        %v779 = vpop.f32.mrf.mxu0
        %v780 = vadd.f32 %v591, %v779
        %781 = vmatmul.f32.gmra.mxu0 %v609
        %v782 = vpop.f32.mrf.mxu0
        %v783 = vadd.f32 %v596, %v782
        %784 = vdwg.mxu0
        %785 = vmatpush.msra.mxu0 0.0
        %786 = vmatpush.msra.mxu0 0.0
        %787 = vmatpush.msra.mxu0 0.0
        %788 = vmatpush.msra.mxu0 0.0
        %789 = vmatpush.msra.mxu0 0.0
        %790 = vmatpush.msra.mxu0 0.0
        %791 = vmatpush.msra.mxu0 0.0
        %792 = vmatpush.msra.mxu0 0.0
        %793 = vmatpush.msra.mxu0 0.0
        %794 = vmatpush.msra.mxu0 0.0
        %795 = vmatpush.msra.mxu0 0.0
        %796 = vmatpush.msra.mxu0 0.0
        %797 = vmatpush.msra.mxu0 %v568
        %798 = vmatpush.msra.mxu0 %v560
        %799 = vmatpush.msra.mxu0 %v552
        %800 = vmatpush.msra.mxu0 %v544
        %801 = vmatmul.f32.gmra.mxu0 %v600
        %v802 = vpop.f32.mrf.mxu0
        %v803 = vadd.f32 %v581, %v802
        %804 = vmatmul.f32.gmra.mxu0 %v603
        %v805 = vpop.f32.mrf.mxu0
        %v806 = vadd.f32 %v586, %v805
        %807 = vmatmul.f32.gmra.mxu0 %v606
        %v808 = vpop.f32.mrf.mxu0
        %v809 = vadd.f32 %v591, %v808
        %810 = vmatmul.f32.gmra.mxu0 %v609
        %v811 = vpop.f32.mrf.mxu0
        %v812 = vadd.f32 %v596, %v811
        %813 = vdwg.mxu0
        %814 = vmatpush.msra.mxu0 0.0
        %815 = vmatpush.msra.mxu0 0.0
        %816 = vmatpush.msra.mxu0 0.0
        %817 = vmatpush.msra.mxu0 0.0
        %818 = vmatpush.msra.mxu0 0.0
        %819 = vmatpush.msra.mxu0 0.0
        %820 = vmatpush.msra.mxu0 0.0
        %821 = vmatpush.msra.mxu0 0.0
        %822 = vmatpush.msra.mxu0 0.0
        %823 = vmatpush.msra.mxu0 0.0
        %824 = vmatpush.msra.mxu0 0.0
        %825 = vmatpush.msra.mxu0 0.0
        %826 = vmatpush.msra.mxu0 %v569
        %827 = vmatpush.msra.mxu0 %v561
        %828 = vmatpush.msra.mxu0 %v553
        %829 = vmatpush.msra.mxu0 %v545
        %830 = vmatmul.f32.gmra.mxu0 %v600
        %v831 = vpop.f32.mrf.mxu0
        %v832 = vadd.f32 %v581, %v831
        %833 = vmatmul.f32.gmra.mxu0 %v603
        %v834 = vpop.f32.mrf.mxu0
        %v835 = vadd.f32 %v586, %v834
        %836 = vmatmul.f32.gmra.mxu0 %v606
        %v837 = vpop.f32.mrf.mxu0
        %v838 = vadd.f32 %v591, %v837
        %839 = vmatmul.f32.gmra.mxu0 %v609
        %v840 = vpop.f32.mrf.mxu0
        %v841 = vadd.f32 %v596, %v840
        %842 = vdwg.mxu0
        %v843 = vmax.f32 %v629, 0.0
        %v844 = vmax.f32 %v658, 0.0
        %v845 = vmax.f32 %v687, 0.0
        %v846 = vmax.f32 %v716, 0.0
        %v847 = vmax.f32 %v745, 0.0
        %v848 = vmax.f32 %v774, 0.0
        %v849 = vmax.f32 %v803, 0.0
        %v850 = vmax.f32 %v832, 0.0
        %v851 = vmax.f32 %v632, 0.0
        %v852 = vmax.f32 %v661, 0.0
        %v853 = vmax.f32 %v690, 0.0
        %v854 = vmax.f32 %v719, 0.0
        %v855 = vmax.f32 %v748, 0.0
        %v856 = vmax.f32 %v777, 0.0
        %v857 = vmax.f32 %v806, 0.0
        %v858 = vmax.f32 %v835, 0.0
        %v859 = vmax.f32 %v635, 0.0
        %v860 = vmax.f32 %v664, 0.0
        %v861 = vmax.f32 %v693, 0.0
        %v862 = vmax.f32 %v722, 0.0
        %v863 = vmax.f32 %v751, 0.0
        %v864 = vmax.f32 %v780, 0.0
        %v865 = vmax.f32 %v809, 0.0
        %v866 = vmax.f32 %v838, 0.0
        %v867 = vmax.f32 %v638, 0.0
        %v868 = vmax.f32 %v667, 0.0
        %v869 = vmax.f32 %v696, 0.0
        %v870 = vmax.f32 %v725, 0.0
        %v871 = vmax.f32 %v754, 0.0
        %v872 = vmax.f32 %v783, 0.0
        %v873 = vmax.f32 %v812, 0.0
        %v874 = vmax.f32 %v841, 0.0
        %v875 = vld [vmem:[%s2 + $0x50] sm:$0xff]
        %v876 = vld [vmem:[%s2 + $0x58] sm:$0xff]
        %v877 = vld [vmem:[%s2 + $0x60] sm:$0xff]
        %v878 = vld [vmem:[%s2 + $0x68] sm:$0xff]
        %879 = vset.pattern.permute.xlu0 2
        %880 = vperm.xlu0 %879, %v574
        %v881 = vpop.permute.xlu0 %880
        %883 = vset.pattern.permute.xlu0 2
        %884 = vperm.xlu0 %883, %v575
        %v885 = vpop.permute.xlu0 %884
        %887 = vset.pattern.permute.xlu0 2
        %888 = vperm.xlu0 %887, %v576
        %v889 = vpop.permute.xlu0 %888
        %891 = vset.pattern.permute.xlu0 2
        %892 = vperm.xlu0 %891, %v577
        %v893 = vpop.permute.xlu0 %892
        %v896 = vsel %vm598, %v875, 0
        %v899 = vsel %vm598, %v876, 0
        %v902 = vsel %vm598, %v877, 0
        %v905 = vsel %vm598, %v878, 0
        %907 = vmatpush.msra.mxu0 0.0
        %908 = vmatpush.msra.mxu0 0.0
        %909 = vmatpush.msra.mxu0 0.0
        %910 = vmatpush.msra.mxu0 0.0
        %911 = vmatpush.msra.mxu0 0.0
        %912 = vmatpush.msra.mxu0 0.0
        %913 = vmatpush.msra.mxu0 0.0
        %914 = vmatpush.msra.mxu0 0.0
        %915 = vmatpush.msra.mxu0 0.0
        %916 = vmatpush.msra.mxu0 0.0
        %917 = vmatpush.msra.mxu0 0.0
        %918 = vmatpush.msra.mxu0 0.0
        %919 = vmatpush.msra.mxu0 %v867
        %920 = vmatpush.msra.mxu0 %v859
        %921 = vmatpush.msra.mxu0 %v851
        %922 = vmatpush.msra.mxu0 %v843
        %923 = vmatmul.f32.gmra.mxu0 %v896
        %v924 = vpop.f32.mrf.mxu0
        %v925 = vadd.f32 %v881, %v924
        %926 = vmatmul.f32.gmra.mxu0 %v899
        %v927 = vpop.f32.mrf.mxu0
        %v928 = vadd.f32 %v885, %v927
        %929 = vmatmul.f32.gmra.mxu0 %v902
        %v930 = vpop.f32.mrf.mxu0
        %v931 = vadd.f32 %v889, %v930
        %932 = vmatmul.f32.gmra.mxu0 %v905
        %v933 = vpop.f32.mrf.mxu0
        %v934 = vadd.f32 %v893, %v933
        %935 = vdwg.mxu0
        %936 = vmatpush.msra.mxu0 0.0
        %937 = vmatpush.msra.mxu0 0.0
        %938 = vmatpush.msra.mxu0 0.0
        %939 = vmatpush.msra.mxu0 0.0
        %940 = vmatpush.msra.mxu0 0.0
        %941 = vmatpush.msra.mxu0 0.0
        %942 = vmatpush.msra.mxu0 0.0
        %943 = vmatpush.msra.mxu0 0.0
        %944 = vmatpush.msra.mxu0 0.0
        %945 = vmatpush.msra.mxu0 0.0
        %946 = vmatpush.msra.mxu0 0.0
        %947 = vmatpush.msra.mxu0 0.0
        %948 = vmatpush.msra.mxu0 %v868
        %949 = vmatpush.msra.mxu0 %v860
        %950 = vmatpush.msra.mxu0 %v852
        %951 = vmatpush.msra.mxu0 %v844
        %952 = vmatmul.f32.gmra.mxu0 %v896
        %v953 = vpop.f32.mrf.mxu0
        %v954 = vadd.f32 %v881, %v953
        %955 = vmatmul.f32.gmra.mxu0 %v899
        %v956 = vpop.f32.mrf.mxu0
        %v957 = vadd.f32 %v885, %v956
        %958 = vmatmul.f32.gmra.mxu0 %v902
        %v959 = vpop.f32.mrf.mxu0
        %v960 = vadd.f32 %v889, %v959
        %961 = vmatmul.f32.gmra.mxu0 %v905
        %v962 = vpop.f32.mrf.mxu0
        %v963 = vadd.f32 %v893, %v962
        %964 = vdwg.mxu0
        %965 = vmatpush.msra.mxu0 0.0
        %966 = vmatpush.msra.mxu0 0.0
        %967 = vmatpush.msra.mxu0 0.0
        %968 = vmatpush.msra.mxu0 0.0
        %969 = vmatpush.msra.mxu0 0.0
        %970 = vmatpush.msra.mxu0 0.0
        %971 = vmatpush.msra.mxu0 0.0
        %972 = vmatpush.msra.mxu0 0.0
        %973 = vmatpush.msra.mxu0 0.0
        %974 = vmatpush.msra.mxu0 0.0
        %975 = vmatpush.msra.mxu0 0.0
        %976 = vmatpush.msra.mxu0 0.0
        %977 = vmatpush.msra.mxu0 %v869
        %978 = vmatpush.msra.mxu0 %v861
        %979 = vmatpush.msra.mxu0 %v853
        %980 = vmatpush.msra.mxu0 %v845
        %981 = vmatmul.f32.gmra.mxu0 %v896
        %v982 = vpop.f32.mrf.mxu0
        %v983 = vadd.f32 %v881, %v982
        %984 = vmatmul.f32.gmra.mxu0 %v899
        %v985 = vpop.f32.mrf.mxu0
        %v986 = vadd.f32 %v885, %v985
        %987 = vmatmul.f32.gmra.mxu0 %v902
        %v988 = vpop.f32.mrf.mxu0
        %v989 = vadd.f32 %v889, %v988
        %990 = vmatmul.f32.gmra.mxu0 %v905
        %v991 = vpop.f32.mrf.mxu0
        %v992 = vadd.f32 %v893, %v991
        %993 = vdwg.mxu0
        %994 = vmatpush.msra.mxu0 0.0
        %995 = vmatpush.msra.mxu0 0.0
        %996 = vmatpush.msra.mxu0 0.0
        %997 = vmatpush.msra.mxu0 0.0
        %998 = vmatpush.msra.mxu0 0.0
        %999 = vmatpush.msra.mxu0 0.0
        %1000 = vmatpush.msra.mxu0 0.0
        %1001 = vmatpush.msra.mxu0 0.0
        %1002 = vmatpush.msra.mxu0 0.0
        %1003 = vmatpush.msra.mxu0 0.0
        %1004 = vmatpush.msra.mxu0 0.0
        %1005 = vmatpush.msra.mxu0 0.0
        %1006 = vmatpush.msra.mxu0 %v870
        %1007 = vmatpush.msra.mxu0 %v862
        %1008 = vmatpush.msra.mxu0 %v854
        %1009 = vmatpush.msra.mxu0 %v846
        %1010 = vmatmul.f32.gmra.mxu0 %v896
        %v1011 = vpop.f32.mrf.mxu0
        %v1012 = vadd.f32 %v881, %v1011
        %1013 = vmatmul.f32.gmra.mxu0 %v899
        %v1014 = vpop.f32.mrf.mxu0
        %v1015 = vadd.f32 %v885, %v1014
        %1016 = vmatmul.f32.gmra.mxu0 %v902
        %v1017 = vpop.f32.mrf.mxu0
        %v1018 = vadd.f32 %v889, %v1017
        %1019 = vmatmul.f32.gmra.mxu0 %v905
        %v1020 = vpop.f32.mrf.mxu0
        %v1021 = vadd.f32 %v893, %v1020
        %1022 = vdwg.mxu0
        %1023 = vmatpush.msra.mxu0 0.0
        %1024 = vmatpush.msra.mxu0 0.0
        %1025 = vmatpush.msra.mxu0 0.0
        %1026 = vmatpush.msra.mxu0 0.0
        %1027 = vmatpush.msra.mxu0 0.0
        %1028 = vmatpush.msra.mxu0 0.0
        %1029 = vmatpush.msra.mxu0 0.0
        %1030 = vmatpush.msra.mxu0 0.0
        %1031 = vmatpush.msra.mxu0 0.0
        %1032 = vmatpush.msra.mxu0 0.0
        %1033 = vmatpush.msra.mxu0 0.0
        %1034 = vmatpush.msra.mxu0 0.0
        %1035 = vmatpush.msra.mxu0 %v871
        %1036 = vmatpush.msra.mxu0 %v863
        %1037 = vmatpush.msra.mxu0 %v855
        %1038 = vmatpush.msra.mxu0 %v847
        %1039 = vmatmul.f32.gmra.mxu0 %v896
        %v1040 = vpop.f32.mrf.mxu0
        %v1041 = vadd.f32 %v881, %v1040
        %1042 = vmatmul.f32.gmra.mxu0 %v899
        %v1043 = vpop.f32.mrf.mxu0
        %v1044 = vadd.f32 %v885, %v1043
        %1045 = vmatmul.f32.gmra.mxu0 %v902
        %v1046 = vpop.f32.mrf.mxu0
        %v1047 = vadd.f32 %v889, %v1046
        %1048 = vmatmul.f32.gmra.mxu0 %v905
        %v1049 = vpop.f32.mrf.mxu0
        %v1050 = vadd.f32 %v893, %v1049
        %1051 = vdwg.mxu0
        %1052 = vmatpush.msra.mxu0 0.0
        %1053 = vmatpush.msra.mxu0 0.0
        %1054 = vmatpush.msra.mxu0 0.0
        %1055 = vmatpush.msra.mxu0 0.0
        %1056 = vmatpush.msra.mxu0 0.0
        %1057 = vmatpush.msra.mxu0 0.0
        %1058 = vmatpush.msra.mxu0 0.0
        %1059 = vmatpush.msra.mxu0 0.0
        %1060 = vmatpush.msra.mxu0 0.0
        %1061 = vmatpush.msra.mxu0 0.0
        %1062 = vmatpush.msra.mxu0 0.0
        %1063 = vmatpush.msra.mxu0 0.0
        %1064 = vmatpush.msra.mxu0 %v872
        %1065 = vmatpush.msra.mxu0 %v864
        %1066 = vmatpush.msra.mxu0 %v856
        %1067 = vmatpush.msra.mxu0 %v848
        %1068 = vmatmul.f32.gmra.mxu0 %v896
        %v1069 = vpop.f32.mrf.mxu0
        %v1070 = vadd.f32 %v881, %v1069
        %1071 = vmatmul.f32.gmra.mxu0 %v899
        %v1072 = vpop.f32.mrf.mxu0
        %v1073 = vadd.f32 %v885, %v1072
        %1074 = vmatmul.f32.gmra.mxu0 %v902
        %v1075 = vpop.f32.mrf.mxu0
        %v1076 = vadd.f32 %v889, %v1075
        %1077 = vmatmul.f32.gmra.mxu0 %v905
        %v1078 = vpop.f32.mrf.mxu0
        %v1079 = vadd.f32 %v893, %v1078
        %1080 = vdwg.mxu0
        %1081 = vmatpush.msra.mxu0 0.0
        %1082 = vmatpush.msra.mxu0 0.0
        %1083 = vmatpush.msra.mxu0 0.0
        %1084 = vmatpush.msra.mxu0 0.0
        %1085 = vmatpush.msra.mxu0 0.0
        %1086 = vmatpush.msra.mxu0 0.0
        %1087 = vmatpush.msra.mxu0 0.0
        %1088 = vmatpush.msra.mxu0 0.0
        %1089 = vmatpush.msra.mxu0 0.0
        %1090 = vmatpush.msra.mxu0 0.0
        %1091 = vmatpush.msra.mxu0 0.0
        %1092 = vmatpush.msra.mxu0 0.0
        %1093 = vmatpush.msra.mxu0 %v873
        %1094 = vmatpush.msra.mxu0 %v865
        %1095 = vmatpush.msra.mxu0 %v857
        %1096 = vmatpush.msra.mxu0 %v849
        %1097 = vmatmul.f32.gmra.mxu0 %v896
        %v1098 = vpop.f32.mrf.mxu0
        %v1099 = vadd.f32 %v881, %v1098
        %1100 = vmatmul.f32.gmra.mxu0 %v899
        %v1101 = vpop.f32.mrf.mxu0
        %v1102 = vadd.f32 %v885, %v1101
        %1103 = vmatmul.f32.gmra.mxu0 %v902
        %v1104 = vpop.f32.mrf.mxu0
        %v1105 = vadd.f32 %v889, %v1104
        %1106 = vmatmul.f32.gmra.mxu0 %v905
        %v1107 = vpop.f32.mrf.mxu0
        %v1108 = vadd.f32 %v893, %v1107
        %1109 = vdwg.mxu0
        %1110 = vmatpush.msra.mxu0 0.0
        %1111 = vmatpush.msra.mxu0 0.0
        %1112 = vmatpush.msra.mxu0 0.0
        %1113 = vmatpush.msra.mxu0 0.0
        %1114 = vmatpush.msra.mxu0 0.0
        %1115 = vmatpush.msra.mxu0 0.0
        %1116 = vmatpush.msra.mxu0 0.0
        %1117 = vmatpush.msra.mxu0 0.0
        %1118 = vmatpush.msra.mxu0 0.0
        %1119 = vmatpush.msra.mxu0 0.0
        %1120 = vmatpush.msra.mxu0 0.0
        %1121 = vmatpush.msra.mxu0 0.0
        %1122 = vmatpush.msra.mxu0 %v874
        %1123 = vmatpush.msra.mxu0 %v866
        %1124 = vmatpush.msra.mxu0 %v858
        %1125 = vmatpush.msra.mxu0 %v850
        %1126 = vmatmul.f32.gmra.mxu0 %v896
        %v1127 = vpop.f32.mrf.mxu0
        %v1128 = vadd.f32 %v881, %v1127
        %1129 = vmatmul.f32.gmra.mxu0 %v899
        %v1130 = vpop.f32.mrf.mxu0
        %v1131 = vadd.f32 %v885, %v1130
        %1132 = vmatmul.f32.gmra.mxu0 %v902
        %v1133 = vpop.f32.mrf.mxu0
        %v1134 = vadd.f32 %v889, %v1133
        %1135 = vmatmul.f32.gmra.mxu0 %v905
        %v1136 = vpop.f32.mrf.mxu0
        %v1137 = vadd.f32 %v893, %v1136
        %1138 = vdwg.mxu0
        %v1139 = vmax.f32 %v925, 0.0
        %v1140 = vmax.f32 %v954, 0.0
        %v1141 = vmax.f32 %v983, 0.0
        %v1142 = vmax.f32 %v1012, 0.0
        %v1143 = vmax.f32 %v1041, 0.0
        %v1144 = vmax.f32 %v1070, 0.0
        %v1145 = vmax.f32 %v1099, 0.0
        %v1146 = vmax.f32 %v1128, 0.0
        %v1147 = vmax.f32 %v928, 0.0
        %v1148 = vmax.f32 %v957, 0.0
        %v1149 = vmax.f32 %v986, 0.0
        %v1150 = vmax.f32 %v1015, 0.0
        %v1151 = vmax.f32 %v1044, 0.0
        %v1152 = vmax.f32 %v1073, 0.0
        %v1153 = vmax.f32 %v1102, 0.0
        %v1154 = vmax.f32 %v1131, 0.0
        %v1155 = vmax.f32 %v931, 0.0
        %v1156 = vmax.f32 %v960, 0.0
        %v1157 = vmax.f32 %v989, 0.0
        %v1158 = vmax.f32 %v1018, 0.0
        %v1159 = vmax.f32 %v1047, 0.0
        %v1160 = vmax.f32 %v1076, 0.0
        %v1161 = vmax.f32 %v1105, 0.0
        %v1162 = vmax.f32 %v1134, 0.0
        %v1163 = vmax.f32 %v934, 0.0
        %v1164 = vmax.f32 %v963, 0.0
        %v1165 = vmax.f32 %v992, 0.0
        %v1166 = vmax.f32 %v1021, 0.0
        %v1167 = vmax.f32 %v1050, 0.0
        %v1168 = vmax.f32 %v1079, 0.0
        %v1169 = vmax.f32 %v1108, 0.0
        %v1170 = vmax.f32 %v1137, 0.0
        %v1171 = vld [vmem:[%s2 + $0x78] sm:$0xff]
        %v1172 = vld [vmem:[%s2 + $0x80] sm:$0xff]
        %v1173 = vld [vmem:[%s2 + $0x88] sm:$0xff]
        %v1174 = vld [vmem:[%s2 + $0x90] sm:$0xff]
        %1175 = vset.pattern.permute.xlu0 3
        %1176 = vperm.xlu0 %1175, %v574
        %v1177 = vpop.permute.xlu0 %1176
        %1179 = vset.pattern.permute.xlu0 3
        %1180 = vperm.xlu0 %1179, %v575
        %v1181 = vpop.permute.xlu0 %1180
        %1183 = vset.pattern.permute.xlu0 3
        %1184 = vperm.xlu0 %1183, %v576
        %v1185 = vpop.permute.xlu0 %1184
        %1187 = vset.pattern.permute.xlu0 3
        %1188 = vperm.xlu0 %1187, %v577
        %v1189 = vpop.permute.xlu0 %1188
        %v1192 = vsel %vm598, %v1171, 0
        %v1195 = vsel %vm598, %v1172, 0
        %v1198 = vsel %vm598, %v1173, 0
        %v1201 = vsel %vm598, %v1174, 0
        %1203 = vmatpush.msra.mxu0 0.0
        %1204 = vmatpush.msra.mxu0 0.0
        %1205 = vmatpush.msra.mxu0 0.0
        %1206 = vmatpush.msra.mxu0 0.0
        %1207 = vmatpush.msra.mxu0 0.0
        %1208 = vmatpush.msra.mxu0 0.0
        %1209 = vmatpush.msra.mxu0 0.0
        %1210 = vmatpush.msra.mxu0 0.0
        %1211 = vmatpush.msra.mxu0 0.0
        %1212 = vmatpush.msra.mxu0 0.0
        %1213 = vmatpush.msra.mxu0 0.0
        %1214 = vmatpush.msra.mxu0 0.0
        %1215 = vmatpush.msra.mxu0 %v1163
        %1216 = vmatpush.msra.mxu0 %v1155
        %1217 = vmatpush.msra.mxu0 %v1147
        %1218 = vmatpush.msra.mxu0 %v1139
        %1219 = vmatmul.f32.gmra.mxu0 %v1192
        %v1220 = vpop.f32.mrf.mxu0
        %v1221 = vadd.f32 %v1177, %v1220
        %1222 = vmatmul.f32.gmra.mxu0 %v1195
        %v1223 = vpop.f32.mrf.mxu0
        %v1224 = vadd.f32 %v1181, %v1223
        %1225 = vmatmul.f32.gmra.mxu0 %v1198
        %v1226 = vpop.f32.mrf.mxu0
        %v1227 = vadd.f32 %v1185, %v1226
        %1228 = vmatmul.f32.gmra.mxu0 %v1201
        %v1229 = vpop.f32.mrf.mxu0
        %v1230 = vadd.f32 %v1189, %v1229
        %1231 = vdwg.mxu0
        %1232 = vmatpush.msra.mxu0 0.0
        %1233 = vmatpush.msra.mxu0 0.0
        %1234 = vmatpush.msra.mxu0 0.0
        %1235 = vmatpush.msra.mxu0 0.0
        %1236 = vmatpush.msra.mxu0 0.0
        %1237 = vmatpush.msra.mxu0 0.0
        %1238 = vmatpush.msra.mxu0 0.0
        %1239 = vmatpush.msra.mxu0 0.0
        %1240 = vmatpush.msra.mxu0 0.0
        %1241 = vmatpush.msra.mxu0 0.0
        %1242 = vmatpush.msra.mxu0 0.0
        %1243 = vmatpush.msra.mxu0 0.0
        %1244 = vmatpush.msra.mxu0 %v1164
        %1245 = vmatpush.msra.mxu0 %v1156
        %1246 = vmatpush.msra.mxu0 %v1148
        %1247 = vmatpush.msra.mxu0 %v1140
        %1248 = vmatmul.f32.gmra.mxu0 %v1192
        %v1249 = vpop.f32.mrf.mxu0
        %v1250 = vadd.f32 %v1177, %v1249
        %1251 = vmatmul.f32.gmra.mxu0 %v1195
        %v1252 = vpop.f32.mrf.mxu0
        %v1253 = vadd.f32 %v1181, %v1252
        %1254 = vmatmul.f32.gmra.mxu0 %v1198
        %v1255 = vpop.f32.mrf.mxu0
        %v1256 = vadd.f32 %v1185, %v1255
        %1257 = vmatmul.f32.gmra.mxu0 %v1201
        %v1258 = vpop.f32.mrf.mxu0
        %v1259 = vadd.f32 %v1189, %v1258
        %1260 = vdwg.mxu0
        %1261 = vmatpush.msra.mxu0 0.0
        %1262 = vmatpush.msra.mxu0 0.0
        %1263 = vmatpush.msra.mxu0 0.0
        %1264 = vmatpush.msra.mxu0 0.0
        %1265 = vmatpush.msra.mxu0 0.0
        %1266 = vmatpush.msra.mxu0 0.0
        %1267 = vmatpush.msra.mxu0 0.0
        %1268 = vmatpush.msra.mxu0 0.0
        %1269 = vmatpush.msra.mxu0 0.0
        %1270 = vmatpush.msra.mxu0 0.0
        %1271 = vmatpush.msra.mxu0 0.0
        %1272 = vmatpush.msra.mxu0 0.0
        %1273 = vmatpush.msra.mxu0 %v1165
        %1274 = vmatpush.msra.mxu0 %v1157
        %1275 = vmatpush.msra.mxu0 %v1149
        %1276 = vmatpush.msra.mxu0 %v1141
        %1277 = vmatmul.f32.gmra.mxu0 %v1192
        %v1278 = vpop.f32.mrf.mxu0
        %v1279 = vadd.f32 %v1177, %v1278
        %1280 = vmatmul.f32.gmra.mxu0 %v1195
        %v1281 = vpop.f32.mrf.mxu0
        %v1282 = vadd.f32 %v1181, %v1281
        %1283 = vmatmul.f32.gmra.mxu0 %v1198
        %v1284 = vpop.f32.mrf.mxu0
        %v1285 = vadd.f32 %v1185, %v1284
        %1286 = vmatmul.f32.gmra.mxu0 %v1201
        %v1287 = vpop.f32.mrf.mxu0
        %v1288 = vadd.f32 %v1189, %v1287
        %1289 = vdwg.mxu0
        %1290 = vmatpush.msra.mxu0 0.0
        %1291 = vmatpush.msra.mxu0 0.0
        %1292 = vmatpush.msra.mxu0 0.0
        %1293 = vmatpush.msra.mxu0 0.0
        %1294 = vmatpush.msra.mxu0 0.0
        %1295 = vmatpush.msra.mxu0 0.0
        %1296 = vmatpush.msra.mxu0 0.0
        %1297 = vmatpush.msra.mxu0 0.0
        %1298 = vmatpush.msra.mxu0 0.0
        %1299 = vmatpush.msra.mxu0 0.0
        %1300 = vmatpush.msra.mxu0 0.0
        %1301 = vmatpush.msra.mxu0 0.0
        %1302 = vmatpush.msra.mxu0 %v1166
        %1303 = vmatpush.msra.mxu0 %v1158
        %1304 = vmatpush.msra.mxu0 %v1150
        %1305 = vmatpush.msra.mxu0 %v1142
        %1306 = vmatmul.f32.gmra.mxu0 %v1192
        %v1307 = vpop.f32.mrf.mxu0
        %v1308 = vadd.f32 %v1177, %v1307
        %1309 = vmatmul.f32.gmra.mxu0 %v1195
        %v1310 = vpop.f32.mrf.mxu0
        %v1311 = vadd.f32 %v1181, %v1310
        %1312 = vmatmul.f32.gmra.mxu0 %v1198
        %v1313 = vpop.f32.mrf.mxu0
        %v1314 = vadd.f32 %v1185, %v1313
        %1315 = vmatmul.f32.gmra.mxu0 %v1201
        %v1316 = vpop.f32.mrf.mxu0
        %v1317 = vadd.f32 %v1189, %v1316
        %1318 = vdwg.mxu0
        %1319 = vmatpush.msra.mxu0 0.0
        %1320 = vmatpush.msra.mxu0 0.0
        %1321 = vmatpush.msra.mxu0 0.0
        %1322 = vmatpush.msra.mxu0 0.0
        %1323 = vmatpush.msra.mxu0 0.0
        %1324 = vmatpush.msra.mxu0 0.0
        %1325 = vmatpush.msra.mxu0 0.0
        %1326 = vmatpush.msra.mxu0 0.0
        %1327 = vmatpush.msra.mxu0 0.0
        %1328 = vmatpush.msra.mxu0 0.0
        %1329 = vmatpush.msra.mxu0 0.0
        %1330 = vmatpush.msra.mxu0 0.0
        %1331 = vmatpush.msra.mxu0 %v1167
        %1332 = vmatpush.msra.mxu0 %v1159
        %1333 = vmatpush.msra.mxu0 %v1151
        %1334 = vmatpush.msra.mxu0 %v1143
        %1335 = vmatmul.f32.gmra.mxu0 %v1192
        %v1336 = vpop.f32.mrf.mxu0
        %v1337 = vadd.f32 %v1177, %v1336
        %1338 = vmatmul.f32.gmra.mxu0 %v1195
        %v1339 = vpop.f32.mrf.mxu0
        %v1340 = vadd.f32 %v1181, %v1339
        %1341 = vmatmul.f32.gmra.mxu0 %v1198
        %v1342 = vpop.f32.mrf.mxu0
        %v1343 = vadd.f32 %v1185, %v1342
        %1344 = vmatmul.f32.gmra.mxu0 %v1201
        %v1345 = vpop.f32.mrf.mxu0
        %v1346 = vadd.f32 %v1189, %v1345
        %1347 = vdwg.mxu0
        %1348 = vmatpush.msra.mxu0 0.0
        %1349 = vmatpush.msra.mxu0 0.0
        %1350 = vmatpush.msra.mxu0 0.0
        %1351 = vmatpush.msra.mxu0 0.0
        %1352 = vmatpush.msra.mxu0 0.0
        %1353 = vmatpush.msra.mxu0 0.0
        %1354 = vmatpush.msra.mxu0 0.0
        %1355 = vmatpush.msra.mxu0 0.0
        %1356 = vmatpush.msra.mxu0 0.0
        %1357 = vmatpush.msra.mxu0 0.0
        %1358 = vmatpush.msra.mxu0 0.0
        %1359 = vmatpush.msra.mxu0 0.0
        %1360 = vmatpush.msra.mxu0 %v1168
        %1361 = vmatpush.msra.mxu0 %v1160
        %1362 = vmatpush.msra.mxu0 %v1152
        %1363 = vmatpush.msra.mxu0 %v1144
        %1364 = vmatmul.f32.gmra.mxu0 %v1192
        %v1365 = vpop.f32.mrf.mxu0
        %v1366 = vadd.f32 %v1177, %v1365
        %1367 = vmatmul.f32.gmra.mxu0 %v1195
        %v1368 = vpop.f32.mrf.mxu0
        %v1369 = vadd.f32 %v1181, %v1368
        %1370 = vmatmul.f32.gmra.mxu0 %v1198
        %v1371 = vpop.f32.mrf.mxu0
        %v1372 = vadd.f32 %v1185, %v1371
        %1373 = vmatmul.f32.gmra.mxu0 %v1201
        %v1374 = vpop.f32.mrf.mxu0
        %v1375 = vadd.f32 %v1189, %v1374
        %1376 = vdwg.mxu0
        %1377 = vmatpush.msra.mxu0 0.0
        %1378 = vmatpush.msra.mxu0 0.0
        %1379 = vmatpush.msra.mxu0 0.0
        %1380 = vmatpush.msra.mxu0 0.0
        %1381 = vmatpush.msra.mxu0 0.0
        %1382 = vmatpush.msra.mxu0 0.0
        %1383 = vmatpush.msra.mxu0 0.0
        %1384 = vmatpush.msra.mxu0 0.0
        %1385 = vmatpush.msra.mxu0 0.0
        %1386 = vmatpush.msra.mxu0 0.0
        %1387 = vmatpush.msra.mxu0 0.0
        %1388 = vmatpush.msra.mxu0 0.0
        %1389 = vmatpush.msra.mxu0 %v1169
        %1390 = vmatpush.msra.mxu0 %v1161
        %1391 = vmatpush.msra.mxu0 %v1153
        %1392 = vmatpush.msra.mxu0 %v1145
        %1393 = vmatmul.f32.gmra.mxu0 %v1192
        %v1394 = vpop.f32.mrf.mxu0
        %v1395 = vadd.f32 %v1177, %v1394
        %1396 = vmatmul.f32.gmra.mxu0 %v1195
        %v1397 = vpop.f32.mrf.mxu0
        %v1398 = vadd.f32 %v1181, %v1397
        %1399 = vmatmul.f32.gmra.mxu0 %v1198
        %v1400 = vpop.f32.mrf.mxu0
        %v1401 = vadd.f32 %v1185, %v1400
        %1402 = vmatmul.f32.gmra.mxu0 %v1201
        %v1403 = vpop.f32.mrf.mxu0
        %v1404 = vadd.f32 %v1189, %v1403
        %1405 = vdwg.mxu0
        %1406 = vmatpush.msra.mxu0 0.0
        %1407 = vmatpush.msra.mxu0 0.0
        %1408 = vmatpush.msra.mxu0 0.0
        %1409 = vmatpush.msra.mxu0 0.0
        %1410 = vmatpush.msra.mxu0 0.0
        %1411 = vmatpush.msra.mxu0 0.0
        %1412 = vmatpush.msra.mxu0 0.0
        %1413 = vmatpush.msra.mxu0 0.0
        %1414 = vmatpush.msra.mxu0 0.0
        %1415 = vmatpush.msra.mxu0 0.0
        %1416 = vmatpush.msra.mxu0 0.0
        %1417 = vmatpush.msra.mxu0 0.0
        %1418 = vmatpush.msra.mxu0 %v1170
        %1419 = vmatpush.msra.mxu0 %v1162
        %1420 = vmatpush.msra.mxu0 %v1154
        %1421 = vmatpush.msra.mxu0 %v1146
        %1422 = vmatmul.f32.gmra.mxu0 %v1192
        %v1423 = vpop.f32.mrf.mxu0
        %v1424 = vadd.f32 %v1177, %v1423
        %1425 = vmatmul.f32.gmra.mxu0 %v1195
        %v1426 = vpop.f32.mrf.mxu0
        %v1427 = vadd.f32 %v1181, %v1426
        %1428 = vmatmul.f32.gmra.mxu0 %v1198
        %v1429 = vpop.f32.mrf.mxu0
        %v1430 = vadd.f32 %v1185, %v1429
        %1431 = vmatmul.f32.gmra.mxu0 %v1201
        %v1432 = vpop.f32.mrf.mxu0
        %v1433 = vadd.f32 %v1189, %v1432
        %1434 = vdwg.mxu0
        %v1435 = vmax.f32 %v1221, 0.0
        %v1436 = vmax.f32 %v1250, 0.0
        %v1437 = vmax.f32 %v1279, 0.0
        %v1438 = vmax.f32 %v1308, 0.0
        %v1439 = vmax.f32 %v1337, 0.0
        %v1440 = vmax.f32 %v1366, 0.0
        %v1441 = vmax.f32 %v1395, 0.0
        %v1442 = vmax.f32 %v1424, 0.0
        %v1443 = vmax.f32 %v1224, 0.0
        %v1444 = vmax.f32 %v1253, 0.0
        %v1445 = vmax.f32 %v1282, 0.0
        %v1446 = vmax.f32 %v1311, 0.0
        %v1447 = vmax.f32 %v1340, 0.0
        %v1448 = vmax.f32 %v1369, 0.0
        %v1449 = vmax.f32 %v1398, 0.0
        %v1450 = vmax.f32 %v1427, 0.0
        %v1451 = vmax.f32 %v1227, 0.0
        %v1452 = vmax.f32 %v1256, 0.0
        %v1453 = vmax.f32 %v1285, 0.0
        %v1454 = vmax.f32 %v1314, 0.0
        %v1455 = vmax.f32 %v1343, 0.0
        %v1456 = vmax.f32 %v1372, 0.0
        %v1457 = vmax.f32 %v1401, 0.0
        %v1458 = vmax.f32 %v1430, 0.0
        %v1459 = vmax.f32 %v1230, 0.0
        %v1460 = vmax.f32 %v1259, 0.0
        %v1461 = vmax.f32 %v1288, 0.0
        %v1462 = vmax.f32 %v1317, 0.0
        %v1463 = vmax.f32 %v1346, 0.0
        %v1464 = vmax.f32 %v1375, 0.0
        %v1465 = vmax.f32 %v1404, 0.0
        %v1466 = vmax.f32 %v1433, 0.0
        %v1467 = vld [vmem:[%s2 + $0xa0] sm:$0xff]
        %v1468 = vld [vmem:[%s2 + $0xa8] sm:$0xff]
        %v1469 = vld [vmem:[%s2 + $0xb0] sm:$0xff]
        %v1470 = vld [vmem:[%s2 + $0xb8] sm:$0xff]
        %1471 = vset.pattern.permute.xlu0 4
        %1472 = vperm.xlu0 %1471, %v574
        %v1473 = vpop.permute.xlu0 %1472
        %1475 = vset.pattern.permute.xlu0 4
        %1476 = vperm.xlu0 %1475, %v575
        %v1477 = vpop.permute.xlu0 %1476
        %1479 = vset.pattern.permute.xlu0 4
        %1480 = vperm.xlu0 %1479, %v576
        %v1481 = vpop.permute.xlu0 %1480
        %1483 = vset.pattern.permute.xlu0 4
        %1484 = vperm.xlu0 %1483, %v577
        %v1485 = vpop.permute.xlu0 %1484
        %v1488 = vsel %vm598, %v1467, 0
        %v1491 = vsel %vm598, %v1468, 0
        %v1494 = vsel %vm598, %v1469, 0
        %v1497 = vsel %vm598, %v1470, 0
        %1499 = vmatpush.msra.mxu0 0.0
        %1500 = vmatpush.msra.mxu0 0.0
        %1501 = vmatpush.msra.mxu0 0.0
        %1502 = vmatpush.msra.mxu0 0.0
        %1503 = vmatpush.msra.mxu0 0.0
        %1504 = vmatpush.msra.mxu0 0.0
        %1505 = vmatpush.msra.mxu0 0.0
        %1506 = vmatpush.msra.mxu0 0.0
        %1507 = vmatpush.msra.mxu0 0.0
        %1508 = vmatpush.msra.mxu0 0.0
        %1509 = vmatpush.msra.mxu0 0.0
        %1510 = vmatpush.msra.mxu0 0.0
        %1511 = vmatpush.msra.mxu0 %v1459
        %1512 = vmatpush.msra.mxu0 %v1451
        %1513 = vmatpush.msra.mxu0 %v1443
        %1514 = vmatpush.msra.mxu0 %v1435
        %1515 = vmatmul.f32.gmra.mxu0 %v1488
        %v1516 = vpop.f32.mrf.mxu0
        %v1517 = vadd.f32 %v1473, %v1516
        %1518 = vmatmul.f32.gmra.mxu0 %v1491
        %v1519 = vpop.f32.mrf.mxu0
        %v1520 = vadd.f32 %v1477, %v1519
        %1521 = vmatmul.f32.gmra.mxu0 %v1494
        %v1522 = vpop.f32.mrf.mxu0
        %v1523 = vadd.f32 %v1481, %v1522
        %1524 = vmatmul.f32.gmra.mxu0 %v1497
        %v1525 = vpop.f32.mrf.mxu0
        %v1526 = vadd.f32 %v1485, %v1525
        %1527 = vdwg.mxu0
        %1528 = vmatpush.msra.mxu0 0.0
        %1529 = vmatpush.msra.mxu0 0.0
        %1530 = vmatpush.msra.mxu0 0.0
        %1531 = vmatpush.msra.mxu0 0.0
        %1532 = vmatpush.msra.mxu0 0.0
        %1533 = vmatpush.msra.mxu0 0.0
        %1534 = vmatpush.msra.mxu0 0.0
        %1535 = vmatpush.msra.mxu0 0.0
        %1536 = vmatpush.msra.mxu0 0.0
        %1537 = vmatpush.msra.mxu0 0.0
        %1538 = vmatpush.msra.mxu0 0.0
        %1539 = vmatpush.msra.mxu0 0.0
        %1540 = vmatpush.msra.mxu0 %v1460
        %1541 = vmatpush.msra.mxu0 %v1452
        %1542 = vmatpush.msra.mxu0 %v1444
        %1543 = vmatpush.msra.mxu0 %v1436
        %1544 = vmatmul.f32.gmra.mxu0 %v1488
        %v1545 = vpop.f32.mrf.mxu0
        %v1546 = vadd.f32 %v1473, %v1545
        %1547 = vmatmul.f32.gmra.mxu0 %v1491
        %v1548 = vpop.f32.mrf.mxu0
        %v1549 = vadd.f32 %v1477, %v1548
        %1550 = vmatmul.f32.gmra.mxu0 %v1494
        %v1551 = vpop.f32.mrf.mxu0
        %v1552 = vadd.f32 %v1481, %v1551
        %1553 = vmatmul.f32.gmra.mxu0 %v1497
        %v1554 = vpop.f32.mrf.mxu0
        %v1555 = vadd.f32 %v1485, %v1554
        %1556 = vdwg.mxu0
        %1557 = vmatpush.msra.mxu0 0.0
        %1558 = vmatpush.msra.mxu0 0.0
        %1559 = vmatpush.msra.mxu0 0.0
        %1560 = vmatpush.msra.mxu0 0.0
        %1561 = vmatpush.msra.mxu0 0.0
        %1562 = vmatpush.msra.mxu0 0.0
        %1563 = vmatpush.msra.mxu0 0.0
        %1564 = vmatpush.msra.mxu0 0.0
        %1565 = vmatpush.msra.mxu0 0.0
        %1566 = vmatpush.msra.mxu0 0.0
        %1567 = vmatpush.msra.mxu0 0.0
        %1568 = vmatpush.msra.mxu0 0.0
        %1569 = vmatpush.msra.mxu0 %v1461
        %1570 = vmatpush.msra.mxu0 %v1453
        %1571 = vmatpush.msra.mxu0 %v1445
        %1572 = vmatpush.msra.mxu0 %v1437
        %1573 = vmatmul.f32.gmra.mxu0 %v1488
        %v1574 = vpop.f32.mrf.mxu0
        %v1575 = vadd.f32 %v1473, %v1574
        %1576 = vmatmul.f32.gmra.mxu0 %v1491
        %v1577 = vpop.f32.mrf.mxu0
        %v1578 = vadd.f32 %v1477, %v1577
        %1579 = vmatmul.f32.gmra.mxu0 %v1494
        %v1580 = vpop.f32.mrf.mxu0
        %v1581 = vadd.f32 %v1481, %v1580
        %1582 = vmatmul.f32.gmra.mxu0 %v1497
        %v1583 = vpop.f32.mrf.mxu0
        %v1584 = vadd.f32 %v1485, %v1583
        %1585 = vdwg.mxu0
        %1586 = vmatpush.msra.mxu0 0.0
        %1587 = vmatpush.msra.mxu0 0.0
        %1588 = vmatpush.msra.mxu0 0.0
        %1589 = vmatpush.msra.mxu0 0.0
        %1590 = vmatpush.msra.mxu0 0.0
        %1591 = vmatpush.msra.mxu0 0.0
        %1592 = vmatpush.msra.mxu0 0.0
        %1593 = vmatpush.msra.mxu0 0.0
        %1594 = vmatpush.msra.mxu0 0.0
        %1595 = vmatpush.msra.mxu0 0.0
        %1596 = vmatpush.msra.mxu0 0.0
        %1597 = vmatpush.msra.mxu0 0.0
        %1598 = vmatpush.msra.mxu0 %v1462
        %1599 = vmatpush.msra.mxu0 %v1454
        %1600 = vmatpush.msra.mxu0 %v1446
        %1601 = vmatpush.msra.mxu0 %v1438
        %1602 = vmatmul.f32.gmra.mxu0 %v1488
        %v1603 = vpop.f32.mrf.mxu0
        %v1604 = vadd.f32 %v1473, %v1603
        %1605 = vmatmul.f32.gmra.mxu0 %v1491
        %v1606 = vpop.f32.mrf.mxu0
        %v1607 = vadd.f32 %v1477, %v1606
        %1608 = vmatmul.f32.gmra.mxu0 %v1494
        %v1609 = vpop.f32.mrf.mxu0
        %v1610 = vadd.f32 %v1481, %v1609
        %1611 = vmatmul.f32.gmra.mxu0 %v1497
        %v1612 = vpop.f32.mrf.mxu0
        %v1613 = vadd.f32 %v1485, %v1612
        %1614 = vdwg.mxu0
        %1615 = vmatpush.msra.mxu0 0.0
        %1616 = vmatpush.msra.mxu0 0.0
        %1617 = vmatpush.msra.mxu0 0.0
        %1618 = vmatpush.msra.mxu0 0.0
        %1619 = vmatpush.msra.mxu0 0.0
        %1620 = vmatpush.msra.mxu0 0.0
        %1621 = vmatpush.msra.mxu0 0.0
        %1622 = vmatpush.msra.mxu0 0.0
        %1623 = vmatpush.msra.mxu0 0.0
        %1624 = vmatpush.msra.mxu0 0.0
        %1625 = vmatpush.msra.mxu0 0.0
        %1626 = vmatpush.msra.mxu0 0.0
        %1627 = vmatpush.msra.mxu0 %v1463
        %1628 = vmatpush.msra.mxu0 %v1455
        %1629 = vmatpush.msra.mxu0 %v1447
        %1630 = vmatpush.msra.mxu0 %v1439
        %1631 = vmatmul.f32.gmra.mxu0 %v1488
        %v1632 = vpop.f32.mrf.mxu0
        %v1633 = vadd.f32 %v1473, %v1632
        %1634 = vmatmul.f32.gmra.mxu0 %v1491
        %v1635 = vpop.f32.mrf.mxu0
        %v1636 = vadd.f32 %v1477, %v1635
        %1637 = vmatmul.f32.gmra.mxu0 %v1494
        %v1638 = vpop.f32.mrf.mxu0
        %v1639 = vadd.f32 %v1481, %v1638
        %1640 = vmatmul.f32.gmra.mxu0 %v1497
        %v1641 = vpop.f32.mrf.mxu0
        %v1642 = vadd.f32 %v1485, %v1641
        %1643 = vdwg.mxu0
        %1644 = vmatpush.msra.mxu0 0.0
        %1645 = vmatpush.msra.mxu0 0.0
        %1646 = vmatpush.msra.mxu0 0.0
        %1647 = vmatpush.msra.mxu0 0.0
        %1648 = vmatpush.msra.mxu0 0.0
        %1649 = vmatpush.msra.mxu0 0.0
        %1650 = vmatpush.msra.mxu0 0.0
        %1651 = vmatpush.msra.mxu0 0.0
        %1652 = vmatpush.msra.mxu0 0.0
        %1653 = vmatpush.msra.mxu0 0.0
        %1654 = vmatpush.msra.mxu0 0.0
        %1655 = vmatpush.msra.mxu0 0.0
        %1656 = vmatpush.msra.mxu0 %v1464
        %1657 = vmatpush.msra.mxu0 %v1456
        %1658 = vmatpush.msra.mxu0 %v1448
        %1659 = vmatpush.msra.mxu0 %v1440
        %1660 = vmatmul.f32.gmra.mxu0 %v1488
        %v1661 = vpop.f32.mrf.mxu0
        %v1662 = vadd.f32 %v1473, %v1661
        %1663 = vmatmul.f32.gmra.mxu0 %v1491
        %v1664 = vpop.f32.mrf.mxu0
        %v1665 = vadd.f32 %v1477, %v1664
        %1666 = vmatmul.f32.gmra.mxu0 %v1494
        %v1667 = vpop.f32.mrf.mxu0
        %v1668 = vadd.f32 %v1481, %v1667
        %1669 = vmatmul.f32.gmra.mxu0 %v1497
        %v1670 = vpop.f32.mrf.mxu0
        %v1671 = vadd.f32 %v1485, %v1670
        %1672 = vdwg.mxu0
        %1673 = vmatpush.msra.mxu0 0.0
        %1674 = vmatpush.msra.mxu0 0.0
        %1675 = vmatpush.msra.mxu0 0.0
        %1676 = vmatpush.msra.mxu0 0.0
        %1677 = vmatpush.msra.mxu0 0.0
        %1678 = vmatpush.msra.mxu0 0.0
        %1679 = vmatpush.msra.mxu0 0.0
        %1680 = vmatpush.msra.mxu0 0.0
        %1681 = vmatpush.msra.mxu0 0.0
        %1682 = vmatpush.msra.mxu0 0.0
        %1683 = vmatpush.msra.mxu0 0.0
        %1684 = vmatpush.msra.mxu0 0.0
        %1685 = vmatpush.msra.mxu0 %v1465
        %1686 = vmatpush.msra.mxu0 %v1457
        %1687 = vmatpush.msra.mxu0 %v1449
        %1688 = vmatpush.msra.mxu0 %v1441
        %1689 = vmatmul.f32.gmra.mxu0 %v1488
        %v1690 = vpop.f32.mrf.mxu0
        %v1691 = vadd.f32 %v1473, %v1690
        %1692 = vmatmul.f32.gmra.mxu0 %v1491
        %v1693 = vpop.f32.mrf.mxu0
        %v1694 = vadd.f32 %v1477, %v1693
        %1695 = vmatmul.f32.gmra.mxu0 %v1494
        %v1696 = vpop.f32.mrf.mxu0
        %v1697 = vadd.f32 %v1481, %v1696
        %1698 = vmatmul.f32.gmra.mxu0 %v1497
        %v1699 = vpop.f32.mrf.mxu0
        %v1700 = vadd.f32 %v1485, %v1699
        %1701 = vdwg.mxu0
        %1702 = vmatpush.msra.mxu0 0.0
        %1703 = vmatpush.msra.mxu0 0.0
        %1704 = vmatpush.msra.mxu0 0.0
        %1705 = vmatpush.msra.mxu0 0.0
        %1706 = vmatpush.msra.mxu0 0.0
        %1707 = vmatpush.msra.mxu0 0.0
        %1708 = vmatpush.msra.mxu0 0.0
        %1709 = vmatpush.msra.mxu0 0.0
        %1710 = vmatpush.msra.mxu0 0.0
        %1711 = vmatpush.msra.mxu0 0.0
        %1712 = vmatpush.msra.mxu0 0.0
        %1713 = vmatpush.msra.mxu0 0.0
        %1714 = vmatpush.msra.mxu0 %v1466
        %1715 = vmatpush.msra.mxu0 %v1458
        %1716 = vmatpush.msra.mxu0 %v1450
        %1717 = vmatpush.msra.mxu0 %v1442
        %1718 = vmatmul.f32.gmra.mxu0 %v1488
        %v1719 = vpop.f32.mrf.mxu0
        %v1720 = vadd.f32 %v1473, %v1719
        %1721 = vmatmul.f32.gmra.mxu0 %v1491
        %v1722 = vpop.f32.mrf.mxu0
        %v1723 = vadd.f32 %v1477, %v1722
        %1724 = vmatmul.f32.gmra.mxu0 %v1494
        %v1725 = vpop.f32.mrf.mxu0
        %v1726 = vadd.f32 %v1481, %v1725
        %1727 = vmatmul.f32.gmra.mxu0 %v1497
        %v1728 = vpop.f32.mrf.mxu0
        %v1729 = vadd.f32 %v1485, %v1728
        %1730 = vdwg.mxu0
        %v1731 = vmax.f32 %v1517, 0.0
        %v1732 = vmax.f32 %v1546, 0.0
        %v1733 = vmax.f32 %v1575, 0.0
        %v1734 = vmax.f32 %v1604, 0.0
        %v1735 = vmax.f32 %v1633, 0.0
        %v1736 = vmax.f32 %v1662, 0.0
        %v1737 = vmax.f32 %v1691, 0.0
        %v1738 = vmax.f32 %v1720, 0.0
        %v1739 = vmax.f32 %v1520, 0.0
        %v1740 = vmax.f32 %v1549, 0.0
        %v1741 = vmax.f32 %v1578, 0.0
        %v1742 = vmax.f32 %v1607, 0.0
        %v1743 = vmax.f32 %v1636, 0.0
        %v1744 = vmax.f32 %v1665, 0.0
        %v1745 = vmax.f32 %v1694, 0.0
        %v1746 = vmax.f32 %v1723, 0.0
        %v1747 = vmax.f32 %v1523, 0.0
        %v1748 = vmax.f32 %v1552, 0.0
        %v1749 = vmax.f32 %v1581, 0.0
        %v1750 = vmax.f32 %v1610, 0.0
        %v1751 = vmax.f32 %v1639, 0.0
        %v1752 = vmax.f32 %v1668, 0.0
        %v1753 = vmax.f32 %v1697, 0.0
        %v1754 = vmax.f32 %v1726, 0.0
        %v1755 = vmax.f32 %v1526, 0.0
        %v1756 = vmax.f32 %v1555, 0.0
        %v1757 = vmax.f32 %v1584, 0.0
        %v1758 = vmax.f32 %v1613, 0.0
        %v1759 = vmax.f32 %v1642, 0.0
        %v1760 = vmax.f32 %v1671, 0.0
        %v1761 = vmax.f32 %v1700, 0.0
        %v1762 = vmax.f32 %v1729, 0.0
        %v1763 = vld [vmem:[%s2 + $0xc8] sm:$0xff]
        %v1764 = vld [vmem:[%s2 + $0xd0] sm:$0xff]
        %v1765 = vld [vmem:[%s2 + $0xd8] sm:$0xff]
        %v1766 = vld [vmem:[%s2 + $0xe0] sm:$0xff]
        %v1767 = vld [vmem:[%s2 + $0xf0] sm:$0xff]
        %v1768 = vld [vmem:[%s2 + $0xf8] sm:$0xff]
        %v1769 = vld [vmem:[%s2 + $0x100] sm:$0xff]
        %v1770 = vld [vmem:[%s2 + $0x108] sm:$0xff]
        %v1772 = vsel %vm598, %v1767, 0
        %v1775 = vsel %vm598, %v1768, 0
        %v1778 = vsel %vm598, %v1769, 0
        %v1781 = vsel %vm598, %v1770, 0
        %1783 = vmatpush.msra.mxu0 0.0
        %1784 = vmatpush.msra.mxu0 0.0
        %1785 = vmatpush.msra.mxu0 0.0
        %1786 = vmatpush.msra.mxu0 0.0
        %1787 = vmatpush.msra.mxu0 0.0
        %1788 = vmatpush.msra.mxu0 0.0
        %1789 = vmatpush.msra.mxu0 0.0
        %1790 = vmatpush.msra.mxu0 0.0
        %1791 = vmatpush.msra.mxu0 0.0
        %1792 = vmatpush.msra.mxu0 0.0
        %1793 = vmatpush.msra.mxu0 0.0
        %1794 = vmatpush.msra.mxu0 0.0
        %1795 = vmatpush.msra.mxu0 %v1755
        %1796 = vmatpush.msra.mxu0 %v1747
        %1797 = vmatpush.msra.mxu0 %v1739
        %1798 = vmatpush.msra.mxu0 %v1731
        %1799 = vmatmul.f32.gmra.mxu0 %v1772
        %v1800 = vpop.f32.mrf.mxu0
        %v1801 = vadd.f32 0.0, %v1800
        %1802 = vmatmul.f32.gmra.mxu0 %v1775
        %v1803 = vpop.f32.mrf.mxu0
        %v1804 = vadd.f32 0.0, %v1803
        %1805 = vmatmul.f32.gmra.mxu0 %v1778
        %v1806 = vpop.f32.mrf.mxu0
        %v1807 = vadd.f32 0.0, %v1806
        %1808 = vmatmul.f32.gmra.mxu0 %v1781
        %v1809 = vpop.f32.mrf.mxu0
        %v1810 = vadd.f32 0.0, %v1809
        %1811 = vdwg.mxu0
        %1812 = vmatpush.msra.mxu0 0.0
        %1813 = vmatpush.msra.mxu0 0.0
        %1814 = vmatpush.msra.mxu0 0.0
        %1815 = vmatpush.msra.mxu0 0.0
        %1816 = vmatpush.msra.mxu0 0.0
        %1817 = vmatpush.msra.mxu0 0.0
        %1818 = vmatpush.msra.mxu0 0.0
        %1819 = vmatpush.msra.mxu0 0.0
        %1820 = vmatpush.msra.mxu0 0.0
        %1821 = vmatpush.msra.mxu0 0.0
        %1822 = vmatpush.msra.mxu0 0.0
        %1823 = vmatpush.msra.mxu0 0.0
        %1824 = vmatpush.msra.mxu0 %v1756
        %1825 = vmatpush.msra.mxu0 %v1748
        %1826 = vmatpush.msra.mxu0 %v1740
        %1827 = vmatpush.msra.mxu0 %v1732
        %1828 = vmatmul.f32.gmra.mxu0 %v1772
        %v1829 = vpop.f32.mrf.mxu0
        %v1830 = vadd.f32 0.0, %v1829
        %1831 = vmatmul.f32.gmra.mxu0 %v1775
        %v1832 = vpop.f32.mrf.mxu0
        %v1833 = vadd.f32 0.0, %v1832
        %1834 = vmatmul.f32.gmra.mxu0 %v1778
        %v1835 = vpop.f32.mrf.mxu0
        %v1836 = vadd.f32 0.0, %v1835
        %1837 = vmatmul.f32.gmra.mxu0 %v1781
        %v1838 = vpop.f32.mrf.mxu0
        %v1839 = vadd.f32 0.0, %v1838
        %1840 = vdwg.mxu0
        %1841 = vmatpush.msra.mxu0 0.0
        %1842 = vmatpush.msra.mxu0 0.0
        %1843 = vmatpush.msra.mxu0 0.0
        %1844 = vmatpush.msra.mxu0 0.0
        %1845 = vmatpush.msra.mxu0 0.0
        %1846 = vmatpush.msra.mxu0 0.0
        %1847 = vmatpush.msra.mxu0 0.0
        %1848 = vmatpush.msra.mxu0 0.0
        %1849 = vmatpush.msra.mxu0 0.0
        %1850 = vmatpush.msra.mxu0 0.0
        %1851 = vmatpush.msra.mxu0 0.0
        %1852 = vmatpush.msra.mxu0 0.0
        %1853 = vmatpush.msra.mxu0 %v1757
        %1854 = vmatpush.msra.mxu0 %v1749
        %1855 = vmatpush.msra.mxu0 %v1741
        %1856 = vmatpush.msra.mxu0 %v1733
        %1857 = vmatmul.f32.gmra.mxu0 %v1772
        %v1858 = vpop.f32.mrf.mxu0
        %v1859 = vadd.f32 0.0, %v1858
        %1860 = vmatmul.f32.gmra.mxu0 %v1775
        %v1861 = vpop.f32.mrf.mxu0
        %v1862 = vadd.f32 0.0, %v1861
        %1863 = vmatmul.f32.gmra.mxu0 %v1778
        %v1864 = vpop.f32.mrf.mxu0
        %v1865 = vadd.f32 0.0, %v1864
        %1866 = vmatmul.f32.gmra.mxu0 %v1781
        %v1867 = vpop.f32.mrf.mxu0
        %v1868 = vadd.f32 0.0, %v1867
        %1869 = vdwg.mxu0
        %1870 = vmatpush.msra.mxu0 0.0
        %1871 = vmatpush.msra.mxu0 0.0
        %1872 = vmatpush.msra.mxu0 0.0
        %1873 = vmatpush.msra.mxu0 0.0
        %1874 = vmatpush.msra.mxu0 0.0
        %1875 = vmatpush.msra.mxu0 0.0
        %1876 = vmatpush.msra.mxu0 0.0
        %1877 = vmatpush.msra.mxu0 0.0
        %1878 = vmatpush.msra.mxu0 0.0
        %1879 = vmatpush.msra.mxu0 0.0
        %1880 = vmatpush.msra.mxu0 0.0
        %1881 = vmatpush.msra.mxu0 0.0
        %1882 = vmatpush.msra.mxu0 %v1758
        %1883 = vmatpush.msra.mxu0 %v1750
        %1884 = vmatpush.msra.mxu0 %v1742
        %1885 = vmatpush.msra.mxu0 %v1734
        %1886 = vmatmul.f32.gmra.mxu0 %v1772
        %v1887 = vpop.f32.mrf.mxu0
        %v1888 = vadd.f32 0.0, %v1887
        %1889 = vmatmul.f32.gmra.mxu0 %v1775
        %v1890 = vpop.f32.mrf.mxu0
        %v1891 = vadd.f32 0.0, %v1890
        %1892 = vmatmul.f32.gmra.mxu0 %v1778
        %v1893 = vpop.f32.mrf.mxu0
        %v1894 = vadd.f32 0.0, %v1893
        %1895 = vmatmul.f32.gmra.mxu0 %v1781
        %v1896 = vpop.f32.mrf.mxu0
        %v1897 = vadd.f32 0.0, %v1896
        %1898 = vdwg.mxu0
        %1899 = vmatpush.msra.mxu0 0.0
        %1900 = vmatpush.msra.mxu0 0.0
        %1901 = vmatpush.msra.mxu0 0.0
        %1902 = vmatpush.msra.mxu0 0.0
        %1903 = vmatpush.msra.mxu0 0.0
        %1904 = vmatpush.msra.mxu0 0.0
        %1905 = vmatpush.msra.mxu0 0.0
        %1906 = vmatpush.msra.mxu0 0.0
        %1907 = vmatpush.msra.mxu0 0.0
        %1908 = vmatpush.msra.mxu0 0.0
        %1909 = vmatpush.msra.mxu0 0.0
        %1910 = vmatpush.msra.mxu0 0.0
        %1911 = vmatpush.msra.mxu0 %v1759
        %1912 = vmatpush.msra.mxu0 %v1751
        %1913 = vmatpush.msra.mxu0 %v1743
        %1914 = vmatpush.msra.mxu0 %v1735
        %1915 = vmatmul.f32.gmra.mxu0 %v1772
        %v1916 = vpop.f32.mrf.mxu0
        %v1917 = vadd.f32 0.0, %v1916
        %1918 = vmatmul.f32.gmra.mxu0 %v1775
        %v1919 = vpop.f32.mrf.mxu0
        %v1920 = vadd.f32 0.0, %v1919
        %1921 = vmatmul.f32.gmra.mxu0 %v1778
        %v1922 = vpop.f32.mrf.mxu0
        %v1923 = vadd.f32 0.0, %v1922
        %1924 = vmatmul.f32.gmra.mxu0 %v1781
        %v1925 = vpop.f32.mrf.mxu0
        %v1926 = vadd.f32 0.0, %v1925
        %1927 = vdwg.mxu0
        %1928 = vmatpush.msra.mxu0 0.0
        %1929 = vmatpush.msra.mxu0 0.0
        %1930 = vmatpush.msra.mxu0 0.0
        %1931 = vmatpush.msra.mxu0 0.0
        %1932 = vmatpush.msra.mxu0 0.0
        %1933 = vmatpush.msra.mxu0 0.0
        %1934 = vmatpush.msra.mxu0 0.0
        %1935 = vmatpush.msra.mxu0 0.0
        %1936 = vmatpush.msra.mxu0 0.0
        %1937 = vmatpush.msra.mxu0 0.0
        %1938 = vmatpush.msra.mxu0 0.0
        %1939 = vmatpush.msra.mxu0 0.0
        %1940 = vmatpush.msra.mxu0 %v1760
        %1941 = vmatpush.msra.mxu0 %v1752
        %1942 = vmatpush.msra.mxu0 %v1744
        %1943 = vmatpush.msra.mxu0 %v1736
        %1944 = vmatmul.f32.gmra.mxu0 %v1772
        %v1945 = vpop.f32.mrf.mxu0
        %v1946 = vadd.f32 0.0, %v1945
        %1947 = vmatmul.f32.gmra.mxu0 %v1775
        %v1948 = vpop.f32.mrf.mxu0
        %v1949 = vadd.f32 0.0, %v1948
        %1950 = vmatmul.f32.gmra.mxu0 %v1778
        %v1951 = vpop.f32.mrf.mxu0
        %v1952 = vadd.f32 0.0, %v1951
        %1953 = vmatmul.f32.gmra.mxu0 %v1781
        %v1954 = vpop.f32.mrf.mxu0
        %v1955 = vadd.f32 0.0, %v1954
        %1956 = vdwg.mxu0
        %1957 = vmatpush.msra.mxu0 0.0
        %1958 = vmatpush.msra.mxu0 0.0
        %1959 = vmatpush.msra.mxu0 0.0
        %1960 = vmatpush.msra.mxu0 0.0
        %1961 = vmatpush.msra.mxu0 0.0
        %1962 = vmatpush.msra.mxu0 0.0
        %1963 = vmatpush.msra.mxu0 0.0
        %1964 = vmatpush.msra.mxu0 0.0
        %1965 = vmatpush.msra.mxu0 0.0
        %1966 = vmatpush.msra.mxu0 0.0
        %1967 = vmatpush.msra.mxu0 0.0
        %1968 = vmatpush.msra.mxu0 0.0
        %1969 = vmatpush.msra.mxu0 %v1761
        %1970 = vmatpush.msra.mxu0 %v1753
        %1971 = vmatpush.msra.mxu0 %v1745
        %1972 = vmatpush.msra.mxu0 %v1737
        %1973 = vmatmul.f32.gmra.mxu0 %v1772
        %v1974 = vpop.f32.mrf.mxu0
        %v1975 = vadd.f32 0.0, %v1974
        %1976 = vmatmul.f32.gmra.mxu0 %v1775
        %v1977 = vpop.f32.mrf.mxu0
        %v1978 = vadd.f32 0.0, %v1977
        %1979 = vmatmul.f32.gmra.mxu0 %v1778
        %v1980 = vpop.f32.mrf.mxu0
        %v1981 = vadd.f32 0.0, %v1980
        %1982 = vmatmul.f32.gmra.mxu0 %v1781
        %v1983 = vpop.f32.mrf.mxu0
        %v1984 = vadd.f32 0.0, %v1983
        %1985 = vdwg.mxu0
        %1986 = vmatpush.msra.mxu0 0.0
        %1987 = vmatpush.msra.mxu0 0.0
        %1988 = vmatpush.msra.mxu0 0.0
        %1989 = vmatpush.msra.mxu0 0.0
        %1990 = vmatpush.msra.mxu0 0.0
        %1991 = vmatpush.msra.mxu0 0.0
        %1992 = vmatpush.msra.mxu0 0.0
        %1993 = vmatpush.msra.mxu0 0.0
        %1994 = vmatpush.msra.mxu0 0.0
        %1995 = vmatpush.msra.mxu0 0.0
        %1996 = vmatpush.msra.mxu0 0.0
        %1997 = vmatpush.msra.mxu0 0.0
        %1998 = vmatpush.msra.mxu0 %v1762
        %1999 = vmatpush.msra.mxu0 %v1754
        %2000 = vmatpush.msra.mxu0 %v1746
        %2001 = vmatpush.msra.mxu0 %v1738
        %2002 = vmatmul.f32.gmra.mxu0 %v1772
        %v2003 = vpop.f32.mrf.mxu0
        %v2004 = vadd.f32 0.0, %v2003
        %2005 = vmatmul.f32.gmra.mxu0 %v1775
        %v2006 = vpop.f32.mrf.mxu0
        %v2007 = vadd.f32 0.0, %v2006
        %2008 = vmatmul.f32.gmra.mxu0 %v1778
        %v2009 = vpop.f32.mrf.mxu0
        %v2010 = vadd.f32 0.0, %v2009
        %2011 = vmatmul.f32.gmra.mxu0 %v1781
        %v2012 = vpop.f32.mrf.mxu0
        %v2013 = vadd.f32 0.0, %v2012
        %2014 = vdwg.mxu0
        %2015 = vst [vmem:[#allocation1] ss:$2 sm:$0xff] %v221
        %s2016 = scalar_lea.vmem [#allocation1], 16
        %2017 = vst [vmem:[%s2016] ss:$2 sm:$0xff] %v222
        %s2018 = scalar_lea.vmem [#allocation1], 32
        %2019 = vst [vmem:[%s2018] ss:$2 sm:$0xff] %v223
        %s2020 = scalar_lea.vmem [#allocation1], 48
        %2021 = vst [vmem:[%s2020] ss:$2 sm:$0xff] %v224
        %v2022 = vld.sshfl [vmem:[#allocation1] sm:$0xff pattern:$0x75316420]
        %v2023 = vld.sshfl [vmem:[#allocation1 + $0x8] sm:$0xff pattern:$0x75316420]
        %v2024 = vld.sshfl [vmem:[#allocation1 + $0x10] sm:$0xff pattern:$0x75316420]
        %v2025 = vld.sshfl [vmem:[#allocation1 + $0x18] sm:$0xff pattern:$0x75316420]
        %v2026 = vld.sshfl [vmem:[#allocation1 + $0x20] sm:$0xff pattern:$0x75316420]
        %v2027 = vld.sshfl [vmem:[#allocation1 + $0x28] sm:$0xff pattern:$0x75316420]
        %v2028 = vld.sshfl [vmem:[#allocation1 + $0x30] sm:$0xff pattern:$0x75316420]
        %v2029 = vld.sshfl [vmem:[#allocation1 + $0x38] sm:$0xff pattern:$0x75316420]
        %v2031 = vsel %vm276, %v1763, 0
        %v2034 = vsel %vm276, %v1764, 0
        %v2037 = vsel %vm276, %v1765, 0
        %v2040 = vsel %vm276, %v1766, 0
        %v2042 = vsel %vm289, %v2022, 0
        %v2044 = vsel %vm289, %v2023, 0
        %v2046 = vsel %vm289, %v2024, 0
        %v2048 = vsel %vm289, %v2025, 0
        %v2050 = vsel %vm289, %v2026, 0
        %v2052 = vsel %vm289, %v2027, 0
        %v2054 = vsel %vm289, %v2028, 0
        %v2056 = vsel %vm289, %v2029, 0
        %2058 = vmatpush.msra.mxu0 0.0
        %2059 = vmatpush.msra.mxu0 0.0
        %2060 = vmatpush.msra.mxu0 0.0
        %2061 = vmatpush.msra.mxu0 0.0
        %2062 = vmatpush.msra.mxu0 0.0
        %2063 = vmatpush.msra.mxu0 0.0
        %2064 = vmatpush.msra.mxu0 0.0
        %2065 = vmatpush.msra.mxu0 0.0
        %2066 = vmatpush.msra.mxu0 0.0
        %2067 = vmatpush.msra.mxu0 0.0
        %2068 = vmatpush.msra.mxu0 0.0
        %2069 = vmatpush.msra.mxu0 0.0
        %2070 = vmatpush.msra.mxu0 0.0
        %2071 = vmatpush.msra.mxu0 0.0
        %2072 = vmatpush.msra.mxu0 0.0
        %2073 = vmatpush.msra.mxu0 %v2042
        %2074 = vmatmul.f32.gmra.mxu0 %v2031
        %v2075 = vpop.f32.mrf.mxu0
        %v2076 = vadd.f32 %v1801, %v2075
        %2077 = vmatmul.f32.gmra.mxu0 %v2034
        %v2078 = vpop.f32.mrf.mxu0
        %v2079 = vadd.f32 %v1804, %v2078
        %2080 = vmatmul.f32.gmra.mxu0 %v2037
        %v2081 = vpop.f32.mrf.mxu0
        %v2082 = vadd.f32 %v1807, %v2081
        %2083 = vmatmul.f32.gmra.mxu0 %v2040
        %v2084 = vpop.f32.mrf.mxu0
        %v2085 = vadd.f32 %v1810, %v2084
        %2086 = vdwg.mxu0
        %2087 = vmatpush.msra.mxu0 0.0
        %2088 = vmatpush.msra.mxu0 0.0
        %2089 = vmatpush.msra.mxu0 0.0
        %2090 = vmatpush.msra.mxu0 0.0
        %2091 = vmatpush.msra.mxu0 0.0
        %2092 = vmatpush.msra.mxu0 0.0
        %2093 = vmatpush.msra.mxu0 0.0
        %2094 = vmatpush.msra.mxu0 0.0
        %2095 = vmatpush.msra.mxu0 0.0
        %2096 = vmatpush.msra.mxu0 0.0
        %2097 = vmatpush.msra.mxu0 0.0
        %2098 = vmatpush.msra.mxu0 0.0
        %2099 = vmatpush.msra.mxu0 0.0
        %2100 = vmatpush.msra.mxu0 0.0
        %2101 = vmatpush.msra.mxu0 0.0
        %2102 = vmatpush.msra.mxu0 %v2044
        %2103 = vmatmul.f32.gmra.mxu0 %v2031
        %v2104 = vpop.f32.mrf.mxu0
        %v2105 = vadd.f32 %v1830, %v2104
        %2106 = vmatmul.f32.gmra.mxu0 %v2034
        %v2107 = vpop.f32.mrf.mxu0
        %v2108 = vadd.f32 %v1833, %v2107
        %2109 = vmatmul.f32.gmra.mxu0 %v2037
        %v2110 = vpop.f32.mrf.mxu0
        %v2111 = vadd.f32 %v1836, %v2110
        %2112 = vmatmul.f32.gmra.mxu0 %v2040
        %v2113 = vpop.f32.mrf.mxu0
        %v2114 = vadd.f32 %v1839, %v2113
        %2115 = vdwg.mxu0
        %2116 = vmatpush.msra.mxu0 0.0
        %2117 = vmatpush.msra.mxu0 0.0
        %2118 = vmatpush.msra.mxu0 0.0
        %2119 = vmatpush.msra.mxu0 0.0
        %2120 = vmatpush.msra.mxu0 0.0
        %2121 = vmatpush.msra.mxu0 0.0
        %2122 = vmatpush.msra.mxu0 0.0
        %2123 = vmatpush.msra.mxu0 0.0
        %2124 = vmatpush.msra.mxu0 0.0
        %2125 = vmatpush.msra.mxu0 0.0
        %2126 = vmatpush.msra.mxu0 0.0
        %2127 = vmatpush.msra.mxu0 0.0
        %2128 = vmatpush.msra.mxu0 0.0
        %2129 = vmatpush.msra.mxu0 0.0
        %2130 = vmatpush.msra.mxu0 0.0
        %2131 = vmatpush.msra.mxu0 %v2046
        %2132 = vmatmul.f32.gmra.mxu0 %v2031
        %v2133 = vpop.f32.mrf.mxu0
        %v2134 = vadd.f32 %v1859, %v2133
        %2135 = vmatmul.f32.gmra.mxu0 %v2034
        %v2136 = vpop.f32.mrf.mxu0
        %v2137 = vadd.f32 %v1862, %v2136
        %2138 = vmatmul.f32.gmra.mxu0 %v2037
        %v2139 = vpop.f32.mrf.mxu0
        %v2140 = vadd.f32 %v1865, %v2139
        %2141 = vmatmul.f32.gmra.mxu0 %v2040
        %v2142 = vpop.f32.mrf.mxu0
        %v2143 = vadd.f32 %v1868, %v2142
        %2144 = vdwg.mxu0
        %2145 = vmatpush.msra.mxu0 0.0
        %2146 = vmatpush.msra.mxu0 0.0
        %2147 = vmatpush.msra.mxu0 0.0
        %2148 = vmatpush.msra.mxu0 0.0
        %2149 = vmatpush.msra.mxu0 0.0
        %2150 = vmatpush.msra.mxu0 0.0
        %2151 = vmatpush.msra.mxu0 0.0
        %2152 = vmatpush.msra.mxu0 0.0
        %2153 = vmatpush.msra.mxu0 0.0
        %2154 = vmatpush.msra.mxu0 0.0
        %2155 = vmatpush.msra.mxu0 0.0
        %2156 = vmatpush.msra.mxu0 0.0
        %2157 = vmatpush.msra.mxu0 0.0
        %2158 = vmatpush.msra.mxu0 0.0
        %2159 = vmatpush.msra.mxu0 0.0
        %2160 = vmatpush.msra.mxu0 %v2048
        %2161 = vmatmul.f32.gmra.mxu0 %v2031
        %v2162 = vpop.f32.mrf.mxu0
        %v2163 = vadd.f32 %v1888, %v2162
        %2164 = vmatmul.f32.gmra.mxu0 %v2034
        %v2165 = vpop.f32.mrf.mxu0
        %v2166 = vadd.f32 %v1891, %v2165
        %2167 = vmatmul.f32.gmra.mxu0 %v2037
        %v2168 = vpop.f32.mrf.mxu0
        %v2169 = vadd.f32 %v1894, %v2168
        %2170 = vmatmul.f32.gmra.mxu0 %v2040
        %v2171 = vpop.f32.mrf.mxu0
        %v2172 = vadd.f32 %v1897, %v2171
        %2173 = vdwg.mxu0
        %2174 = vmatpush.msra.mxu0 0.0
        %2175 = vmatpush.msra.mxu0 0.0
        %2176 = vmatpush.msra.mxu0 0.0
        %2177 = vmatpush.msra.mxu0 0.0
        %2178 = vmatpush.msra.mxu0 0.0
        %2179 = vmatpush.msra.mxu0 0.0
        %2180 = vmatpush.msra.mxu0 0.0
        %2181 = vmatpush.msra.mxu0 0.0
        %2182 = vmatpush.msra.mxu0 0.0
        %2183 = vmatpush.msra.mxu0 0.0
        %2184 = vmatpush.msra.mxu0 0.0
        %2185 = vmatpush.msra.mxu0 0.0
        %2186 = vmatpush.msra.mxu0 0.0
        %2187 = vmatpush.msra.mxu0 0.0
        %2188 = vmatpush.msra.mxu0 0.0
        %2189 = vmatpush.msra.mxu0 %v2050
        %2190 = vmatmul.f32.gmra.mxu0 %v2031
        %v2191 = vpop.f32.mrf.mxu0
        %v2192 = vadd.f32 %v1917, %v2191
        %2193 = vmatmul.f32.gmra.mxu0 %v2034
        %v2194 = vpop.f32.mrf.mxu0
        %v2195 = vadd.f32 %v1920, %v2194
        %2196 = vmatmul.f32.gmra.mxu0 %v2037
        %v2197 = vpop.f32.mrf.mxu0
        %v2198 = vadd.f32 %v1923, %v2197
        %2199 = vmatmul.f32.gmra.mxu0 %v2040
        %v2200 = vpop.f32.mrf.mxu0
        %v2201 = vadd.f32 %v1926, %v2200
        %2202 = vdwg.mxu0
        %2203 = vmatpush.msra.mxu0 0.0
        %2204 = vmatpush.msra.mxu0 0.0
        %2205 = vmatpush.msra.mxu0 0.0
        %2206 = vmatpush.msra.mxu0 0.0
        %2207 = vmatpush.msra.mxu0 0.0
        %2208 = vmatpush.msra.mxu0 0.0
        %2209 = vmatpush.msra.mxu0 0.0
        %2210 = vmatpush.msra.mxu0 0.0
        %2211 = vmatpush.msra.mxu0 0.0
        %2212 = vmatpush.msra.mxu0 0.0
        %2213 = vmatpush.msra.mxu0 0.0
        %2214 = vmatpush.msra.mxu0 0.0
        %2215 = vmatpush.msra.mxu0 0.0
        %2216 = vmatpush.msra.mxu0 0.0
        %2217 = vmatpush.msra.mxu0 0.0
        %2218 = vmatpush.msra.mxu0 %v2052
        %2219 = vmatmul.f32.gmra.mxu0 %v2031
        %v2220 = vpop.f32.mrf.mxu0
        %v2221 = vadd.f32 %v1946, %v2220
        %2222 = vmatmul.f32.gmra.mxu0 %v2034
        %v2223 = vpop.f32.mrf.mxu0
        %v2224 = vadd.f32 %v1949, %v2223
        %2225 = vmatmul.f32.gmra.mxu0 %v2037
        %v2226 = vpop.f32.mrf.mxu0
        %v2227 = vadd.f32 %v1952, %v2226
        %2228 = vmatmul.f32.gmra.mxu0 %v2040
        %v2229 = vpop.f32.mrf.mxu0
        %v2230 = vadd.f32 %v1955, %v2229
        %2231 = vdwg.mxu0
        %2232 = vmatpush.msra.mxu0 0.0
        %2233 = vmatpush.msra.mxu0 0.0
        %2234 = vmatpush.msra.mxu0 0.0
        %2235 = vmatpush.msra.mxu0 0.0
        %2236 = vmatpush.msra.mxu0 0.0
        %2237 = vmatpush.msra.mxu0 0.0
        %2238 = vmatpush.msra.mxu0 0.0
        %2239 = vmatpush.msra.mxu0 0.0
        %2240 = vmatpush.msra.mxu0 0.0
        %2241 = vmatpush.msra.mxu0 0.0
        %2242 = vmatpush.msra.mxu0 0.0
        %2243 = vmatpush.msra.mxu0 0.0
        %2244 = vmatpush.msra.mxu0 0.0
        %2245 = vmatpush.msra.mxu0 0.0
        %2246 = vmatpush.msra.mxu0 0.0
        %2247 = vmatpush.msra.mxu0 %v2054
        %2248 = vmatmul.f32.gmra.mxu0 %v2031
        %v2249 = vpop.f32.mrf.mxu0
        %v2250 = vadd.f32 %v1975, %v2249
        %2251 = vmatmul.f32.gmra.mxu0 %v2034
        %v2252 = vpop.f32.mrf.mxu0
        %v2253 = vadd.f32 %v1978, %v2252
        %2254 = vmatmul.f32.gmra.mxu0 %v2037
        %v2255 = vpop.f32.mrf.mxu0
        %v2256 = vadd.f32 %v1981, %v2255
        %2257 = vmatmul.f32.gmra.mxu0 %v2040
        %v2258 = vpop.f32.mrf.mxu0
        %v2259 = vadd.f32 %v1984, %v2258
        %2260 = vdwg.mxu0
        %2261 = vmatpush.msra.mxu0 0.0
        %2262 = vmatpush.msra.mxu0 0.0
        %2263 = vmatpush.msra.mxu0 0.0
        %2264 = vmatpush.msra.mxu0 0.0
        %2265 = vmatpush.msra.mxu0 0.0
        %2266 = vmatpush.msra.mxu0 0.0
        %2267 = vmatpush.msra.mxu0 0.0
        %2268 = vmatpush.msra.mxu0 0.0
        %2269 = vmatpush.msra.mxu0 0.0
        %2270 = vmatpush.msra.mxu0 0.0
        %2271 = vmatpush.msra.mxu0 0.0
        %2272 = vmatpush.msra.mxu0 0.0
        %2273 = vmatpush.msra.mxu0 0.0
        %2274 = vmatpush.msra.mxu0 0.0
        %2275 = vmatpush.msra.mxu0 0.0
        %2276 = vmatpush.msra.mxu0 %v2056
        %2277 = vmatmul.f32.gmra.mxu0 %v2031
        %v2278 = vpop.f32.mrf.mxu0
        %v2279 = vadd.f32 %v2004, %v2278
        %2280 = vmatmul.f32.gmra.mxu0 %v2034
        %v2281 = vpop.f32.mrf.mxu0
        %v2282 = vadd.f32 %v2007, %v2281
        %2283 = vmatmul.f32.gmra.mxu0 %v2037
        %v2284 = vpop.f32.mrf.mxu0
        %v2285 = vadd.f32 %v2010, %v2284
        %2286 = vmatmul.f32.gmra.mxu0 %v2040
        %v2287 = vpop.f32.mrf.mxu0
        %v2288 = vadd.f32 %v2013, %v2287
        %2289 = vdwg.mxu0
        %v2290 = vld [vmem:[%s3] sm:$0xff]
        %v2291 = vld [vmem:[%s3 + $0x8] sm:$0xff]
        %v2292 = vld [vmem:[%s3 + $0x10] sm:$0xff]
        %v2293 = vld [vmem:[%s3 + $0x18] sm:$0xff]
        %2295 = vset.pattern.permute.xlu0 5
        %2296 = vperm.xlu0 %2295, %v2290
        %v2297 = vpop.permute.xlu0 %2296
        %2300 = vset.pattern.permute.xlu0 5
        %2301 = vperm.xlu0 %2300, %v2291
        %v2302 = vpop.permute.xlu0 %2301
        %2305 = vset.pattern.permute.xlu0 5
        %2306 = vperm.xlu0 %2305, %v2292
        %v2307 = vpop.permute.xlu0 %2306
        %2310 = vset.pattern.permute.xlu0 5
        %2311 = vperm.xlu0 %2310, %v2293
        %v2312 = vpop.permute.xlu0 %2311
        %v2314 = vadd.f32 %v2076, %v2297
        %v2315 = vadd.f32 %v2105, %v2297
        %v2316 = vadd.f32 %v2134, %v2297
        %v2317 = vadd.f32 %v2163, %v2297
        %v2318 = vadd.f32 %v2192, %v2297
        %v2319 = vadd.f32 %v2221, %v2297
        %v2320 = vadd.f32 %v2250, %v2297
        %v2321 = vadd.f32 %v2279, %v2297
        %v2322 = vadd.f32 %v2079, %v2302
        %v2323 = vadd.f32 %v2108, %v2302
        %v2324 = vadd.f32 %v2137, %v2302
        %v2325 = vadd.f32 %v2166, %v2302
        %v2326 = vadd.f32 %v2195, %v2302
        %v2327 = vadd.f32 %v2224, %v2302
        %v2328 = vadd.f32 %v2253, %v2302
        %v2329 = vadd.f32 %v2282, %v2302
        %v2330 = vadd.f32 %v2082, %v2307
        %v2331 = vadd.f32 %v2111, %v2307
        %v2332 = vadd.f32 %v2140, %v2307
        %v2333 = vadd.f32 %v2169, %v2307
        %v2334 = vadd.f32 %v2198, %v2307
        %v2335 = vadd.f32 %v2227, %v2307
        %v2336 = vadd.f32 %v2256, %v2307
        %v2337 = vadd.f32 %v2285, %v2307
        %v2338 = vadd.f32 %v2085, %v2312
        %v2339 = vadd.f32 %v2114, %v2312
        %v2340 = vadd.f32 %v2143, %v2312
        %v2341 = vadd.f32 %v2172, %v2312
        %v2342 = vadd.f32 %v2201, %v2312
        %v2343 = vadd.f32 %v2230, %v2312
        %v2344 = vadd.f32 %v2259, %v2312
        %v2345 = vadd.f32 %v2288, %v2312
        %v2346 = vmax.f32 %v2314, 0.0
        %v2347 = vmax.f32 %v2315, 0.0
        %v2348 = vmax.f32 %v2316, 0.0
        %v2349 = vmax.f32 %v2317, 0.0
        %v2350 = vmax.f32 %v2318, 0.0
        %v2351 = vmax.f32 %v2319, 0.0
        %v2352 = vmax.f32 %v2320, 0.0
        %v2353 = vmax.f32 %v2321, 0.0
        %v2354 = vmax.f32 %v2322, 0.0
        %v2355 = vmax.f32 %v2323, 0.0
        %v2356 = vmax.f32 %v2324, 0.0
        %v2357 = vmax.f32 %v2325, 0.0
        %v2358 = vmax.f32 %v2326, 0.0
        %v2359 = vmax.f32 %v2327, 0.0
        %v2360 = vmax.f32 %v2328, 0.0
        %v2361 = vmax.f32 %v2329, 0.0
        %v2362 = vmax.f32 %v2330, 0.0
        %v2363 = vmax.f32 %v2331, 0.0
        %v2364 = vmax.f32 %v2332, 0.0
        %v2365 = vmax.f32 %v2333, 0.0
        %v2366 = vmax.f32 %v2334, 0.0
        %v2367 = vmax.f32 %v2335, 0.0
        %v2368 = vmax.f32 %v2336, 0.0
        %v2369 = vmax.f32 %v2337, 0.0
        %v2370 = vmax.f32 %v2338, 0.0
        %v2371 = vmax.f32 %v2339, 0.0
        %v2372 = vmax.f32 %v2340, 0.0
        %v2373 = vmax.f32 %v2341, 0.0
        %v2374 = vmax.f32 %v2342, 0.0
        %v2375 = vmax.f32 %v2343, 0.0
        %v2376 = vmax.f32 %v2344, 0.0
        %v2377 = vmax.f32 %v2345, 0.0
        %v2378 = vld [vmem:[%s2 + $0x118] sm:$0xff]
        %v2379 = vld [vmem:[%s2 + $0x120] sm:$0xff]
        %v2380 = vld [vmem:[%s2 + $0x128] sm:$0xff]
        %v2381 = vld [vmem:[%s2 + $0x130] sm:$0xff]
        %2382 = vset.pattern.permute.xlu0 6
        %2383 = vperm.xlu0 %2382, %v2290
        %v2384 = vpop.permute.xlu0 %2383
        %2386 = vset.pattern.permute.xlu0 6
        %2387 = vperm.xlu0 %2386, %v2291
        %v2388 = vpop.permute.xlu0 %2387
        %2390 = vset.pattern.permute.xlu0 6
        %2391 = vperm.xlu0 %2390, %v2292
        %v2392 = vpop.permute.xlu0 %2391
        %2394 = vset.pattern.permute.xlu0 6
        %2395 = vperm.xlu0 %2394, %v2293
        %v2396 = vpop.permute.xlu0 %2395
        %v2399 = vsel %vm598, %v2378, 0
        %v2402 = vsel %vm598, %v2379, 0
        %v2405 = vsel %vm598, %v2380, 0
        %v2408 = vsel %vm598, %v2381, 0
        %2410 = vmatpush.msra.mxu0 0.0
        %2411 = vmatpush.msra.mxu0 0.0
        %2412 = vmatpush.msra.mxu0 0.0
        %2413 = vmatpush.msra.mxu0 0.0
        %2414 = vmatpush.msra.mxu0 0.0
        %2415 = vmatpush.msra.mxu0 0.0
        %2416 = vmatpush.msra.mxu0 0.0
        %2417 = vmatpush.msra.mxu0 0.0
        %2418 = vmatpush.msra.mxu0 0.0
        %2419 = vmatpush.msra.mxu0 0.0
        %2420 = vmatpush.msra.mxu0 0.0
        %2421 = vmatpush.msra.mxu0 0.0
        %2422 = vmatpush.msra.mxu0 %v2370
        %2423 = vmatpush.msra.mxu0 %v2362
        %2424 = vmatpush.msra.mxu0 %v2354
        %2425 = vmatpush.msra.mxu0 %v2346
        %2426 = vmatmul.f32.gmra.mxu0 %v2399
        %v2427 = vpop.f32.mrf.mxu0
        %v2428 = vadd.f32 %v2384, %v2427
        %2429 = vmatmul.f32.gmra.mxu0 %v2402
        %v2430 = vpop.f32.mrf.mxu0
        %v2431 = vadd.f32 %v2388, %v2430
        %2432 = vmatmul.f32.gmra.mxu0 %v2405
        %v2433 = vpop.f32.mrf.mxu0
        %v2434 = vadd.f32 %v2392, %v2433
        %2435 = vmatmul.f32.gmra.mxu0 %v2408
        %v2436 = vpop.f32.mrf.mxu0
        %v2437 = vadd.f32 %v2396, %v2436
        %2438 = vdwg.mxu0
        %2439 = vmatpush.msra.mxu0 0.0
        %2440 = vmatpush.msra.mxu0 0.0
        %2441 = vmatpush.msra.mxu0 0.0
        %2442 = vmatpush.msra.mxu0 0.0
        %2443 = vmatpush.msra.mxu0 0.0
        %2444 = vmatpush.msra.mxu0 0.0
        %2445 = vmatpush.msra.mxu0 0.0
        %2446 = vmatpush.msra.mxu0 0.0
        %2447 = vmatpush.msra.mxu0 0.0
        %2448 = vmatpush.msra.mxu0 0.0
        %2449 = vmatpush.msra.mxu0 0.0
        %2450 = vmatpush.msra.mxu0 0.0
        %2451 = vmatpush.msra.mxu0 %v2371
        %2452 = vmatpush.msra.mxu0 %v2363
        %2453 = vmatpush.msra.mxu0 %v2355
        %2454 = vmatpush.msra.mxu0 %v2347
        %2455 = vmatmul.f32.gmra.mxu0 %v2399
        %v2456 = vpop.f32.mrf.mxu0
        %v2457 = vadd.f32 %v2384, %v2456
        %2458 = vmatmul.f32.gmra.mxu0 %v2402
        %v2459 = vpop.f32.mrf.mxu0
        %v2460 = vadd.f32 %v2388, %v2459
        %2461 = vmatmul.f32.gmra.mxu0 %v2405
        %v2462 = vpop.f32.mrf.mxu0
        %v2463 = vadd.f32 %v2392, %v2462
        %2464 = vmatmul.f32.gmra.mxu0 %v2408
        %v2465 = vpop.f32.mrf.mxu0
        %v2466 = vadd.f32 %v2396, %v2465
        %2467 = vdwg.mxu0
        %2468 = vmatpush.msra.mxu0 0.0
        %2469 = vmatpush.msra.mxu0 0.0
        %2470 = vmatpush.msra.mxu0 0.0
        %2471 = vmatpush.msra.mxu0 0.0
        %2472 = vmatpush.msra.mxu0 0.0
        %2473 = vmatpush.msra.mxu0 0.0
        %2474 = vmatpush.msra.mxu0 0.0
        %2475 = vmatpush.msra.mxu0 0.0
        %2476 = vmatpush.msra.mxu0 0.0
        %2477 = vmatpush.msra.mxu0 0.0
        %2478 = vmatpush.msra.mxu0 0.0
        %2479 = vmatpush.msra.mxu0 0.0
        %2480 = vmatpush.msra.mxu0 %v2372
        %2481 = vmatpush.msra.mxu0 %v2364
        %2482 = vmatpush.msra.mxu0 %v2356
        %2483 = vmatpush.msra.mxu0 %v2348
        %2484 = vmatmul.f32.gmra.mxu0 %v2399
        %v2485 = vpop.f32.mrf.mxu0
        %v2486 = vadd.f32 %v2384, %v2485
        %2487 = vmatmul.f32.gmra.mxu0 %v2402
        %v2488 = vpop.f32.mrf.mxu0
        %v2489 = vadd.f32 %v2388, %v2488
        %2490 = vmatmul.f32.gmra.mxu0 %v2405
        %v2491 = vpop.f32.mrf.mxu0
        %v2492 = vadd.f32 %v2392, %v2491
        %2493 = vmatmul.f32.gmra.mxu0 %v2408
        %v2494 = vpop.f32.mrf.mxu0
        %v2495 = vadd.f32 %v2396, %v2494
        %2496 = vdwg.mxu0
        %2497 = vmatpush.msra.mxu0 0.0
        %2498 = vmatpush.msra.mxu0 0.0
        %2499 = vmatpush.msra.mxu0 0.0
        %2500 = vmatpush.msra.mxu0 0.0
        %2501 = vmatpush.msra.mxu0 0.0
        %2502 = vmatpush.msra.mxu0 0.0
        %2503 = vmatpush.msra.mxu0 0.0
        %2504 = vmatpush.msra.mxu0 0.0
        %2505 = vmatpush.msra.mxu0 0.0
        %2506 = vmatpush.msra.mxu0 0.0
        %2507 = vmatpush.msra.mxu0 0.0
        %2508 = vmatpush.msra.mxu0 0.0
        %2509 = vmatpush.msra.mxu0 %v2373
        %2510 = vmatpush.msra.mxu0 %v2365
        %2511 = vmatpush.msra.mxu0 %v2357
        %2512 = vmatpush.msra.mxu0 %v2349
        %2513 = vmatmul.f32.gmra.mxu0 %v2399
        %v2514 = vpop.f32.mrf.mxu0
        %v2515 = vadd.f32 %v2384, %v2514
        %2516 = vmatmul.f32.gmra.mxu0 %v2402
        %v2517 = vpop.f32.mrf.mxu0
        %v2518 = vadd.f32 %v2388, %v2517
        %2519 = vmatmul.f32.gmra.mxu0 %v2405
        %v2520 = vpop.f32.mrf.mxu0
        %v2521 = vadd.f32 %v2392, %v2520
        %2522 = vmatmul.f32.gmra.mxu0 %v2408
        %v2523 = vpop.f32.mrf.mxu0
        %v2524 = vadd.f32 %v2396, %v2523
        %2525 = vdwg.mxu0
        %2526 = vmatpush.msra.mxu0 0.0
        %2527 = vmatpush.msra.mxu0 0.0
        %2528 = vmatpush.msra.mxu0 0.0
        %2529 = vmatpush.msra.mxu0 0.0
        %2530 = vmatpush.msra.mxu0 0.0
        %2531 = vmatpush.msra.mxu0 0.0
        %2532 = vmatpush.msra.mxu0 0.0
        %2533 = vmatpush.msra.mxu0 0.0
        %2534 = vmatpush.msra.mxu0 0.0
        %2535 = vmatpush.msra.mxu0 0.0
        %2536 = vmatpush.msra.mxu0 0.0
        %2537 = vmatpush.msra.mxu0 0.0
        %2538 = vmatpush.msra.mxu0 %v2374
        %2539 = vmatpush.msra.mxu0 %v2366
        %2540 = vmatpush.msra.mxu0 %v2358
        %2541 = vmatpush.msra.mxu0 %v2350
        %2542 = vmatmul.f32.gmra.mxu0 %v2399
        %v2543 = vpop.f32.mrf.mxu0
        %v2544 = vadd.f32 %v2384, %v2543
        %2545 = vmatmul.f32.gmra.mxu0 %v2402
        %v2546 = vpop.f32.mrf.mxu0
        %v2547 = vadd.f32 %v2388, %v2546
        %2548 = vmatmul.f32.gmra.mxu0 %v2405
        %v2549 = vpop.f32.mrf.mxu0
        %v2550 = vadd.f32 %v2392, %v2549
        %2551 = vmatmul.f32.gmra.mxu0 %v2408
        %v2552 = vpop.f32.mrf.mxu0
        %v2553 = vadd.f32 %v2396, %v2552
        %2554 = vdwg.mxu0
        %2555 = vmatpush.msra.mxu0 0.0
        %2556 = vmatpush.msra.mxu0 0.0
        %2557 = vmatpush.msra.mxu0 0.0
        %2558 = vmatpush.msra.mxu0 0.0
        %2559 = vmatpush.msra.mxu0 0.0
        %2560 = vmatpush.msra.mxu0 0.0
        %2561 = vmatpush.msra.mxu0 0.0
        %2562 = vmatpush.msra.mxu0 0.0
        %2563 = vmatpush.msra.mxu0 0.0
        %2564 = vmatpush.msra.mxu0 0.0
        %2565 = vmatpush.msra.mxu0 0.0
        %2566 = vmatpush.msra.mxu0 0.0
        %2567 = vmatpush.msra.mxu0 %v2375
        %2568 = vmatpush.msra.mxu0 %v2367
        %2569 = vmatpush.msra.mxu0 %v2359
        %2570 = vmatpush.msra.mxu0 %v2351
        %2571 = vmatmul.f32.gmra.mxu0 %v2399
        %v2572 = vpop.f32.mrf.mxu0
        %v2573 = vadd.f32 %v2384, %v2572
        %2574 = vmatmul.f32.gmra.mxu0 %v2402
        %v2575 = vpop.f32.mrf.mxu0
        %v2576 = vadd.f32 %v2388, %v2575
        %2577 = vmatmul.f32.gmra.mxu0 %v2405
        %v2578 = vpop.f32.mrf.mxu0
        %v2579 = vadd.f32 %v2392, %v2578
        %2580 = vmatmul.f32.gmra.mxu0 %v2408
        %v2581 = vpop.f32.mrf.mxu0
        %v2582 = vadd.f32 %v2396, %v2581
        %2583 = vdwg.mxu0
        %2584 = vmatpush.msra.mxu0 0.0
        %2585 = vmatpush.msra.mxu0 0.0
        %2586 = vmatpush.msra.mxu0 0.0
        %2587 = vmatpush.msra.mxu0 0.0
        %2588 = vmatpush.msra.mxu0 0.0
        %2589 = vmatpush.msra.mxu0 0.0
        %2590 = vmatpush.msra.mxu0 0.0
        %2591 = vmatpush.msra.mxu0 0.0
        %2592 = vmatpush.msra.mxu0 0.0
        %2593 = vmatpush.msra.mxu0 0.0
        %2594 = vmatpush.msra.mxu0 0.0
        %2595 = vmatpush.msra.mxu0 0.0
        %2596 = vmatpush.msra.mxu0 %v2376
        %2597 = vmatpush.msra.mxu0 %v2368
        %2598 = vmatpush.msra.mxu0 %v2360
        %2599 = vmatpush.msra.mxu0 %v2352
        %2600 = vmatmul.f32.gmra.mxu0 %v2399
        %v2601 = vpop.f32.mrf.mxu0
        %v2602 = vadd.f32 %v2384, %v2601
        %2603 = vmatmul.f32.gmra.mxu0 %v2402
        %v2604 = vpop.f32.mrf.mxu0
        %v2605 = vadd.f32 %v2388, %v2604
        %2606 = vmatmul.f32.gmra.mxu0 %v2405
        %v2607 = vpop.f32.mrf.mxu0
        %v2608 = vadd.f32 %v2392, %v2607
        %2609 = vmatmul.f32.gmra.mxu0 %v2408
        %v2610 = vpop.f32.mrf.mxu0
        %v2611 = vadd.f32 %v2396, %v2610
        %2612 = vdwg.mxu0
        %2613 = vmatpush.msra.mxu0 0.0
        %2614 = vmatpush.msra.mxu0 0.0
        %2615 = vmatpush.msra.mxu0 0.0
        %2616 = vmatpush.msra.mxu0 0.0
        %2617 = vmatpush.msra.mxu0 0.0
        %2618 = vmatpush.msra.mxu0 0.0
        %2619 = vmatpush.msra.mxu0 0.0
        %2620 = vmatpush.msra.mxu0 0.0
        %2621 = vmatpush.msra.mxu0 0.0
        %2622 = vmatpush.msra.mxu0 0.0
        %2623 = vmatpush.msra.mxu0 0.0
        %2624 = vmatpush.msra.mxu0 0.0
        %2625 = vmatpush.msra.mxu0 %v2377
        %2626 = vmatpush.msra.mxu0 %v2369
        %2627 = vmatpush.msra.mxu0 %v2361
        %2628 = vmatpush.msra.mxu0 %v2353
        %2629 = vmatmul.f32.gmra.mxu0 %v2399
        %v2630 = vpop.f32.mrf.mxu0
        %v2631 = vadd.f32 %v2384, %v2630
        %2632 = vmatmul.f32.gmra.mxu0 %v2402
        %v2633 = vpop.f32.mrf.mxu0
        %v2634 = vadd.f32 %v2388, %v2633
        %2635 = vmatmul.f32.gmra.mxu0 %v2405
        %v2636 = vpop.f32.mrf.mxu0
        %v2637 = vadd.f32 %v2392, %v2636
        %2638 = vmatmul.f32.gmra.mxu0 %v2408
        %v2639 = vpop.f32.mrf.mxu0
        %v2640 = vadd.f32 %v2396, %v2639
        %2641 = vdwg.mxu0
        %v2642 = vmax.f32 %v2428, 0.0
        %v2643 = vmax.f32 %v2457, 0.0
        %v2644 = vmax.f32 %v2486, 0.0
        %v2645 = vmax.f32 %v2515, 0.0
        %v2646 = vmax.f32 %v2544, 0.0
        %v2647 = vmax.f32 %v2573, 0.0
        %v2648 = vmax.f32 %v2602, 0.0
        %v2649 = vmax.f32 %v2631, 0.0
        %v2650 = vmax.f32 %v2431, 0.0
        %v2651 = vmax.f32 %v2460, 0.0
        %v2652 = vmax.f32 %v2489, 0.0
        %v2653 = vmax.f32 %v2518, 0.0
        %v2654 = vmax.f32 %v2547, 0.0
        %v2655 = vmax.f32 %v2576, 0.0
        %v2656 = vmax.f32 %v2605, 0.0
        %v2657 = vmax.f32 %v2634, 0.0
        %v2658 = vmax.f32 %v2434, 0.0
        %v2659 = vmax.f32 %v2463, 0.0
        %v2660 = vmax.f32 %v2492, 0.0
        %v2661 = vmax.f32 %v2521, 0.0
        %v2662 = vmax.f32 %v2550, 0.0
        %v2663 = vmax.f32 %v2579, 0.0
        %v2664 = vmax.f32 %v2608, 0.0
        %v2665 = vmax.f32 %v2637, 0.0
        %v2666 = vmax.f32 %v2437, 0.0
        %v2667 = vmax.f32 %v2466, 0.0
        %v2668 = vmax.f32 %v2495, 0.0
        %v2669 = vmax.f32 %v2524, 0.0
        %v2670 = vmax.f32 %v2553, 0.0
        %v2671 = vmax.f32 %v2582, 0.0
        %v2672 = vmax.f32 %v2611, 0.0
        %v2673 = vmax.f32 %v2640, 0.0
        %v2674 = vld [vmem:[%s2 + $0x140] sm:$0xff]
        %v2675 = vld [vmem:[%s2 + $0x148] sm:$0xff]
        %v2676 = vld [vmem:[%s2 + $0x150] sm:$0xff]
        %v2677 = vld [vmem:[%s2 + $0x158] sm:$0xff]
        %2678 = vset.pattern.permute.xlu0 7
        %2679 = vperm.xlu0 %2678, %v2290
        %v2680 = vpop.permute.xlu0 %2679
        %2682 = vset.pattern.permute.xlu0 7
        %2683 = vperm.xlu0 %2682, %v2291
        %v2684 = vpop.permute.xlu0 %2683
        %2686 = vset.pattern.permute.xlu0 7
        %2687 = vperm.xlu0 %2686, %v2292
        %v2688 = vpop.permute.xlu0 %2687
        %2690 = vset.pattern.permute.xlu0 7
        %2691 = vperm.xlu0 %2690, %v2293
        %v2692 = vpop.permute.xlu0 %2691
        %v2695 = vsel %vm598, %v2674, 0
        %v2698 = vsel %vm598, %v2675, 0
        %v2701 = vsel %vm598, %v2676, 0
        %v2704 = vsel %vm598, %v2677, 0
        %2706 = vmatpush.msra.mxu0 0.0
        %2707 = vmatpush.msra.mxu0 0.0
        %2708 = vmatpush.msra.mxu0 0.0
        %2709 = vmatpush.msra.mxu0 0.0
        %2710 = vmatpush.msra.mxu0 0.0
        %2711 = vmatpush.msra.mxu0 0.0
        %2712 = vmatpush.msra.mxu0 0.0
        %2713 = vmatpush.msra.mxu0 0.0
        %2714 = vmatpush.msra.mxu0 0.0
        %2715 = vmatpush.msra.mxu0 0.0
        %2716 = vmatpush.msra.mxu0 0.0
        %2717 = vmatpush.msra.mxu0 0.0
        %2718 = vmatpush.msra.mxu0 %v2666
        %2719 = vmatpush.msra.mxu0 %v2658
        %2720 = vmatpush.msra.mxu0 %v2650
        %2721 = vmatpush.msra.mxu0 %v2642
        %2722 = vmatmul.f32.gmra.mxu0 %v2695
        %v2723 = vpop.f32.mrf.mxu0
        %v2724 = vadd.f32 %v2680, %v2723
        %2725 = vmatmul.f32.gmra.mxu0 %v2698
        %v2726 = vpop.f32.mrf.mxu0
        %v2727 = vadd.f32 %v2684, %v2726
        %2728 = vmatmul.f32.gmra.mxu0 %v2701
        %v2729 = vpop.f32.mrf.mxu0
        %v2730 = vadd.f32 %v2688, %v2729
        %2731 = vmatmul.f32.gmra.mxu0 %v2704
        %v2732 = vpop.f32.mrf.mxu0
        %v2733 = vadd.f32 %v2692, %v2732
        %2734 = vdwg.mxu0
        %2735 = vmatpush.msra.mxu0 0.0
        %2736 = vmatpush.msra.mxu0 0.0
        %2737 = vmatpush.msra.mxu0 0.0
        %2738 = vmatpush.msra.mxu0 0.0
        %2739 = vmatpush.msra.mxu0 0.0
        %2740 = vmatpush.msra.mxu0 0.0
        %2741 = vmatpush.msra.mxu0 0.0
        %2742 = vmatpush.msra.mxu0 0.0
        %2743 = vmatpush.msra.mxu0 0.0
        %2744 = vmatpush.msra.mxu0 0.0
        %2745 = vmatpush.msra.mxu0 0.0
        %2746 = vmatpush.msra.mxu0 0.0
        %2747 = vmatpush.msra.mxu0 %v2667
        %2748 = vmatpush.msra.mxu0 %v2659
        %2749 = vmatpush.msra.mxu0 %v2651
        %2750 = vmatpush.msra.mxu0 %v2643
        %2751 = vmatmul.f32.gmra.mxu0 %v2695
        %v2752 = vpop.f32.mrf.mxu0
        %v2753 = vadd.f32 %v2680, %v2752
        %2754 = vmatmul.f32.gmra.mxu0 %v2698
        %v2755 = vpop.f32.mrf.mxu0
        %v2756 = vadd.f32 %v2684, %v2755
        %2757 = vmatmul.f32.gmra.mxu0 %v2701
        %v2758 = vpop.f32.mrf.mxu0
        %v2759 = vadd.f32 %v2688, %v2758
        %2760 = vmatmul.f32.gmra.mxu0 %v2704
        %v2761 = vpop.f32.mrf.mxu0
        %v2762 = vadd.f32 %v2692, %v2761
        %2763 = vdwg.mxu0
        %2764 = vmatpush.msra.mxu0 0.0
        %2765 = vmatpush.msra.mxu0 0.0
        %2766 = vmatpush.msra.mxu0 0.0
        %2767 = vmatpush.msra.mxu0 0.0
        %2768 = vmatpush.msra.mxu0 0.0
        %2769 = vmatpush.msra.mxu0 0.0
        %2770 = vmatpush.msra.mxu0 0.0
        %2771 = vmatpush.msra.mxu0 0.0
        %2772 = vmatpush.msra.mxu0 0.0
        %2773 = vmatpush.msra.mxu0 0.0
        %2774 = vmatpush.msra.mxu0 0.0
        %2775 = vmatpush.msra.mxu0 0.0
        %2776 = vmatpush.msra.mxu0 %v2668
        %2777 = vmatpush.msra.mxu0 %v2660
        %2778 = vmatpush.msra.mxu0 %v2652
        %2779 = vmatpush.msra.mxu0 %v2644
        %2780 = vmatmul.f32.gmra.mxu0 %v2695
        %v2781 = vpop.f32.mrf.mxu0
        %v2782 = vadd.f32 %v2680, %v2781
        %2783 = vmatmul.f32.gmra.mxu0 %v2698
        %v2784 = vpop.f32.mrf.mxu0
        %v2785 = vadd.f32 %v2684, %v2784
        %2786 = vmatmul.f32.gmra.mxu0 %v2701
        %v2787 = vpop.f32.mrf.mxu0
        %v2788 = vadd.f32 %v2688, %v2787
        %2789 = vmatmul.f32.gmra.mxu0 %v2704
        %v2790 = vpop.f32.mrf.mxu0
        %v2791 = vadd.f32 %v2692, %v2790
        %2792 = vdwg.mxu0
        %2793 = vmatpush.msra.mxu0 0.0
        %2794 = vmatpush.msra.mxu0 0.0
        %2795 = vmatpush.msra.mxu0 0.0
        %2796 = vmatpush.msra.mxu0 0.0
        %2797 = vmatpush.msra.mxu0 0.0
        %2798 = vmatpush.msra.mxu0 0.0
        %2799 = vmatpush.msra.mxu0 0.0
        %2800 = vmatpush.msra.mxu0 0.0
        %2801 = vmatpush.msra.mxu0 0.0
        %2802 = vmatpush.msra.mxu0 0.0
        %2803 = vmatpush.msra.mxu0 0.0
        %2804 = vmatpush.msra.mxu0 0.0
        %2805 = vmatpush.msra.mxu0 %v2669
        %2806 = vmatpush.msra.mxu0 %v2661
        %2807 = vmatpush.msra.mxu0 %v2653
        %2808 = vmatpush.msra.mxu0 %v2645
        %2809 = vmatmul.f32.gmra.mxu0 %v2695
        %v2810 = vpop.f32.mrf.mxu0
        %v2811 = vadd.f32 %v2680, %v2810
        %2812 = vmatmul.f32.gmra.mxu0 %v2698
        %v2813 = vpop.f32.mrf.mxu0
        %v2814 = vadd.f32 %v2684, %v2813
        %2815 = vmatmul.f32.gmra.mxu0 %v2701
        %v2816 = vpop.f32.mrf.mxu0
        %v2817 = vadd.f32 %v2688, %v2816
        %2818 = vmatmul.f32.gmra.mxu0 %v2704
        %v2819 = vpop.f32.mrf.mxu0
        %v2820 = vadd.f32 %v2692, %v2819
        %2821 = vdwg.mxu0
        %2822 = vmatpush.msra.mxu0 0.0
        %2823 = vmatpush.msra.mxu0 0.0
        %2824 = vmatpush.msra.mxu0 0.0
        %2825 = vmatpush.msra.mxu0 0.0
        %2826 = vmatpush.msra.mxu0 0.0
        %2827 = vmatpush.msra.mxu0 0.0
        %2828 = vmatpush.msra.mxu0 0.0
        %2829 = vmatpush.msra.mxu0 0.0
        %2830 = vmatpush.msra.mxu0 0.0
        %2831 = vmatpush.msra.mxu0 0.0
        %2832 = vmatpush.msra.mxu0 0.0
        %2833 = vmatpush.msra.mxu0 0.0
        %2834 = vmatpush.msra.mxu0 %v2670
        %2835 = vmatpush.msra.mxu0 %v2662
        %2836 = vmatpush.msra.mxu0 %v2654
        %2837 = vmatpush.msra.mxu0 %v2646
        %2838 = vmatmul.f32.gmra.mxu0 %v2695
        %v2839 = vpop.f32.mrf.mxu0
        %v2840 = vadd.f32 %v2680, %v2839
        %2841 = vmatmul.f32.gmra.mxu0 %v2698
        %v2842 = vpop.f32.mrf.mxu0
        %v2843 = vadd.f32 %v2684, %v2842
        %2844 = vmatmul.f32.gmra.mxu0 %v2701
        %v2845 = vpop.f32.mrf.mxu0
        %v2846 = vadd.f32 %v2688, %v2845
        %2847 = vmatmul.f32.gmra.mxu0 %v2704
        %v2848 = vpop.f32.mrf.mxu0
        %v2849 = vadd.f32 %v2692, %v2848
        %2850 = vdwg.mxu0
        %2851 = vmatpush.msra.mxu0 0.0
        %2852 = vmatpush.msra.mxu0 0.0
        %2853 = vmatpush.msra.mxu0 0.0
        %2854 = vmatpush.msra.mxu0 0.0
        %2855 = vmatpush.msra.mxu0 0.0
        %2856 = vmatpush.msra.mxu0 0.0
        %2857 = vmatpush.msra.mxu0 0.0
        %2858 = vmatpush.msra.mxu0 0.0
        %2859 = vmatpush.msra.mxu0 0.0
        %2860 = vmatpush.msra.mxu0 0.0
        %2861 = vmatpush.msra.mxu0 0.0
        %2862 = vmatpush.msra.mxu0 0.0
        %2863 = vmatpush.msra.mxu0 %v2671
        %2864 = vmatpush.msra.mxu0 %v2663
        %2865 = vmatpush.msra.mxu0 %v2655
        %2866 = vmatpush.msra.mxu0 %v2647
        %2867 = vmatmul.f32.gmra.mxu0 %v2695
        %v2868 = vpop.f32.mrf.mxu0
        %v2869 = vadd.f32 %v2680, %v2868
        %2870 = vmatmul.f32.gmra.mxu0 %v2698
        %v2871 = vpop.f32.mrf.mxu0
        %v2872 = vadd.f32 %v2684, %v2871
        %2873 = vmatmul.f32.gmra.mxu0 %v2701
        %v2874 = vpop.f32.mrf.mxu0
        %v2875 = vadd.f32 %v2688, %v2874
        %2876 = vmatmul.f32.gmra.mxu0 %v2704
        %v2877 = vpop.f32.mrf.mxu0
        %v2878 = vadd.f32 %v2692, %v2877
        %2879 = vdwg.mxu0
        %2880 = vmatpush.msra.mxu0 0.0
        %2881 = vmatpush.msra.mxu0 0.0
        %2882 = vmatpush.msra.mxu0 0.0
        %2883 = vmatpush.msra.mxu0 0.0
        %2884 = vmatpush.msra.mxu0 0.0
        %2885 = vmatpush.msra.mxu0 0.0
        %2886 = vmatpush.msra.mxu0 0.0
        %2887 = vmatpush.msra.mxu0 0.0
        %2888 = vmatpush.msra.mxu0 0.0
        %2889 = vmatpush.msra.mxu0 0.0
        %2890 = vmatpush.msra.mxu0 0.0
        %2891 = vmatpush.msra.mxu0 0.0
        %2892 = vmatpush.msra.mxu0 %v2672
        %2893 = vmatpush.msra.mxu0 %v2664
        %2894 = vmatpush.msra.mxu0 %v2656
        %2895 = vmatpush.msra.mxu0 %v2648
        %2896 = vmatmul.f32.gmra.mxu0 %v2695
        %v2897 = vpop.f32.mrf.mxu0
        %v2898 = vadd.f32 %v2680, %v2897
        %2899 = vmatmul.f32.gmra.mxu0 %v2698
        %v2900 = vpop.f32.mrf.mxu0
        %v2901 = vadd.f32 %v2684, %v2900
        %2902 = vmatmul.f32.gmra.mxu0 %v2701
        %v2903 = vpop.f32.mrf.mxu0
        %v2904 = vadd.f32 %v2688, %v2903
        %2905 = vmatmul.f32.gmra.mxu0 %v2704
        %v2906 = vpop.f32.mrf.mxu0
        %v2907 = vadd.f32 %v2692, %v2906
        %2908 = vdwg.mxu0
        %2909 = vmatpush.msra.mxu0 0.0
        %2910 = vmatpush.msra.mxu0 0.0
        %2911 = vmatpush.msra.mxu0 0.0
        %2912 = vmatpush.msra.mxu0 0.0
        %2913 = vmatpush.msra.mxu0 0.0
        %2914 = vmatpush.msra.mxu0 0.0
        %2915 = vmatpush.msra.mxu0 0.0
        %2916 = vmatpush.msra.mxu0 0.0
        %2917 = vmatpush.msra.mxu0 0.0
        %2918 = vmatpush.msra.mxu0 0.0
        %2919 = vmatpush.msra.mxu0 0.0
        %2920 = vmatpush.msra.mxu0 0.0
        %2921 = vmatpush.msra.mxu0 %v2673
        %2922 = vmatpush.msra.mxu0 %v2665
        %2923 = vmatpush.msra.mxu0 %v2657
        %2924 = vmatpush.msra.mxu0 %v2649
        %2925 = vmatmul.f32.gmra.mxu0 %v2695
        %v2926 = vpop.f32.mrf.mxu0
        %v2927 = vadd.f32 %v2680, %v2926
        %2928 = vmatmul.f32.gmra.mxu0 %v2698
        %v2929 = vpop.f32.mrf.mxu0
        %v2930 = vadd.f32 %v2684, %v2929
        %2931 = vmatmul.f32.gmra.mxu0 %v2701
        %v2932 = vpop.f32.mrf.mxu0
        %v2933 = vadd.f32 %v2688, %v2932
        %2934 = vmatmul.f32.gmra.mxu0 %v2704
        %v2935 = vpop.f32.mrf.mxu0
        %v2936 = vadd.f32 %v2692, %v2935
        %2937 = vdwg.mxu0
        %v2938 = vmax.f32 %v2724, 0.0
        %v2939 = vmax.f32 %v2753, 0.0
        %v2940 = vmax.f32 %v2782, 0.0
        %v2941 = vmax.f32 %v2811, 0.0
        %v2942 = vmax.f32 %v2840, 0.0
        %v2943 = vmax.f32 %v2869, 0.0
        %v2944 = vmax.f32 %v2898, 0.0
        %v2945 = vmax.f32 %v2927, 0.0
        %v2946 = vmax.f32 %v2727, 0.0
        %v2947 = vmax.f32 %v2756, 0.0
        %v2948 = vmax.f32 %v2785, 0.0
        %v2949 = vmax.f32 %v2814, 0.0
        %v2950 = vmax.f32 %v2843, 0.0
        %v2951 = vmax.f32 %v2872, 0.0
        %v2952 = vmax.f32 %v2901, 0.0
        %v2953 = vmax.f32 %v2930, 0.0
        %v2954 = vmax.f32 %v2730, 0.0
        %v2955 = vmax.f32 %v2759, 0.0
        %v2956 = vmax.f32 %v2788, 0.0
        %v2957 = vmax.f32 %v2817, 0.0
        %v2958 = vmax.f32 %v2846, 0.0
        %v2959 = vmax.f32 %v2875, 0.0
        %v2960 = vmax.f32 %v2904, 0.0
        %v2961 = vmax.f32 %v2933, 0.0
        %v2962 = vmax.f32 %v2733, 0.0
        %v2963 = vmax.f32 %v2762, 0.0
        %v2964 = vmax.f32 %v2791, 0.0
        %v2965 = vmax.f32 %v2820, 0.0
        %v2966 = vmax.f32 %v2849, 0.0
        %v2967 = vmax.f32 %v2878, 0.0
        %v2968 = vmax.f32 %v2907, 0.0
        %v2969 = vmax.f32 %v2936, 0.0
        %v2970 = vld [vmem:[%s2 + $0x168] sm:$0xff]
        %v2971 = vld [vmem:[%s2 + $0x170] sm:$0xff]
        %v2972 = vld [vmem:[%s2 + $0x178] sm:$0xff]
        %v2973 = vld [vmem:[%s2 + $0x180] sm:$0xff]
        %v2974 = vld [vmem:[%s2 + $0x188] sm:$0x1]
        %v2975 = vld [vmem:[%s3] sm:$0xff]
        %v2976 = vld [vmem:[%s3 + $0x8] sm:$0xff]
        %v2977 = vld [vmem:[%s3 + $0x10] sm:$0xff]
        %v2978 = vld [vmem:[%s3 + $0x18] sm:$0xff]
        %v2979 = vld [vmem:[%s3 + $0x20] sm:$0x1]
        %2981 = vset.pattern.permute.xlu0 8
        %2982 = vperm.xlu0 %2981, %v2975
        %v2983 = vpop.permute.xlu0 %2982
        %2986 = vset.pattern.permute.xlu0 8
        %2987 = vperm.xlu0 %2986, %v2976
        %v2988 = vpop.permute.xlu0 %2987
        %2991 = vset.pattern.permute.xlu0 8
        %2992 = vperm.xlu0 %2991, %v2977
        %v2993 = vpop.permute.xlu0 %2992
        %2996 = vset.pattern.permute.xlu0 8
        %2997 = vperm.xlu0 %2996, %v2978
        %v2998 = vpop.permute.xlu0 %2997
        %3001 = vset.pattern.permute.xlu0 8
        %3002 = vperm.xlu0 %3001, %v2979
        %v3003 = vpop.permute.xlu0 %3002
        %v3006 = vsel %vm598, %v2970, 0
        %v3009 = vsel %vm598, %v2971, 0
        %v3012 = vsel %vm598, %v2972, 0
        %v3015 = vsel %vm598, %v2973, 0
        %v3018 = vsel %vm598, %v2974, 0
        %3020 = vmatpush.msra.mxu0 0.0
        %3021 = vmatpush.msra.mxu0 0.0
        %3022 = vmatpush.msra.mxu0 0.0
        %3023 = vmatpush.msra.mxu0 0.0
        %3024 = vmatpush.msra.mxu0 0.0
        %3025 = vmatpush.msra.mxu0 0.0
        %3026 = vmatpush.msra.mxu0 0.0
        %3027 = vmatpush.msra.mxu0 0.0
        %3028 = vmatpush.msra.mxu0 0.0
        %3029 = vmatpush.msra.mxu0 0.0
        %3030 = vmatpush.msra.mxu0 0.0
        %3031 = vmatpush.msra.mxu0 0.0
        %3032 = vmatpush.msra.mxu0 %v2962
        %3033 = vmatpush.msra.mxu0 %v2954
        %3034 = vmatpush.msra.mxu0 %v2946
        %3035 = vmatpush.msra.mxu0 %v2938
        %3036 = vmatmul.f32.gmra.mxu0 %v3006
        %v3037 = vpop.f32.mrf.mxu0
        %v3038 = vadd.f32 %v2983, %v3037
        %3039 = vmatmul.f32.gmra.mxu0 %v3009
        %v3040 = vpop.f32.mrf.mxu0
        %v3041 = vadd.f32 %v2988, %v3040
        %3042 = vmatmul.f32.gmra.mxu0 %v3012
        %v3043 = vpop.f32.mrf.mxu0
        %v3044 = vadd.f32 %v2993, %v3043
        %3045 = vmatmul.f32.gmra.mxu0 %v3015
        %v3046 = vpop.f32.mrf.mxu0
        %v3047 = vadd.f32 %v2998, %v3046
        %3048 = vmatmul.f32.gmra.mxu0 %v3018
        %v3049 = vpop.f32.mrf.mxu0
        %v3050 = vadd.f32 %v3003, %v3049
        %3051 = vdwg.mxu0
        %3052 = vmatpush.msra.mxu0 0.0
        %3053 = vmatpush.msra.mxu0 0.0
        %3054 = vmatpush.msra.mxu0 0.0
        %3055 = vmatpush.msra.mxu0 0.0
        %3056 = vmatpush.msra.mxu0 0.0
        %3057 = vmatpush.msra.mxu0 0.0
        %3058 = vmatpush.msra.mxu0 0.0
        %3059 = vmatpush.msra.mxu0 0.0
        %3060 = vmatpush.msra.mxu0 0.0
        %3061 = vmatpush.msra.mxu0 0.0
        %3062 = vmatpush.msra.mxu0 0.0
        %3063 = vmatpush.msra.mxu0 0.0
        %3064 = vmatpush.msra.mxu0 %v2963
        %3065 = vmatpush.msra.mxu0 %v2955
        %3066 = vmatpush.msra.mxu0 %v2947
        %3067 = vmatpush.msra.mxu0 %v2939
        %3068 = vmatmul.f32.gmra.mxu0 %v3006
        %v3069 = vpop.f32.mrf.mxu0
        %v3070 = vadd.f32 %v2983, %v3069
        %3071 = vmatmul.f32.gmra.mxu0 %v3009
        %v3072 = vpop.f32.mrf.mxu0
        %v3073 = vadd.f32 %v2988, %v3072
        %3074 = vmatmul.f32.gmra.mxu0 %v3012
        %v3075 = vpop.f32.mrf.mxu0
        %v3076 = vadd.f32 %v2993, %v3075
        %3077 = vmatmul.f32.gmra.mxu0 %v3015
        %v3078 = vpop.f32.mrf.mxu0
        %v3079 = vadd.f32 %v2998, %v3078
        %3080 = vmatmul.f32.gmra.mxu0 %v3018
        %v3081 = vpop.f32.mrf.mxu0
        %v3082 = vadd.f32 %v3003, %v3081
        %3083 = vdwg.mxu0
        %3084 = vmatpush.msra.mxu0 0.0
        %3085 = vmatpush.msra.mxu0 0.0
        %3086 = vmatpush.msra.mxu0 0.0
        %3087 = vmatpush.msra.mxu0 0.0
        %3088 = vmatpush.msra.mxu0 0.0
        %3089 = vmatpush.msra.mxu0 0.0
        %3090 = vmatpush.msra.mxu0 0.0
        %3091 = vmatpush.msra.mxu0 0.0
        %3092 = vmatpush.msra.mxu0 0.0
        %3093 = vmatpush.msra.mxu0 0.0
        %3094 = vmatpush.msra.mxu0 0.0
        %3095 = vmatpush.msra.mxu0 0.0
        %3096 = vmatpush.msra.mxu0 %v2964
        %3097 = vmatpush.msra.mxu0 %v2956
        %3098 = vmatpush.msra.mxu0 %v2948
        %3099 = vmatpush.msra.mxu0 %v2940
        %3100 = vmatmul.f32.gmra.mxu0 %v3006
        %v3101 = vpop.f32.mrf.mxu0
        %v3102 = vadd.f32 %v2983, %v3101
        %3103 = vmatmul.f32.gmra.mxu0 %v3009
        %v3104 = vpop.f32.mrf.mxu0
        %v3105 = vadd.f32 %v2988, %v3104
        %3106 = vmatmul.f32.gmra.mxu0 %v3012
        %v3107 = vpop.f32.mrf.mxu0
        %v3108 = vadd.f32 %v2993, %v3107
        %3109 = vmatmul.f32.gmra.mxu0 %v3015
        %v3110 = vpop.f32.mrf.mxu0
        %v3111 = vadd.f32 %v2998, %v3110
        %3112 = vmatmul.f32.gmra.mxu0 %v3018
        %v3113 = vpop.f32.mrf.mxu0
        %v3114 = vadd.f32 %v3003, %v3113
        %3115 = vdwg.mxu0
        %3116 = vmatpush.msra.mxu0 0.0
        %3117 = vmatpush.msra.mxu0 0.0
        %3118 = vmatpush.msra.mxu0 0.0
        %3119 = vmatpush.msra.mxu0 0.0
        %3120 = vmatpush.msra.mxu0 0.0
        %3121 = vmatpush.msra.mxu0 0.0
        %3122 = vmatpush.msra.mxu0 0.0
        %3123 = vmatpush.msra.mxu0 0.0
        %3124 = vmatpush.msra.mxu0 0.0
        %3125 = vmatpush.msra.mxu0 0.0
        %3126 = vmatpush.msra.mxu0 0.0
        %3127 = vmatpush.msra.mxu0 0.0
        %3128 = vmatpush.msra.mxu0 %v2965
        %3129 = vmatpush.msra.mxu0 %v2957
        %3130 = vmatpush.msra.mxu0 %v2949
        %3131 = vmatpush.msra.mxu0 %v2941
        %3132 = vmatmul.f32.gmra.mxu0 %v3006
        %v3133 = vpop.f32.mrf.mxu0
        %v3134 = vadd.f32 %v2983, %v3133
        %3135 = vmatmul.f32.gmra.mxu0 %v3009
        %v3136 = vpop.f32.mrf.mxu0
        %v3137 = vadd.f32 %v2988, %v3136
        %3138 = vmatmul.f32.gmra.mxu0 %v3012
        %v3139 = vpop.f32.mrf.mxu0
        %v3140 = vadd.f32 %v2993, %v3139
        %3141 = vmatmul.f32.gmra.mxu0 %v3015
        %v3142 = vpop.f32.mrf.mxu0
        %v3143 = vadd.f32 %v2998, %v3142
        %3144 = vmatmul.f32.gmra.mxu0 %v3018
        %v3145 = vpop.f32.mrf.mxu0
        %v3146 = vadd.f32 %v3003, %v3145
        %3147 = vdwg.mxu0
        %3148 = vmatpush.msra.mxu0 0.0
        %3149 = vmatpush.msra.mxu0 0.0
        %3150 = vmatpush.msra.mxu0 0.0
        %3151 = vmatpush.msra.mxu0 0.0
        %3152 = vmatpush.msra.mxu0 0.0
        %3153 = vmatpush.msra.mxu0 0.0
        %3154 = vmatpush.msra.mxu0 0.0
        %3155 = vmatpush.msra.mxu0 0.0
        %3156 = vmatpush.msra.mxu0 0.0
        %3157 = vmatpush.msra.mxu0 0.0
        %3158 = vmatpush.msra.mxu0 0.0
        %3159 = vmatpush.msra.mxu0 0.0
        %3160 = vmatpush.msra.mxu0 %v2966
        %3161 = vmatpush.msra.mxu0 %v2958
        %3162 = vmatpush.msra.mxu0 %v2950
        %3163 = vmatpush.msra.mxu0 %v2942
        %3164 = vmatmul.f32.gmra.mxu0 %v3006
        %v3165 = vpop.f32.mrf.mxu0
        %v3166 = vadd.f32 %v2983, %v3165
        %3167 = vmatmul.f32.gmra.mxu0 %v3009
        %v3168 = vpop.f32.mrf.mxu0
        %v3169 = vadd.f32 %v2988, %v3168
        %3170 = vmatmul.f32.gmra.mxu0 %v3012
        %v3171 = vpop.f32.mrf.mxu0
        %v3172 = vadd.f32 %v2993, %v3171
        %3173 = vmatmul.f32.gmra.mxu0 %v3015
        %v3174 = vpop.f32.mrf.mxu0
        %v3175 = vadd.f32 %v2998, %v3174
        %3176 = vmatmul.f32.gmra.mxu0 %v3018
        %v3177 = vpop.f32.mrf.mxu0
        %v3178 = vadd.f32 %v3003, %v3177
        %3179 = vdwg.mxu0
        %3180 = vmatpush.msra.mxu0 0.0
        %3181 = vmatpush.msra.mxu0 0.0
        %3182 = vmatpush.msra.mxu0 0.0
        %3183 = vmatpush.msra.mxu0 0.0
        %3184 = vmatpush.msra.mxu0 0.0
        %3185 = vmatpush.msra.mxu0 0.0
        %3186 = vmatpush.msra.mxu0 0.0
        %3187 = vmatpush.msra.mxu0 0.0
        %3188 = vmatpush.msra.mxu0 0.0
        %3189 = vmatpush.msra.mxu0 0.0
        %3190 = vmatpush.msra.mxu0 0.0
        %3191 = vmatpush.msra.mxu0 0.0
        %3192 = vmatpush.msra.mxu0 %v2967
        %3193 = vmatpush.msra.mxu0 %v2959
        %3194 = vmatpush.msra.mxu0 %v2951
        %3195 = vmatpush.msra.mxu0 %v2943
        %3196 = vmatmul.f32.gmra.mxu0 %v3006
        %v3197 = vpop.f32.mrf.mxu0
        %v3198 = vadd.f32 %v2983, %v3197
        %3199 = vmatmul.f32.gmra.mxu0 %v3009
        %v3200 = vpop.f32.mrf.mxu0
        %v3201 = vadd.f32 %v2988, %v3200
        %3202 = vmatmul.f32.gmra.mxu0 %v3012
        %v3203 = vpop.f32.mrf.mxu0
        %v3204 = vadd.f32 %v2993, %v3203
        %3205 = vmatmul.f32.gmra.mxu0 %v3015
        %v3206 = vpop.f32.mrf.mxu0
        %v3207 = vadd.f32 %v2998, %v3206
        %3208 = vmatmul.f32.gmra.mxu0 %v3018
        %v3209 = vpop.f32.mrf.mxu0
        %v3210 = vadd.f32 %v3003, %v3209
        %3211 = vdwg.mxu0
        %3212 = vmatpush.msra.mxu0 0.0
        %3213 = vmatpush.msra.mxu0 0.0
        %3214 = vmatpush.msra.mxu0 0.0
        %3215 = vmatpush.msra.mxu0 0.0
        %3216 = vmatpush.msra.mxu0 0.0
        %3217 = vmatpush.msra.mxu0 0.0
        %3218 = vmatpush.msra.mxu0 0.0
        %3219 = vmatpush.msra.mxu0 0.0
        %3220 = vmatpush.msra.mxu0 0.0
        %3221 = vmatpush.msra.mxu0 0.0
        %3222 = vmatpush.msra.mxu0 0.0
        %3223 = vmatpush.msra.mxu0 0.0
        %3224 = vmatpush.msra.mxu0 %v2968
        %3225 = vmatpush.msra.mxu0 %v2960
        %3226 = vmatpush.msra.mxu0 %v2952
        %3227 = vmatpush.msra.mxu0 %v2944
        %3228 = vmatmul.f32.gmra.mxu0 %v3006
        %v3229 = vpop.f32.mrf.mxu0
        %v3230 = vadd.f32 %v2983, %v3229
        %3231 = vmatmul.f32.gmra.mxu0 %v3009
        %v3232 = vpop.f32.mrf.mxu0
        %v3233 = vadd.f32 %v2988, %v3232
        %3234 = vmatmul.f32.gmra.mxu0 %v3012
        %v3235 = vpop.f32.mrf.mxu0
        %v3236 = vadd.f32 %v2993, %v3235
        %3237 = vmatmul.f32.gmra.mxu0 %v3015
        %v3238 = vpop.f32.mrf.mxu0
        %v3239 = vadd.f32 %v2998, %v3238
        %3240 = vmatmul.f32.gmra.mxu0 %v3018
        %v3241 = vpop.f32.mrf.mxu0
        %v3242 = vadd.f32 %v3003, %v3241
        %3243 = vdwg.mxu0
        %3244 = vmatpush.msra.mxu0 0.0
        %3245 = vmatpush.msra.mxu0 0.0
        %3246 = vmatpush.msra.mxu0 0.0
        %3247 = vmatpush.msra.mxu0 0.0
        %3248 = vmatpush.msra.mxu0 0.0
        %3249 = vmatpush.msra.mxu0 0.0
        %3250 = vmatpush.msra.mxu0 0.0
        %3251 = vmatpush.msra.mxu0 0.0
        %3252 = vmatpush.msra.mxu0 0.0
        %3253 = vmatpush.msra.mxu0 0.0
        %3254 = vmatpush.msra.mxu0 0.0
        %3255 = vmatpush.msra.mxu0 0.0
        %3256 = vmatpush.msra.mxu0 %v2969
        %3257 = vmatpush.msra.mxu0 %v2961
        %3258 = vmatpush.msra.mxu0 %v2953
        %3259 = vmatpush.msra.mxu0 %v2945
        %3260 = vmatmul.f32.gmra.mxu0 %v3006
        %v3261 = vpop.f32.mrf.mxu0
        %v3262 = vadd.f32 %v2983, %v3261
        %3263 = vmatmul.f32.gmra.mxu0 %v3009
        %v3264 = vpop.f32.mrf.mxu0
        %v3265 = vadd.f32 %v2988, %v3264
        %3266 = vmatmul.f32.gmra.mxu0 %v3012
        %v3267 = vpop.f32.mrf.mxu0
        %v3268 = vadd.f32 %v2993, %v3267
        %3269 = vmatmul.f32.gmra.mxu0 %v3015
        %v3270 = vpop.f32.mrf.mxu0
        %v3271 = vadd.f32 %v2998, %v3270
        %3272 = vmatmul.f32.gmra.mxu0 %v3018
        %v3273 = vpop.f32.mrf.mxu0
        %v3274 = vadd.f32 %v3003, %v3273
        %3275 = vdwg.mxu0
        %v3276 = vld [vmem:[%s2 + $0x190] sm:$0xff]
        %v3277 = vld [vmem:[%s2 + $0x198] sm:$0xff]
        %v3278 = vld [vmem:[%s2 + $0x1b8] sm:$0xff]
        %v3279 = vld [vmem:[%s2 + $0x1c0] sm:$0xff]
        %3284 = vst [vmem:[#allocation1] ss:$2 sm:$0xff] %v225
        %s3285 = scalar_lea.vmem [#allocation1], 16
        %3286 = vst [vmem:[%s3285] ss:$2 sm:$0xff] %v226
        %s3287 = scalar_lea.vmem [#allocation1], 32
        %3288 = vst [vmem:[%s3287] ss:$2 sm:$0xff] %v227
        %s3289 = scalar_lea.vmem [#allocation1], 48
        %3290 = vst [vmem:[%s3289] ss:$2 sm:$0xff] %v228
        %v3291 = vld.sshfl [vmem:[#allocation1] sm:$0xff pattern:$0x75316420]
        %v3292 = vld.sshfl [vmem:[#allocation1 + $0x8] sm:$0xff pattern:$0x75316420]
        %v3293 = vld.sshfl [vmem:[#allocation1 + $0x10] sm:$0xff pattern:$0x75316420]
        %v3294 = vld.sshfl [vmem:[#allocation1 + $0x18] sm:$0xff pattern:$0x75316420]
        %v3295 = vld.sshfl [vmem:[#allocation1 + $0x20] sm:$0xff pattern:$0x75316420]
        %v3296 = vld.sshfl [vmem:[#allocation1 + $0x28] sm:$0xff pattern:$0x75316420]
        %v3297 = vld.sshfl [vmem:[#allocation1 + $0x30] sm:$0xff pattern:$0x75316420]
        %v3298 = vld.sshfl [vmem:[#allocation1 + $0x38] sm:$0xff pattern:$0x75316420]
        %v3300 = vsel %vm276, %v3278, 0
        %v3303 = vsel %vm276, %v3279, 0
        %v3305 = vsel %vm289, %v3291, 0
        %v3307 = vsel %vm289, %v3292, 0
        %v3309 = vsel %vm289, %v3293, 0
        %v3311 = vsel %vm289, %v3294, 0
        %v3313 = vsel %vm289, %v3295, 0
        %v3315 = vsel %vm289, %v3296, 0
        %v3317 = vsel %vm289, %v3297, 0
        %v3319 = vsel %vm289, %v3298, 0
        %3321 = vmatpush.msra.mxu0 0.0
        %3322 = vmatpush.msra.mxu0 0.0
        %3323 = vmatpush.msra.mxu0 0.0
        %3324 = vmatpush.msra.mxu0 0.0
        %3325 = vmatpush.msra.mxu0 0.0
        %3326 = vmatpush.msra.mxu0 0.0
        %3327 = vmatpush.msra.mxu0 0.0
        %3328 = vmatpush.msra.mxu0 0.0
        %3329 = vmatpush.msra.mxu0 0.0
        %3330 = vmatpush.msra.mxu0 0.0
        %3331 = vmatpush.msra.mxu0 0.0
        %3332 = vmatpush.msra.mxu0 0.0
        %3333 = vmatpush.msra.mxu0 0.0
        %3334 = vmatpush.msra.mxu0 0.0
        %3335 = vmatpush.msra.mxu0 0.0
        %3336 = vmatpush.msra.mxu0 %v3305
        %3337 = vmatmul.f32.gmra.mxu0 %v3300
        %v3338 = vpop.f32.mrf.mxu0
        %v3339 = vadd.f32 0.0, %v3338
        %3340 = vmatmul.f32.gmra.mxu0 %v3303
        %v3341 = vpop.f32.mrf.mxu0
        %v3342 = vadd.f32 0.0, %v3341
        %3343 = vdwg.mxu0
        %3344 = vmatpush.msra.mxu0 0.0
        %3345 = vmatpush.msra.mxu0 0.0
        %3346 = vmatpush.msra.mxu0 0.0
        %3347 = vmatpush.msra.mxu0 0.0
        %3348 = vmatpush.msra.mxu0 0.0
        %3349 = vmatpush.msra.mxu0 0.0
        %3350 = vmatpush.msra.mxu0 0.0
        %3351 = vmatpush.msra.mxu0 0.0
        %3352 = vmatpush.msra.mxu0 0.0
        %3353 = vmatpush.msra.mxu0 0.0
        %3354 = vmatpush.msra.mxu0 0.0
        %3355 = vmatpush.msra.mxu0 0.0
        %3356 = vmatpush.msra.mxu0 0.0
        %3357 = vmatpush.msra.mxu0 0.0
        %3358 = vmatpush.msra.mxu0 0.0
        %3359 = vmatpush.msra.mxu0 %v3307
        %3360 = vmatmul.f32.gmra.mxu0 %v3300
        %v3361 = vpop.f32.mrf.mxu0
        %v3362 = vadd.f32 0.0, %v3361
        %3363 = vmatmul.f32.gmra.mxu0 %v3303
        %v3364 = vpop.f32.mrf.mxu0
        %v3365 = vadd.f32 0.0, %v3364
        %3366 = vdwg.mxu0
        %3367 = vmatpush.msra.mxu0 0.0
        %3368 = vmatpush.msra.mxu0 0.0
        %3369 = vmatpush.msra.mxu0 0.0
        %3370 = vmatpush.msra.mxu0 0.0
        %3371 = vmatpush.msra.mxu0 0.0
        %3372 = vmatpush.msra.mxu0 0.0
        %3373 = vmatpush.msra.mxu0 0.0
        %3374 = vmatpush.msra.mxu0 0.0
        %3375 = vmatpush.msra.mxu0 0.0
        %3376 = vmatpush.msra.mxu0 0.0
        %3377 = vmatpush.msra.mxu0 0.0
        %3378 = vmatpush.msra.mxu0 0.0
        %3379 = vmatpush.msra.mxu0 0.0
        %3380 = vmatpush.msra.mxu0 0.0
        %3381 = vmatpush.msra.mxu0 0.0
        %3382 = vmatpush.msra.mxu0 %v3309
        %3383 = vmatmul.f32.gmra.mxu0 %v3300
        %v3384 = vpop.f32.mrf.mxu0
        %v3385 = vadd.f32 0.0, %v3384
        %3386 = vmatmul.f32.gmra.mxu0 %v3303
        %v3387 = vpop.f32.mrf.mxu0
        %v3388 = vadd.f32 0.0, %v3387
        %3389 = vdwg.mxu0
        %3390 = vmatpush.msra.mxu0 0.0
        %3391 = vmatpush.msra.mxu0 0.0
        %3392 = vmatpush.msra.mxu0 0.0
        %3393 = vmatpush.msra.mxu0 0.0
        %3394 = vmatpush.msra.mxu0 0.0
        %3395 = vmatpush.msra.mxu0 0.0
        %3396 = vmatpush.msra.mxu0 0.0
        %3397 = vmatpush.msra.mxu0 0.0
        %3398 = vmatpush.msra.mxu0 0.0
        %3399 = vmatpush.msra.mxu0 0.0
        %3400 = vmatpush.msra.mxu0 0.0
        %3401 = vmatpush.msra.mxu0 0.0
        %3402 = vmatpush.msra.mxu0 0.0
        %3403 = vmatpush.msra.mxu0 0.0
        %3404 = vmatpush.msra.mxu0 0.0
        %3405 = vmatpush.msra.mxu0 %v3311
        %3406 = vmatmul.f32.gmra.mxu0 %v3300
        %v3407 = vpop.f32.mrf.mxu0
        %v3408 = vadd.f32 0.0, %v3407
        %3409 = vmatmul.f32.gmra.mxu0 %v3303
        %v3410 = vpop.f32.mrf.mxu0
        %v3411 = vadd.f32 0.0, %v3410
        %3412 = vdwg.mxu0
        %3413 = vmatpush.msra.mxu0 0.0
        %3414 = vmatpush.msra.mxu0 0.0
        %3415 = vmatpush.msra.mxu0 0.0
        %3416 = vmatpush.msra.mxu0 0.0
        %3417 = vmatpush.msra.mxu0 0.0
        %3418 = vmatpush.msra.mxu0 0.0
        %3419 = vmatpush.msra.mxu0 0.0
        %3420 = vmatpush.msra.mxu0 0.0
        %3421 = vmatpush.msra.mxu0 0.0
        %3422 = vmatpush.msra.mxu0 0.0
        %3423 = vmatpush.msra.mxu0 0.0
        %3424 = vmatpush.msra.mxu0 0.0
        %3425 = vmatpush.msra.mxu0 0.0
        %3426 = vmatpush.msra.mxu0 0.0
        %3427 = vmatpush.msra.mxu0 0.0
        %3428 = vmatpush.msra.mxu0 %v3313
        %3429 = vmatmul.f32.gmra.mxu0 %v3300
        %v3430 = vpop.f32.mrf.mxu0
        %v3431 = vadd.f32 0.0, %v3430
        %3432 = vmatmul.f32.gmra.mxu0 %v3303
        %v3433 = vpop.f32.mrf.mxu0
        %v3434 = vadd.f32 0.0, %v3433
        %3435 = vdwg.mxu0
        %3436 = vmatpush.msra.mxu0 0.0
        %3437 = vmatpush.msra.mxu0 0.0
        %3438 = vmatpush.msra.mxu0 0.0
        %3439 = vmatpush.msra.mxu0 0.0
        %3440 = vmatpush.msra.mxu0 0.0
        %3441 = vmatpush.msra.mxu0 0.0
        %3442 = vmatpush.msra.mxu0 0.0
        %3443 = vmatpush.msra.mxu0 0.0
        %3444 = vmatpush.msra.mxu0 0.0
        %3445 = vmatpush.msra.mxu0 0.0
        %3446 = vmatpush.msra.mxu0 0.0
        %3447 = vmatpush.msra.mxu0 0.0
        %3448 = vmatpush.msra.mxu0 0.0
        %3449 = vmatpush.msra.mxu0 0.0
        %3450 = vmatpush.msra.mxu0 0.0
        %3451 = vmatpush.msra.mxu0 %v3315
        %3452 = vmatmul.f32.gmra.mxu0 %v3300
        %v3453 = vpop.f32.mrf.mxu0
        %v3454 = vadd.f32 0.0, %v3453
        %3455 = vmatmul.f32.gmra.mxu0 %v3303
        %v3456 = vpop.f32.mrf.mxu0
        %v3457 = vadd.f32 0.0, %v3456
        %3458 = vdwg.mxu0
        %3459 = vmatpush.msra.mxu0 0.0
        %3460 = vmatpush.msra.mxu0 0.0
        %3461 = vmatpush.msra.mxu0 0.0
        %3462 = vmatpush.msra.mxu0 0.0
        %3463 = vmatpush.msra.mxu0 0.0
        %3464 = vmatpush.msra.mxu0 0.0
        %3465 = vmatpush.msra.mxu0 0.0
        %3466 = vmatpush.msra.mxu0 0.0
        %3467 = vmatpush.msra.mxu0 0.0
        %3468 = vmatpush.msra.mxu0 0.0
        %3469 = vmatpush.msra.mxu0 0.0
        %3470 = vmatpush.msra.mxu0 0.0
        %3471 = vmatpush.msra.mxu0 0.0
        %3472 = vmatpush.msra.mxu0 0.0
        %3473 = vmatpush.msra.mxu0 0.0
        %3474 = vmatpush.msra.mxu0 %v3317
        %3475 = vmatmul.f32.gmra.mxu0 %v3300
        %v3476 = vpop.f32.mrf.mxu0
        %v3477 = vadd.f32 0.0, %v3476
        %3478 = vmatmul.f32.gmra.mxu0 %v3303
        %v3479 = vpop.f32.mrf.mxu0
        %v3480 = vadd.f32 0.0, %v3479
        %3481 = vdwg.mxu0
        %3482 = vmatpush.msra.mxu0 0.0
        %3483 = vmatpush.msra.mxu0 0.0
        %3484 = vmatpush.msra.mxu0 0.0
        %3485 = vmatpush.msra.mxu0 0.0
        %3486 = vmatpush.msra.mxu0 0.0
        %3487 = vmatpush.msra.mxu0 0.0
        %3488 = vmatpush.msra.mxu0 0.0
        %3489 = vmatpush.msra.mxu0 0.0
        %3490 = vmatpush.msra.mxu0 0.0
        %3491 = vmatpush.msra.mxu0 0.0
        %3492 = vmatpush.msra.mxu0 0.0
        %3493 = vmatpush.msra.mxu0 0.0
        %3494 = vmatpush.msra.mxu0 0.0
        %3495 = vmatpush.msra.mxu0 0.0
        %3496 = vmatpush.msra.mxu0 0.0
        %3497 = vmatpush.msra.mxu0 %v3319
        %3498 = vmatmul.f32.gmra.mxu0 %v3300
        %v3499 = vpop.f32.mrf.mxu0
        %v3500 = vadd.f32 0.0, %v3499
        %3501 = vmatmul.f32.gmra.mxu0 %v3303
        %v3502 = vpop.f32.mrf.mxu0
        %v3503 = vadd.f32 0.0, %v3502
        %3504 = vdwg.mxu0
        %v3506 = vsel %vm598, %v3276, 0
        %v3509 = vsel %vm598, %v3277, 0
        %3511 = vmatpush.msra.mxu0 0.0
        %3512 = vmatpush.msra.mxu0 0.0
        %3513 = vmatpush.msra.mxu0 0.0
        %3514 = vmatpush.msra.mxu0 0.0
        %3515 = vmatpush.msra.mxu0 0.0
        %3516 = vmatpush.msra.mxu0 0.0
        %3517 = vmatpush.msra.mxu0 0.0
        %3518 = vmatpush.msra.mxu0 0.0
        %3519 = vmatpush.msra.mxu0 0.0
        %3520 = vmatpush.msra.mxu0 0.0
        %3521 = vmatpush.msra.mxu0 0.0
        %3522 = vmatpush.msra.mxu0 0.0
        %3523 = vmatpush.msra.mxu0 %v3047
        %3524 = vmatpush.msra.mxu0 %v3044
        %3525 = vmatpush.msra.mxu0 %v3041
        %3526 = vmatpush.msra.mxu0 %v3038
        %3527 = vmatmul.f32.gmra.mxu0 %v3506
        %v3528 = vpop.f32.mrf.mxu0
        %v3529 = vadd.f32 %v3339, %v3528
        %3530 = vmatmul.f32.gmra.mxu0 %v3509
        %v3531 = vpop.f32.mrf.mxu0
        %v3532 = vadd.f32 %v3342, %v3531
        %3533 = vdwg.mxu0
        %3534 = vmatpush.msra.mxu0 0.0
        %3535 = vmatpush.msra.mxu0 0.0
        %3536 = vmatpush.msra.mxu0 0.0
        %3537 = vmatpush.msra.mxu0 0.0
        %3538 = vmatpush.msra.mxu0 0.0
        %3539 = vmatpush.msra.mxu0 0.0
        %3540 = vmatpush.msra.mxu0 0.0
        %3541 = vmatpush.msra.mxu0 0.0
        %3542 = vmatpush.msra.mxu0 0.0
        %3543 = vmatpush.msra.mxu0 0.0
        %3544 = vmatpush.msra.mxu0 0.0
        %3545 = vmatpush.msra.mxu0 0.0
        %3546 = vmatpush.msra.mxu0 %v3079
        %3547 = vmatpush.msra.mxu0 %v3076
        %3548 = vmatpush.msra.mxu0 %v3073
        %3549 = vmatpush.msra.mxu0 %v3070
        %3550 = vmatmul.f32.gmra.mxu0 %v3506
        %v3551 = vpop.f32.mrf.mxu0
        %v3552 = vadd.f32 %v3362, %v3551
        %3553 = vmatmul.f32.gmra.mxu0 %v3509
        %v3554 = vpop.f32.mrf.mxu0
        %v3555 = vadd.f32 %v3365, %v3554
        %3556 = vdwg.mxu0
        %3557 = vmatpush.msra.mxu0 0.0
        %3558 = vmatpush.msra.mxu0 0.0
        %3559 = vmatpush.msra.mxu0 0.0
        %3560 = vmatpush.msra.mxu0 0.0
        %3561 = vmatpush.msra.mxu0 0.0
        %3562 = vmatpush.msra.mxu0 0.0
        %3563 = vmatpush.msra.mxu0 0.0
        %3564 = vmatpush.msra.mxu0 0.0
        %3565 = vmatpush.msra.mxu0 0.0
        %3566 = vmatpush.msra.mxu0 0.0
        %3567 = vmatpush.msra.mxu0 0.0
        %3568 = vmatpush.msra.mxu0 0.0
        %3569 = vmatpush.msra.mxu0 %v3111
        %3570 = vmatpush.msra.mxu0 %v3108
        %3571 = vmatpush.msra.mxu0 %v3105
        %3572 = vmatpush.msra.mxu0 %v3102
        %3573 = vmatmul.f32.gmra.mxu0 %v3506
        %v3574 = vpop.f32.mrf.mxu0
        %v3575 = vadd.f32 %v3385, %v3574
        %3576 = vmatmul.f32.gmra.mxu0 %v3509
        %v3577 = vpop.f32.mrf.mxu0
        %v3578 = vadd.f32 %v3388, %v3577
        %3579 = vdwg.mxu0
        %3580 = vmatpush.msra.mxu0 0.0
        %3581 = vmatpush.msra.mxu0 0.0
        %3582 = vmatpush.msra.mxu0 0.0
        %3583 = vmatpush.msra.mxu0 0.0
        %3584 = vmatpush.msra.mxu0 0.0
        %3585 = vmatpush.msra.mxu0 0.0
        %3586 = vmatpush.msra.mxu0 0.0
        %3587 = vmatpush.msra.mxu0 0.0
        %3588 = vmatpush.msra.mxu0 0.0
        %3589 = vmatpush.msra.mxu0 0.0
        %3590 = vmatpush.msra.mxu0 0.0
        %3591 = vmatpush.msra.mxu0 0.0
        %3592 = vmatpush.msra.mxu0 %v3143
        %3593 = vmatpush.msra.mxu0 %v3140
        %3594 = vmatpush.msra.mxu0 %v3137
        %3595 = vmatpush.msra.mxu0 %v3134
        %3596 = vmatmul.f32.gmra.mxu0 %v3506
        %v3597 = vpop.f32.mrf.mxu0
        %v3598 = vadd.f32 %v3408, %v3597
        %3599 = vmatmul.f32.gmra.mxu0 %v3509
        %v3600 = vpop.f32.mrf.mxu0
        %v3601 = vadd.f32 %v3411, %v3600
        %3602 = vdwg.mxu0
        %3603 = vmatpush.msra.mxu0 0.0
        %3604 = vmatpush.msra.mxu0 0.0
        %3605 = vmatpush.msra.mxu0 0.0
        %3606 = vmatpush.msra.mxu0 0.0
        %3607 = vmatpush.msra.mxu0 0.0
        %3608 = vmatpush.msra.mxu0 0.0
        %3609 = vmatpush.msra.mxu0 0.0
        %3610 = vmatpush.msra.mxu0 0.0
        %3611 = vmatpush.msra.mxu0 0.0
        %3612 = vmatpush.msra.mxu0 0.0
        %3613 = vmatpush.msra.mxu0 0.0
        %3614 = vmatpush.msra.mxu0 0.0
        %3615 = vmatpush.msra.mxu0 %v3175
        %3616 = vmatpush.msra.mxu0 %v3172
        %3617 = vmatpush.msra.mxu0 %v3169
        %3618 = vmatpush.msra.mxu0 %v3166
        %3619 = vmatmul.f32.gmra.mxu0 %v3506
        %v3620 = vpop.f32.mrf.mxu0
        %v3621 = vadd.f32 %v3431, %v3620
        %3622 = vmatmul.f32.gmra.mxu0 %v3509
        %v3623 = vpop.f32.mrf.mxu0
        %v3624 = vadd.f32 %v3434, %v3623
        %3625 = vdwg.mxu0
        %3626 = vmatpush.msra.mxu0 0.0
        %3627 = vmatpush.msra.mxu0 0.0
        %3628 = vmatpush.msra.mxu0 0.0
        %3629 = vmatpush.msra.mxu0 0.0
        %3630 = vmatpush.msra.mxu0 0.0
        %3631 = vmatpush.msra.mxu0 0.0
        %3632 = vmatpush.msra.mxu0 0.0
        %3633 = vmatpush.msra.mxu0 0.0
        %3634 = vmatpush.msra.mxu0 0.0
        %3635 = vmatpush.msra.mxu0 0.0
        %3636 = vmatpush.msra.mxu0 0.0
        %3637 = vmatpush.msra.mxu0 0.0
        %3638 = vmatpush.msra.mxu0 %v3207
        %3639 = vmatpush.msra.mxu0 %v3204
        %3640 = vmatpush.msra.mxu0 %v3201
        %3641 = vmatpush.msra.mxu0 %v3198
        %3642 = vmatmul.f32.gmra.mxu0 %v3506
        %v3643 = vpop.f32.mrf.mxu0
        %v3644 = vadd.f32 %v3454, %v3643
        %3645 = vmatmul.f32.gmra.mxu0 %v3509
        %v3646 = vpop.f32.mrf.mxu0
        %v3647 = vadd.f32 %v3457, %v3646
        %3648 = vdwg.mxu0
        %3649 = vmatpush.msra.mxu0 0.0
        %3650 = vmatpush.msra.mxu0 0.0
        %3651 = vmatpush.msra.mxu0 0.0
        %3652 = vmatpush.msra.mxu0 0.0
        %3653 = vmatpush.msra.mxu0 0.0
        %3654 = vmatpush.msra.mxu0 0.0
        %3655 = vmatpush.msra.mxu0 0.0
        %3656 = vmatpush.msra.mxu0 0.0
        %3657 = vmatpush.msra.mxu0 0.0
        %3658 = vmatpush.msra.mxu0 0.0
        %3659 = vmatpush.msra.mxu0 0.0
        %3660 = vmatpush.msra.mxu0 0.0
        %3661 = vmatpush.msra.mxu0 %v3239
        %3662 = vmatpush.msra.mxu0 %v3236
        %3663 = vmatpush.msra.mxu0 %v3233
        %3664 = vmatpush.msra.mxu0 %v3230
        %3665 = vmatmul.f32.gmra.mxu0 %v3506
        %v3666 = vpop.f32.mrf.mxu0
        %v3667 = vadd.f32 %v3477, %v3666
        %3668 = vmatmul.f32.gmra.mxu0 %v3509
        %v3669 = vpop.f32.mrf.mxu0
        %v3670 = vadd.f32 %v3480, %v3669
        %3671 = vdwg.mxu0
        %3672 = vmatpush.msra.mxu0 0.0
        %3673 = vmatpush.msra.mxu0 0.0
        %3674 = vmatpush.msra.mxu0 0.0
        %3675 = vmatpush.msra.mxu0 0.0
        %3676 = vmatpush.msra.mxu0 0.0
        %3677 = vmatpush.msra.mxu0 0.0
        %3678 = vmatpush.msra.mxu0 0.0
        %3679 = vmatpush.msra.mxu0 0.0
        %3680 = vmatpush.msra.mxu0 0.0
        %3681 = vmatpush.msra.mxu0 0.0
        %3682 = vmatpush.msra.mxu0 0.0
        %3683 = vmatpush.msra.mxu0 0.0
        %3684 = vmatpush.msra.mxu0 %v3271
        %3685 = vmatpush.msra.mxu0 %v3268
        %3686 = vmatpush.msra.mxu0 %v3265
        %3687 = vmatpush.msra.mxu0 %v3262
        %3688 = vmatmul.f32.gmra.mxu0 %v3506
        %v3689 = vpop.f32.mrf.mxu0
        %v3690 = vadd.f32 %v3500, %v3689
        %3691 = vmatmul.f32.gmra.mxu0 %v3509
        %v3692 = vpop.f32.mrf.mxu0
        %v3693 = vadd.f32 %v3503, %v3692
        %3694 = vdwg.mxu0
        %v3695 = vld [vmem:[%s3] sm:$0xff]
        %v3696 = vld [vmem:[%s3 + $0x8] sm:$0xff]
        %3698 = vset.pattern.permute.xlu0 9
        %3699 = vperm.xlu0 %3698, %v3695
        %v3700 = vpop.permute.xlu0 %3699
        %3703 = vset.pattern.permute.xlu0 9
        %3704 = vperm.xlu0 %3703, %v3696
        %v3705 = vpop.permute.xlu0 %3704
        %v3707 = vadd.f32 %v3529, %v3700
        %v3708 = vadd.f32 %v3552, %v3700
        %v3709 = vadd.f32 %v3575, %v3700
        %v3710 = vadd.f32 %v3598, %v3700
        %v3711 = vadd.f32 %v3621, %v3700
        %v3712 = vadd.f32 %v3644, %v3700
        %v3713 = vadd.f32 %v3667, %v3700
        %v3714 = vadd.f32 %v3690, %v3700
        %v3715 = vadd.f32 %v3532, %v3705
        %v3716 = vadd.f32 %v3555, %v3705
        %v3717 = vadd.f32 %v3578, %v3705
        %v3718 = vadd.f32 %v3601, %v3705
        %v3719 = vadd.f32 %v3624, %v3705
        %v3720 = vadd.f32 %v3647, %v3705
        %v3721 = vadd.f32 %v3670, %v3705
        %v3722 = vadd.f32 %v3693, %v3705
        %v3723 = vmax.f32 %v3707, 0.0
        %v3724 = vmax.f32 %v3708, 0.0
        %v3725 = vmax.f32 %v3709, 0.0
        %v3726 = vmax.f32 %v3710, 0.0
        %v3727 = vmax.f32 %v3711, 0.0
        %v3728 = vmax.f32 %v3712, 0.0
        %v3729 = vmax.f32 %v3713, 0.0
        %v3730 = vmax.f32 %v3714, 0.0
        %v3731 = vmax.f32 %v3715, 0.0
        %v3732 = vmax.f32 %v3716, 0.0
        %v3733 = vmax.f32 %v3717, 0.0
        %v3734 = vmax.f32 %v3718, 0.0
        %v3735 = vmax.f32 %v3719, 0.0
        %v3736 = vmax.f32 %v3720, 0.0
        %v3737 = vmax.f32 %v3721, 0.0
        %v3738 = vmax.f32 %v3722, 0.0
        %v3739 = vld [vmem:[%s2 + $0x1e0] sm:$0x7]
        %v3740 = vld [vmem:[%s3] sm:$0x7]
        %3742 = vset.pattern.permute.xlu0 10
        %3743 = vperm.xlu0 %3742, %v3740
        %v3744 = vpop.permute.xlu0 %3743
        %vm3746 = vcmask 130048
        %v3748 = vsel %vm3746, %v3739, 0
        %3750 = vmatpush.msra.mxu0 0.0
        %3751 = vmatpush.msra.mxu0 0.0
        %3752 = vmatpush.msra.mxu0 0.0
        %3753 = vmatpush.msra.mxu0 0.0
        %3754 = vmatpush.msra.mxu0 0.0
        %3755 = vmatpush.msra.mxu0 0.0
        %3756 = vmatpush.msra.mxu0 0.0
        %3757 = vmatpush.msra.mxu0 0.0
        %3758 = vmatpush.msra.mxu0 0.0
        %3759 = vmatpush.msra.mxu0 0.0
        %3760 = vmatpush.msra.mxu0 0.0
        %3761 = vmatpush.msra.mxu0 0.0
        %3762 = vmatpush.msra.mxu0 0.0
        %3763 = vmatpush.msra.mxu0 0.0
        %3764 = vmatpush.msra.mxu0 %v3731
        %3765 = vmatpush.msra.mxu0 %v3723
        %3766 = vmatmul.f32.gmra.mxu0 %v3748
        %v3767 = vpop.f32.mrf.mxu0
        %v3768 = vadd.f32 %v3744, %v3767
        %3769 = vdwg.mxu0
        %3770 = vmatpush.msra.mxu0 0.0
        %3771 = vmatpush.msra.mxu0 0.0
        %3772 = vmatpush.msra.mxu0 0.0
        %3773 = vmatpush.msra.mxu0 0.0
        %3774 = vmatpush.msra.mxu0 0.0
        %3775 = vmatpush.msra.mxu0 0.0
        %3776 = vmatpush.msra.mxu0 0.0
        %3777 = vmatpush.msra.mxu0 0.0
        %3778 = vmatpush.msra.mxu0 0.0
        %3779 = vmatpush.msra.mxu0 0.0
        %3780 = vmatpush.msra.mxu0 0.0
        %3781 = vmatpush.msra.mxu0 0.0
        %3782 = vmatpush.msra.mxu0 0.0
        %3783 = vmatpush.msra.mxu0 0.0
        %3784 = vmatpush.msra.mxu0 %v3732
        %3785 = vmatpush.msra.mxu0 %v3724
        %3786 = vmatmul.f32.gmra.mxu0 %v3748
        %v3787 = vpop.f32.mrf.mxu0
        %v3788 = vadd.f32 %v3744, %v3787
        %3789 = vdwg.mxu0
        %3790 = vmatpush.msra.mxu0 0.0
        %3791 = vmatpush.msra.mxu0 0.0
        %3792 = vmatpush.msra.mxu0 0.0
        %3793 = vmatpush.msra.mxu0 0.0
        %3794 = vmatpush.msra.mxu0 0.0
        %3795 = vmatpush.msra.mxu0 0.0
        %3796 = vmatpush.msra.mxu0 0.0
        %3797 = vmatpush.msra.mxu0 0.0
        %3798 = vmatpush.msra.mxu0 0.0
        %3799 = vmatpush.msra.mxu0 0.0
        %3800 = vmatpush.msra.mxu0 0.0
        %3801 = vmatpush.msra.mxu0 0.0
        %3802 = vmatpush.msra.mxu0 0.0
        %3803 = vmatpush.msra.mxu0 0.0
        %3804 = vmatpush.msra.mxu0 %v3733
        %3805 = vmatpush.msra.mxu0 %v3725
        %3806 = vmatmul.f32.gmra.mxu0 %v3748
        %v3807 = vpop.f32.mrf.mxu0
        %v3808 = vadd.f32 %v3744, %v3807
        %3809 = vdwg.mxu0
        %3810 = vmatpush.msra.mxu0 0.0
        %3811 = vmatpush.msra.mxu0 0.0
        %3812 = vmatpush.msra.mxu0 0.0
        %3813 = vmatpush.msra.mxu0 0.0
        %3814 = vmatpush.msra.mxu0 0.0
        %3815 = vmatpush.msra.mxu0 0.0
        %3816 = vmatpush.msra.mxu0 0.0
        %3817 = vmatpush.msra.mxu0 0.0
        %3818 = vmatpush.msra.mxu0 0.0
        %3819 = vmatpush.msra.mxu0 0.0
        %3820 = vmatpush.msra.mxu0 0.0
        %3821 = vmatpush.msra.mxu0 0.0
        %3822 = vmatpush.msra.mxu0 0.0
        %3823 = vmatpush.msra.mxu0 0.0
        %3824 = vmatpush.msra.mxu0 %v3734
        %3825 = vmatpush.msra.mxu0 %v3726
        %3826 = vmatmul.f32.gmra.mxu0 %v3748
        %v3827 = vpop.f32.mrf.mxu0
        %v3828 = vadd.f32 %v3744, %v3827
        %3829 = vdwg.mxu0
        %3830 = vmatpush.msra.mxu0 0.0
        %3831 = vmatpush.msra.mxu0 0.0
        %3832 = vmatpush.msra.mxu0 0.0
        %3833 = vmatpush.msra.mxu0 0.0
        %3834 = vmatpush.msra.mxu0 0.0
        %3835 = vmatpush.msra.mxu0 0.0
        %3836 = vmatpush.msra.mxu0 0.0
        %3837 = vmatpush.msra.mxu0 0.0
        %3838 = vmatpush.msra.mxu0 0.0
        %3839 = vmatpush.msra.mxu0 0.0
        %3840 = vmatpush.msra.mxu0 0.0
        %3841 = vmatpush.msra.mxu0 0.0
        %3842 = vmatpush.msra.mxu0 0.0
        %3843 = vmatpush.msra.mxu0 0.0
        %3844 = vmatpush.msra.mxu0 %v3735
        %3845 = vmatpush.msra.mxu0 %v3727
        %3846 = vmatmul.f32.gmra.mxu0 %v3748
        %v3847 = vpop.f32.mrf.mxu0
        %v3848 = vadd.f32 %v3744, %v3847
        %3849 = vdwg.mxu0
        %3850 = vmatpush.msra.mxu0 0.0
        %3851 = vmatpush.msra.mxu0 0.0
        %3852 = vmatpush.msra.mxu0 0.0
        %3853 = vmatpush.msra.mxu0 0.0
        %3854 = vmatpush.msra.mxu0 0.0
        %3855 = vmatpush.msra.mxu0 0.0
        %3856 = vmatpush.msra.mxu0 0.0
        %3857 = vmatpush.msra.mxu0 0.0
        %3858 = vmatpush.msra.mxu0 0.0
        %3859 = vmatpush.msra.mxu0 0.0
        %3860 = vmatpush.msra.mxu0 0.0
        %3861 = vmatpush.msra.mxu0 0.0
        %3862 = vmatpush.msra.mxu0 0.0
        %3863 = vmatpush.msra.mxu0 0.0
        %3864 = vmatpush.msra.mxu0 %v3736
        %3865 = vmatpush.msra.mxu0 %v3728
        %3866 = vmatmul.f32.gmra.mxu0 %v3748
        %v3867 = vpop.f32.mrf.mxu0
        %v3868 = vadd.f32 %v3744, %v3867
        %3869 = vdwg.mxu0
        %3870 = vmatpush.msra.mxu0 0.0
        %3871 = vmatpush.msra.mxu0 0.0
        %3872 = vmatpush.msra.mxu0 0.0
        %3873 = vmatpush.msra.mxu0 0.0
        %3874 = vmatpush.msra.mxu0 0.0
        %3875 = vmatpush.msra.mxu0 0.0
        %3876 = vmatpush.msra.mxu0 0.0
        %3877 = vmatpush.msra.mxu0 0.0
        %3878 = vmatpush.msra.mxu0 0.0
        %3879 = vmatpush.msra.mxu0 0.0
        %3880 = vmatpush.msra.mxu0 0.0
        %3881 = vmatpush.msra.mxu0 0.0
        %3882 = vmatpush.msra.mxu0 0.0
        %3883 = vmatpush.msra.mxu0 0.0
        %3884 = vmatpush.msra.mxu0 %v3737
        %3885 = vmatpush.msra.mxu0 %v3729
        %3886 = vmatmul.f32.gmra.mxu0 %v3748
        %v3887 = vpop.f32.mrf.mxu0
        %v3888 = vadd.f32 %v3744, %v3887
        %3889 = vdwg.mxu0
        %3890 = vmatpush.msra.mxu0 0.0
        %3891 = vmatpush.msra.mxu0 0.0
        %3892 = vmatpush.msra.mxu0 0.0
        %3893 = vmatpush.msra.mxu0 0.0
        %3894 = vmatpush.msra.mxu0 0.0
        %3895 = vmatpush.msra.mxu0 0.0
        %3896 = vmatpush.msra.mxu0 0.0
        %3897 = vmatpush.msra.mxu0 0.0
        %3898 = vmatpush.msra.mxu0 0.0
        %3899 = vmatpush.msra.mxu0 0.0
        %3900 = vmatpush.msra.mxu0 0.0
        %3901 = vmatpush.msra.mxu0 0.0
        %3902 = vmatpush.msra.mxu0 0.0
        %3903 = vmatpush.msra.mxu0 0.0
        %3904 = vmatpush.msra.mxu0 %v3738
        %3905 = vmatpush.msra.mxu0 %v3730
        %3906 = vmatmul.f32.gmra.mxu0 %v3748
        %v3907 = vpop.f32.mrf.mxu0
        %v3908 = vadd.f32 %v3744, %v3907
        %3909 = vdwg.mxu0
        %v3918 = vrot.slane %v3788, 4
        %v3919 = vrot.slane %v3828, 4
        %v3920 = vrot.slane %v3868, 4
        %v3921 = vrot.slane %v3908, 4
        %vm3922 = vcmask 1043456
        %v3923 = vsel %vm3922, %v3768, %v3918
        %v3924 = vsel %vm3922, %v3808, %v3919
        %v3925 = vsel %vm3922, %v3848, %v3920
        %v3926 = vsel %vm3922, %v3888, %v3921
        %3931 = vst [vmem:[%s207] sm:$0x77] %v3923
        %3932 = vst [vmem:[%s207 + $0x8] sm:$0x77] %v3924
        %3933 = vst [vmem:[%s207 + $0x10] sm:$0x77] %v3925
        %3934 = vst [vmem:[%s207 + $0x18] sm:$0x77] %v3926
        %v3943 = vrot.slane %v3082, 7
        %v3944 = vrot.slane %v3114, 6
        %v3945 = vrot.slane %v3146, 5
        %v3946 = vrot.slane %v3178, 4
        %v3947 = vrot.slane %v3210, 3
        %v3948 = vrot.slane %v3242, 2
        %v3949 = vrot.slane %v3274, 1
        %vm3950 = vcmask 1040384
        %v3951 = vsel %vm3950, %v3050, %v3943
        %vm3952 = vcmask 1042434
        %v3953 = vsel %vm3952, %v3944, %v3945
        %vm3954 = vcmask 1041408
        %v3955 = vsel %vm3954, %v3951, %v3953
        %vm3956 = vcmask 1044484
        %v3957 = vsel %vm3956, %v3946, %v3947
        %vm3958 = vcmask 1046534
        %v3959 = vsel %vm3958, %v3948, %v3949
        %vm3960 = vcmask 1045508
        %v3961 = vsel %vm3960, %v3957, %v3959
        %v3962 = vsel %vm3922, %v3955, %v3961
        %s3964 = scalar_lea.vmem %s207, 3 [#allocation2]
        %3965 = vst [vmem:[%s3964] ss:$4 sm:$0xff] %v3962
        %s3966 = sand.u32 %s120, 1
        %s3967 = scalar_lea.sflag [#allocation3], %s3966
        %s3968 = sand.u32 %s120, 1
        %s3969 = smul.addr %s3968, 32
        %s3970 = scalar_lea.vmem [#allocation2], %s3969
        // Predicated region
        $region37: #{tpu_custom_call.1} parent=35 // pred_check
          %p3971 = pneg %p130
        $region38: #{tpu_custom_call.1} parent=35 // pred_check_branch
          %3973 = sbr.rel (%p3971) target = $region40
        $region39: #{tpu_custom_call.1} parent=35 // pred_region
          %s3974 = smul.u32 8, %s18
          %3976 = vsyncadd %s3967, 0
          %s3977 = smul.addr %s3974, 4
          %s3978 = scalar_lea.hbm %s4, %s3977
          %s3980 = sshll.u32 %s3970, 4
          %s3981 = int_to_ptr.vmem [resolvable:$true] %s3980
          %s3982 = sshll.u32 %s3978, 4
          %s3983 = int_to_ptr.hbm [resolvable:$true] %s3982
          %3985 = dma.vmem_to_hbm [thread:$0]  %s3981, 512, %s3983, %s3967
        $region40: #{tpu_custom_call.1} parent=35 // pred_fallthru
          _
      $region36: #{tpu_custom_call.1} parent=5 // pred_fallthru
        _
      %p3986 = scmp.le.s32.totalorder 2, %s13
      // Predicated region
      $region41: #{tpu_custom_call.1} parent=5 // pred_check
        %p3987 = pneg %p3986
      $region42: #{tpu_custom_call.1} parent=5 // pred_check_branch
        %3989 = sbr.rel (%p3987) target = $region44
      $region43: #{tpu_custom_call.1} parent=5 // pred_region
        %s3990 = ssub.s32 %s13, 2
        // Predicated region
        $region45: #{tpu_custom_call.1} parent=43 // pred_check
          %p3991 = pneg %p136
        $region46: #{tpu_custom_call.1} parent=43 // pred_check_branch
          %3993 = sbr.rel (%p3991) target = $region48
        $region47: #{tpu_custom_call.1} parent=43 // pred_region
          %s3994 = sand.u32 %s121, 1
          %s3995 = scalar_lea.sflag [#allocation3], %s3994
          %s3996 = sand.u32 %s121, 1
          %s3997 = smul.addr %s3996, 32
          %s3998 = scalar_lea.vmem [#allocation2], %s3997
          %4000 = dma.done %s3995, 512
        $region48: #{tpu_custom_call.1} parent=43 // pred_fallthru
          _
      $region44: #{tpu_custom_call.1} parent=5 // pred_fallthru
        _
    $region6: #{tpu_custom_call.1} parent=1 // loop_footer
      %s17 = sadd.s32 1, %s13
    $region7: #{tpu_custom_call.1} parent=1 // loop_footer_branch
      %12 = sbr.rel target = $region3
    $region8: #{tpu_custom_call.1} parent=1 // loop_exit
      _
    %4001 = vsyncpa [#allocation3], 1
    %s4002 = scalar_lea.sflag [#allocation3], 1
    %4003 = vsyncpa %s4002, 1

</llo_original>
